<compile_context>
chip_gen: v5e
topology: v5e:2x2
jax: 0.10.0
libtpu: 0.0.40
codegen_flags: <defaults>
</compile_context>

<pallas_src>
import functools

import jax
import jax.numpy as jnp
from jax.experimental import pallas as pl
from jax.experimental.pallas import tpu as pltpu

# torch.finfo(torch.float32).eps -- default eps of F.rms_norm.  Plain Python
# float so the kernel trace does not capture a jnp constant.
_EPS = 1.1920928955078125e-07


def _rms(x):
    return x * jax.lax.rsqrt(jnp.mean(x * x, axis=-1, keepdims=True) + _EPS)


def _bf16(x):
    return x.astype(jnp.bfloat16)


# ----------------------------- Pallas kernels ------------------------------ #

def _qkv_body(lam_blk_ref, lam_attn_ref, x_ref, x0_ref, ve_ref, wqkv_ref,
              cos_ref, sin_ref, xmid_ref, q_ref, k_ref, v_ref,
              *, num_heads, head_dim):
    hdim = num_heads * head_dim
    half = head_dim // 2

    # Block.lambdas residual mix (done once; downstream kernel reuses x_mid).
    x = (lam_blk_ref[0] * x_ref[...].astype(jnp.float32)
         + lam_blk_ref[1] * x0_ref[...].astype(jnp.float32))
    xmid_ref[...] = x

    xn = _rms(x)
    qkv = jnp.dot(_bf16(xn), wqkv_ref[...], preferred_element_type=jnp.float32)

    cos = cos_ref[...]                      # (tq, head_dim)  = [cos,  cos]
    sin = sin_ref[...]                      # (tq, head_dim)  = [sin, -sin]
    la0 = lam_attn_ref[0]
    la1 = lam_attn_ref[1]

    for h in range(num_heads):              # static loop, H is small
        o = h * head_dim
        qh = _rms(qkv[:, o:o + head_dim])
        kh = _rms(qkv[:, hdim + o:hdim + o + head_dim])
        vh = qkv[:, 2 * hdim + o:2 * hdim + o + head_dim]

        # Rotary as ONE full-width (128-lane) store per head:
        #   y = x * [cos,cos] + roll(x, D/2) * [sin,-sin]
        # roll(x, D/2) = [x2, x1]  ->  y1 = x1*cos + x2*sin ; y2 = x2*cos - x1*sin.
        q_rot = qh * cos + pltpu.roll(qh, half, 1) * sin
        k_rot = kh * cos + pltpu.roll(kh, half, 1) * sin
        # Attention scale (0.12) folded into q once per row tile.
        q_ref[:, o:o + head_dim] = _bf16(q_rot * 0.12)
        k_ref[:, o:o + head_dim] = _bf16(k_rot)

        if ve_ref is not None:
            vh = la0 * vh + la1 * ve_ref[:, o:o + head_dim].astype(jnp.float32)
        else:
            vh = la0 * vh
        v_ref[:, o:o + head_dim] = _bf16(vh)


def _qkv_kernel_ve(lam_blk_ref, lam_attn_ref, x_ref, x0_ref, ve_ref, wqkv_ref,
                   cos_ref, sin_ref, xmid_ref, q_ref, k_ref, v_ref,
                   *, num_heads, head_dim):
    _qkv_body(lam_blk_ref, lam_attn_ref, x_ref, x0_ref, ve_ref, wqkv_ref,
              cos_ref, sin_ref, xmid_ref, q_ref, k_ref, v_ref,
              num_heads=num_heads, head_dim=head_dim)


def _qkv_kernel_no_ve(lam_blk_ref, lam_attn_ref, x_ref, x0_ref, wqkv_ref,
                      cos_ref, sin_ref, xmid_ref, q_ref, k_ref, v_ref,
                      *, num_heads, head_dim):
    _qkv_body(lam_blk_ref, lam_attn_ref, x_ref, x0_ref, None, wqkv_ref,
              cos_ref, sin_ref, xmid_ref, q_ref, k_ref, v_ref,
              num_heads=num_heads, head_dim=head_dim)


def _attn_mlp_kernel(q_ref, k_ref, v_ref, xmid_ref, wproj_ref, wfc_ref, wmlp_ref,
                     out_ref, m_sc, l_sc, acc_sc, y_sc,
                     *, num_heads, head_dim, tq, tk):
    """Flash attention (online softmax) + fused c_proj/residual/MLP finalize."""
    qi = pl.program_id(0)
    ki = pl.program_id(1)

    @pl.when(ki == 0)
    def _():
        m_sc[...] = jnp.full(m_sc.shape, -jnp.inf, m_sc.dtype)
        l_sc[...] = jnp.zeros(l_sc.shape, l_sc.dtype)
        acc_sc[...] = jnp.zeros(acc_sc.shape, acc_sc.dtype)

    def flash_step(mask):
        for h in range(num_heads):
            o = h * head_dim
            qh = q_ref[:, o:o + head_dim]          # bf16 (tq, D), pre-scaled
            kh = k_ref[:, o:o + head_dim]          # bf16 (tk, D)
            vh = v_ref[:, o:o + head_dim]          # bf16 (tk, D)
            # Contract both operands on their last axis (no explicit transpose).
            s = jax.lax.dot_general(qh, kh, (((1,), (1,)), ((), ())),
                                    preferred_element_type=jnp.float32)
            if mask is not None:
                s = jnp.where(mask, s, -jnp.inf)
            m_prev = m_sc[h]
            m_new = jnp.maximum(m_prev, jnp.max(s, axis=-1, keepdims=True))
            alpha = jnp.exp(m_prev - m_new)
            p = jnp.exp(s - m_new)
            l_sc[h] = alpha * l_sc[h] + jnp.sum(p, axis=-1, keepdims=True)
            acc_sc[:, o:o + head_dim] = (
                alpha * acc_sc[:, o:o + head_dim]
                + jnp.dot(_bf16(p), vh, preferred_element_type=jnp.float32))
            m_sc[h] = m_new

    # Strictly below the causal diagonal: no mask needed at all.
    @pl.when(ki * tk + (tk - 1) <= qi * tq)
    def _():
        flash_step(None)

    # Block crosses the diagonal: build and apply the causal mask (only here).
    @pl.when(jnp.logical_and(ki * tk + (tk - 1) > qi * tq,
                             ki * tk <= qi * tq + (tq - 1)))
    def _():
        row = qi * tq + jax.lax.broadcasted_iota(jnp.int32, (tq, tk), 0)
        col = ki * tk + jax.lax.broadcasted_iota(jnp.int32, (tq, tk), 1)
        flash_step(col <= row)

    # Blocks strictly above the diagonal are skipped entirely (and their K/V
    # index_map is clamped so no DMA is issued for them either).

    # Final kv step: attention projection + residual + MLP, fused so the attention
    # output and x_mid never round-trip through HBM.
    @pl.when(ki == pl.num_programs(1) - 1)
    def _():
        x = xmid_ref[...].astype(jnp.float32)
        for h in range(num_heads):
            o = h * head_dim
            inv = pl.reciprocal(l_sc[h], approx=True)   # EUP, ~free
            y_sc[:, o:o + head_dim] = _bf16(acc_sc[:, o:o + head_dim] * inv)
        # Single hdim-deep c_proj matmul (fills the 256-deep MXU on v6e/v7x).
        x = x + jnp.dot(y_sc[...], wproj_ref[...],
                        preferred_element_type=jnp.float32)
        xn = _rms(x)
        hid = jnp.dot(_bf16(xn), wfc_ref[...], preferred_element_type=jnp.float32)
        hid = jnp.square(jnp.maximum(hid, 0.0))
        out_ref[...] = x + jnp.dot(_bf16(hid), wmlp_ref[...],
                                   preferred_element_type=jnp.float32)


def _mlp_kernel(lam_ref, x_ref, x0_ref, wfc_ref, wmlp_ref, out_ref):
    """layer_idx == 7 path: residual mix + MLP only."""
    x = (lam_ref[0] * x_ref[...].astype(jnp.float32)
         + lam_ref[1] * x0_ref[...].astype(jnp.float32))
    xn = _rms(x)
    hid = jnp.dot(_bf16(xn), wfc_ref[...], preferred_element_type=jnp.float32)
    hid = jnp.square(jnp.maximum(hid, 0.0))
    out_ref[...] = x + jnp.dot(_bf16(hid), wmlp_ref[...],
                               preferred_element_type=jnp.float32)


# ------------------------------ wrappers ----------------------------------- #

def _smem_spec():
    return pl.BlockSpec(memory_space=pltpu.MemorySpace.SMEM)


def _qkv_call(lam_blk, lam_attn, x, x0, ve, wqkv, cos_full, sin_signed,
              *, num_heads, head_dim, tq):
    T, dim = x.shape
    hdim = num_heads * head_dim
    row = lambda i: (i, 0)
    const = lambda i: (0, 0)

    if ve is not None:
        kernel = functools.partial(_qkv_kernel_ve, num_heads=num_heads,
                                   head_dim=head_dim)
    else:
        kernel = functools.partial(_qkv_kernel_no_ve, num_heads=num_heads,
                                   head_dim=head_dim)

    in_specs = [_smem_spec(), _smem_spec(),
                pl.BlockSpec((tq, dim), row), pl.BlockSpec((tq, dim), row)]
    operands = [lam_blk, lam_attn, x, x0]
    if ve is not None:
        in_specs.append(pl.BlockSpec((tq, hdim), row))
        operands.append(ve)
    in_specs += [pl.BlockSpec((dim, 3 * hdim), const),      # qkv weight, resident
                 pl.BlockSpec((tq, head_dim), row),         # rope cos (full width)
                 pl.BlockSpec((tq, head_dim), row)]         # rope sin (sign folded)
    operands += [wqkv, cos_full, sin_signed]

    out_shape = (jax.ShapeDtypeStruct((T, dim), jnp.float32),
                 jax.ShapeDtypeStruct((T, hdim), jnp.bfloat16),
                 jax.ShapeDtypeStruct((T, hdim), jnp.bfloat16),
                 jax.ShapeDtypeStruct((T, hdim), jnp.bfloat16))
    out_specs = (pl.BlockSpec((tq, dim), row),
                 pl.BlockSpec((tq, hdim), row),
                 pl.BlockSpec((tq, hdim), row),
                 pl.BlockSpec((tq, hdim), row))
    return pl.pallas_call(
        kernel,
        grid=(T // tq,),
        in_specs=in_specs,
        out_specs=out_specs,
        out_shape=out_shape,
        compiler_params=pltpu.CompilerParams(dimension_semantics=("parallel",)),
    )(*operands)


def _attn_mlp_call(q, k, v, x_mid, wproj, wfc, wmlp, *, num_heads, head_dim, tq, tk):
    T, hdim = q.shape
    dim = x_mid.shape[1]
    dff = wfc.shape[1]
    kernel = functools.partial(_attn_mlp_kernel, num_heads=num_heads,
                               head_dim=head_dim, tq=tq, tk=tk)

    # K/V index_map clamped to the causal diagonal: above-diagonal kv blocks keep
    # the same block index, so Pallas never DMAs them (compute there is skipped
    # by the pl.when guard in the kernel -- keep both!).
    def kv_map(i, j):
        last = (i * tq + tq - 1) // tk
        return (jnp.minimum(j, last), 0)

    return pl.pallas_call(
        kernel,
        grid=(T // tq, T // tk),
        in_specs=[
            pl.BlockSpec((tq, hdim), lambda i, j: (i, 0)),   # q
            pl.BlockSpec((tk, hdim), kv_map),                # k (causal-clamped)
            pl.BlockSpec((tk, hdim), kv_map),                # v (causal-clamped)
            pl.BlockSpec((tq, dim), lambda i, j: (i, 0)),    # x_mid
            pl.BlockSpec((hdim, dim), lambda i, j: (0, 0)),  # attn c_proj (resident)
            pl.BlockSpec((dim, dff), lambda i, j: (0, 0)),   # mlp c_fc    (resident)
            pl.BlockSpec((dff, dim), lambda i, j: (0, 0)),   # mlp c_proj  (resident)
        ],
        out_specs=pl.BlockSpec((tq, dim), lambda i, j: (i, 0)),
        out_shape=jax.ShapeDtypeStruct((T, dim), jnp.float32),
        scratch_shapes=[pltpu.VMEM((num_heads, tq, 1), jnp.float32),   # m
                        pltpu.VMEM((num_heads, tq, 1), jnp.float32),   # l
                        pltpu.VMEM((tq, hdim), jnp.float32),           # acc (per-head lane slices)
                        pltpu.VMEM((tq, hdim), jnp.bfloat16)],         # normalized y for c_proj
        compiler_params=pltpu.CompilerParams(
            dimension_semantics=("parallel", "arbitrary"),
            vmem_limit_bytes=40 * 1024 * 1024),
    )(q, k, v, x_mid, wproj, wfc, wmlp)


def _mlp_call(lam, x, x0, wfc, wmlp, *, tq):
    T, dim = x.shape
    dff = wfc.shape[1]
    row = lambda i: (i, 0)
    const = lambda i: (0, 0)
    return pl.pallas_call(
        _mlp_kernel,
        grid=(T // tq,),
        in_specs=[_smem_spec(),
                  pl.BlockSpec((tq, dim), row), pl.BlockSpec((tq, dim), row),
                  pl.BlockSpec((dim, dff), const), pl.BlockSpec((dff, dim), const)],
        out_specs=pl.BlockSpec((tq, dim), row),
        out_shape=jax.ShapeDtypeStruct((T, dim), jnp.float32),
        compiler_params=pltpu.CompilerParams(dimension_semantics=("parallel",)),
    )(lam, x, x0, wfc, wmlp)


def block_forward(x_btd, ve_btd, x0_btd, params, *, num_heads, head_dim,
                  has_attn=True, tq=128, tk=128):
    """Pallas version of Block.forward(x, ve, x0, block_mask) with a causal mask.

    For production sequence lengths prefer tq=256, tk=512 on v6e/v7x (per-step
    overhead amortization); 128/128 kept here for the small test shapes.
    """
    assert x_btd.shape[0] == 1, "Must use batch size = 1 (FlexAttention constraint)"
    # No wrapper upcasts: inputs stay in native dtype; kernels upcast in VMEM.
    x = x_btd[0]
    x0 = x0_btd[0]
    T, _ = x.shape
    tq = min(tq, T)
    tk = min(tk, T)
    assert T % tq == 0 and T % tk == 0, "seq length must be a multiple of the tile"

    if not has_attn:   # layer_idx == 7: residual mix happens inside the MLP kernel
        out = _mlp_call(params["block_lambdas"], x, x0,
                        params["fc_wT"], params["mlp_proj_wT"], tq=tq)
        return out[None]

    ve = ve_btd[0] if ve_btd is not None else None
    x_mid, q, k, v = _qkv_call(
        params["block_lambdas"], params["attn_lambdas"], x, x0, ve,
        params["qkv_wT"], params["rope_cos_full"][:T], params["rope_sin_signed"][:T],
        num_heads=num_heads, head_dim=head_dim, tq=tq)
    out = _attn_mlp_call(q, k, v, x_mid,
                         params["attn_proj_wT"], params["fc_wT"],
                         params["mlp_proj_wT"],
                         num_heads=num_heads, head_dim=head_dim, tq=tq, tk=tk)
    return out[None]


# ----------------------- deterministic parameter init ---------------------- #

def init_params(key, dim, num_heads, head_dim, max_seq_len):
    hdim = num_heads * head_dim
    bound = (3.0 ** 0.5) * 0.5 * dim ** (-0.5)
    k1, k2, k3, k4 = jax.random.split(key, 4)
    qkv_w = jax.random.uniform(k1, (3 * hdim, dim), jnp.float32, -bound, bound)
    # NOTE: the reference zero-initializes both c_proj weights (residual branches
    # start at 0).  We use small random values so the kernel math is exercised.
    attn_proj_w = 0.02 * jax.random.normal(k2, (dim, hdim), jnp.float32)
    fc_w = jax.random.uniform(k3, (4 * dim, dim), jnp.float32, -bound, bound)
    mlp_proj_w = 0.02 * jax.random.normal(k4, (dim, 4 * dim), jnp.float32)

    # Rotary buffers (Rotary.__init__): dq real frequencies followed by dq zeros.
    dq = head_dim // 4
    ang = (1.0 / 1024.0) ** jnp.linspace(0.0, 1.0, dq, dtype=jnp.float32)
    ang = jnp.concatenate([ang, jnp.zeros((dq,), jnp.float32)])
    t = jnp.arange(max_seq_len, dtype=jnp.float32)
    theta = t[:, None] * ang[None, :]
    cos, sin = jnp.cos(theta), jnp.sin(theta)            # (T, head_dim // 2)
    # Full-head_dim-width slabs for lane-dense rotary stores in the kernel:
    #   y = x * [cos, cos] + roll(x, D/2) * [sin, -sin]
    cos_full = jnp.concatenate([cos, cos], axis=-1)       # (T, head_dim)
    sin_signed = jnp.concatenate([sin, -sin], axis=-1)    # (T, head_dim)

    return dict(
        qkv_wT=qkv_w.T.astype(jnp.bfloat16),               # (dim, 3*hdim)
        attn_proj_wT=attn_proj_w.T.astype(jnp.bfloat16),   # (hdim, dim)
        fc_wT=fc_w.T.astype(jnp.bfloat16),                 # (dim, 4*dim)
        mlp_proj_wT=mlp_proj_w.T.astype(jnp.bfloat16),     # (4*dim, dim)
        attn_lambdas=jnp.array([0.5, 0.5], jnp.float32),
        block_lambdas=jnp.array([1.0, 0.0], jnp.float32),
        rope_cos=cos, rope_sin=sin,
        rope_cos_full=cos_full, rope_sin_signed=sin_signed,
    )


# --------------------------- pure-JAX reference ----------------------------- #

def block_ref(x_btd, ve_btd, x0_btd, params, *, num_heads, head_dim, has_attn=True):
    def rms(z):
        return z * jax.lax.rsqrt(jnp.mean(z * z, -1, keepdims=True) + _EPS)

    def bdot(a, w):   # mirrors kernel numerics: bf16 operands, f32 accumulation
        return jnp.dot(a.astype(jnp.bfloat16), w, preferred_element_type=jnp.float32)

    x = x_btd[0].astype(jnp.float32)
    x0 = x0_btd[0].astype(jnp.float32)
    T = x.shape[0]
    H, D = num_heads, head_dim
    hdim, half = H * D, D // 2
    lam = params["block_lambdas"]
    x = lam[0] * x + lam[1] * x0
    if has_attn:
        xn = rms(x)
        qkv = bdot(xn, params["qkv_wT"])
        q = qkv[:, :hdim].reshape(T, H, D)
        k = qkv[:, hdim:2 * hdim].reshape(T, H, D)
        v = qkv[:, 2 * hdim:].reshape(T, H, D)
        q, k = rms(q), rms(k)
        cos = params["rope_cos"][:T][:, None, :]
        sin = params["rope_sin"][:T][:, None, :]

        def rope(z):
            z1, z2 = z[..., :half], z[..., half:]
            return jnp.concatenate([z1 * cos + z2 * sin, z2 * cos - z1 * sin], -1)

        q, k = rope(q), rope(k)
        la = params["attn_lambdas"]
        if ve_btd is not None:
            v = la[0] * v + la[1] * ve_btd[0].astype(jnp.float32).reshape(T, H, D)
        else:
            v = la[0] * v
        qb, kb, vb = q.astype(jnp.bfloat16), k.astype(jnp.bfloat16), v.astype(jnp.bfloat16)
        s = jnp.einsum("thd,shd->hts", qb, kb,
                       preferred_element_type=jnp.float32) * 0.12
        mask = jnp.tril(jnp.ones((T, T), bool))
        s = jnp.where(mask[None], s, -jnp.inf)
        p = jax.nn.softmax(s, axis=-1)
        y = jnp.einsum("hts,shd->thd", p.astype(jnp.bfloat16), vb,
                       preferred_element_type=jnp.float32).reshape(T, hdim)
        x = x + bdot(y, params["attn_proj_wT"])
    xn = rms(x)
    h = jnp.square(jnp.maximum(bdot(xn, params["fc_wT"]), 0.0))
    return (x + bdot(h, params["mlp_proj_wT"]))[None]


# ----------------------------------- main ----------------------------------- #

if __name__ == "__main__":
    B, T, dim = 1, 256, 128
    num_heads, head_dim = 2, 128        # head_dim=128 is the module default

    key = jax.random.PRNGKey(0)
    kx, kv, k0, kp = jax.random.split(key, 4)
    x = jax.random.normal(kx, (B, T, dim), jnp.float32)
    x0 = jax.random.normal(k0, (B, T, dim), jnp.float32)
    ve = jax.random.normal(kv, (B, T, num_heads * head_dim), jnp.float32)
    params = init_params(kp, dim, num_heads, head_dim, max_seq_len=T)
    # Module init is [1.0, 0.0]; use nonzero mix so the x0 path is exercised.
    params["block_lambdas"] = jnp.array([0.7, 0.3], jnp.float32)

    # 1) attention block with value embeddings
    out = block_forward(x, ve, x0, params, num_heads=num_heads,
                        head_dim=head_dim, has_attn=True)
    out = jax.block_until_ready(out)
    assert out.shape == (B, T, dim)
    ref = block_ref(x, ve, x0, params, num_heads=num_heads,
                    head_dim=head_dim, has_attn=True)
    err = float(jnp.max(jnp.abs(out - ref)))
    assert jnp.allclose(out, ref, atol=2e-2, rtol=2e-2), f"attn+ve max abs err {err}"

    # 2) attention block without value embeddings (ve=None specialization)
    out_nv = jax.block_until_ready(
        block_forward(x, None, x0, params, num_heads=num_heads,
                      head_dim=head_dim, has_attn=True))
    ref_nv = block_ref(x, None, x0, params, num_heads=num_heads,
                       head_dim=head_dim, has_attn=True)
    err = float(jnp.max(jnp.abs(out_nv - ref_nv)))
    assert jnp.allclose(out_nv, ref_nv, atol=2e-2, rtol=2e-2), f"no-ve max abs err {err}"

    # 3) layer_idx == 7 path: no attention
    out_m = jax.block_until_ready(
        block_forward(x, None, x0, params, num_heads=num_heads,
                      head_dim=head_dim, has_attn=False))
    ref_m = block_ref(x, None, x0, params, num_heads=num_heads,
                      head_dim=head_dim, has_attn=False)
    err = float(jnp.max(jnp.abs(out_m - ref_m)))
    assert jnp.allclose(out_m, ref_m, atol=2e-2, rtol=2e-2), f"mlp-only max abs err {err}"

    print("KERNEL_OK")
</pallas_src>

<mosaic_0001>
module attributes {stable_mosaic.version = 11 : i64} {
  func.func @_qkv_kernel_ve(%arg0: i32, %arg1: memref<2xf32, #tpu.memory_space<smem>>, %arg2: memref<2xf32, #tpu.memory_space<smem>>, %arg3: memref<128x128xf32, #tpu.memory_space<vmem>>, %arg4: memref<128x128xf32, #tpu.memory_space<vmem>>, %arg5: memref<128x256xf32, #tpu.memory_space<vmem>>, %arg6: memref<128x768xbf16, #tpu.memory_space<vmem>>, %arg7: memref<128x128xf32, #tpu.memory_space<vmem>>, %arg8: memref<128x128xf32, #tpu.memory_space<vmem>>, %arg9: memref<128x128xf32, #tpu.memory_space<vmem>>, %arg10: memref<128x256xbf16, #tpu.memory_space<vmem>>, %arg11: memref<128x256xbf16, #tpu.memory_space<vmem>>, %arg12: memref<128x256xbf16, #tpu.memory_space<vmem>>) attributes {dimension_semantics = [#tpu.dimension_semantics<parallel>], iteration_bounds = array<i64: 2>, scalar_prefetch = 0 : i64, scratch_operands = 0 : i64, tpu.core_type = #tpu.core_type<tc>, window_params = [{transform_indices = @transform_0, window_bounds = array<i64: 2>}, {transform_indices = @transform_1, window_bounds = array<i64: 2>}, {transform_indices = @transform_2, window_bounds = array<i64: 128, 128>}, {transform_indices = @transform_3, window_bounds = array<i64: 128, 128>}, {transform_indices = @transform_4, window_bounds = array<i64: 128, 256>}, {pipeline_mode = #tpu.pipeline_mode<synchronous>, transform_indices = @transform_5, window_bounds = array<i64: 128, 768>}, {transform_indices = @transform_6, window_bounds = array<i64: 128, 128>}, {transform_indices = @transform_7, window_bounds = array<i64: 128, 128>}, {transform_indices = @transform_8, window_bounds = array<i64: 128, 128>}, {transform_indices = @transform_9, window_bounds = array<i64: 128, 256>}, {transform_indices = @transform_10, window_bounds = array<i64: 128, 256>}, {transform_indices = @transform_11, window_bounds = array<i64: 128, 256>}]} {
    %c0 = arith.constant 0 : index
    %0 = memref.load %arg1[%c0] : memref<2xf32, #tpu.memory_space<smem>>
    %c0_0 = arith.constant 0 : index
    %c0_1 = arith.constant 0 : index
    %1 = vector.load %arg3[%c0_0, %c0_1] : memref<128x128xf32, #tpu.memory_space<vmem>>, vector<128x128xf32>
    %2 = vector.broadcast %0 : f32 to vector<128x128xf32>
    %3 = arith.mulf %2, %1 : vector<128x128xf32>
    %c1 = arith.constant 1 : index
    %4 = memref.load %arg1[%c1] : memref<2xf32, #tpu.memory_space<smem>>
    %c0_2 = arith.constant 0 : index
    %c0_3 = arith.constant 0 : index
    %5 = vector.load %arg4[%c0_2, %c0_3] : memref<128x128xf32, #tpu.memory_space<vmem>>, vector<128x128xf32>
    %6 = vector.broadcast %4 : f32 to vector<128x128xf32>
    %7 = arith.mulf %6, %5 : vector<128x128xf32>
    %8 = arith.addf %3, %7 : vector<128x128xf32>
    %c0_4 = arith.constant 0 : index
    %c0_5 = arith.constant 0 : index
    %9 = vector.load %arg9[%c0_4, %c0_5] : memref<128x128xf32, #tpu.memory_space<vmem>>, vector<128x128xf32>
    tpu.vector_store %arg9[%c0_4, %c0_5], %8 {strides = array<i32>} : memref<128x128xf32, #tpu.memory_space<vmem>>, vector<128x128xf32>,
    %10 = arith.mulf %8, %8 : vector<128x128xf32>
    %cst = arith.constant dense<0.000000e+00> : vector<128xf32>
    %11 = vector.multi_reduction <add>, %10, %cst [1] : vector<128x128xf32> to vector<128xf32>
    %12 = vector.shape_cast %11 : vector<128xf32> to vector<128x1xf32>
    %cst_6 = arith.constant 1.280000e+02 : f32
    %13 = vector.broadcast %cst_6 : f32 to vector<128x1xf32>
    %14 = arith.divf %12, %13 : vector<128x1xf32>
    %cst_7 = arith.constant 1.1920929E-7 : f32
    %15 = vector.broadcast %cst_7 : f32 to vector<128x1xf32>
    %16 = arith.addf %14, %15 : vector<128x1xf32>
    %17 = math.rsqrt %16 : vector<128x1xf32>
    %18 = vector.broadcast %17 : vector<128x1xf32> to vector<128x128xf32>
    %19 = arith.mulf %8, %18 : vector<128x128xf32>
    %20 = arith.truncf %19 : vector<128x128xf32> to vector<128x128xbf16>
    %c0_8 = arith.constant 0 : index
    %c0_9 = arith.constant 0 : index
    %21 = vector.load %arg6[%c0_8, %c0_9] : memref<128x768xbf16, #tpu.memory_space<vmem>>, vector<128x768xbf16>
    %cst_10 = arith.constant dense<0.000000e+00> : vector<128x768xf32>
    %22 = tpu.matmul %20, %21, %cst_10 {dimension_numbers = #tpu.dot_dimension_numbers<[1], [0], [0], [1], [0, 0, 1, 1], [], []>} : vector<128x128xbf16>, vector<128x768xbf16>, vector<128x768xf32> -> vector<128x768xf32>
    %c0_11 = arith.constant 0 : index
    %c0_12 = arith.constant 0 : index
    %23 = vector.load %arg7[%c0_11, %c0_12] : memref<128x128xf32, #tpu.memory_space<vmem>>, vector<128x128xf32>
    %c0_13 = arith.constant 0 : index
    %c0_14 = arith.constant 0 : index
    %24 = vector.load %arg8[%c0_13, %c0_14] : memref<128x128xf32, #tpu.memory_space<vmem>>, vector<128x128xf32>
    %c0_15 = arith.constant 0 : index
    %25 = memref.load %arg2[%c0_15] : memref<2xf32, #tpu.memory_space<smem>>
    %c1_16 = arith.constant 1 : index
    %26 = memref.load %arg2[%c1_16] : memref<2xf32, #tpu.memory_space<smem>>
    %27 = vector.extract_strided_slice %22 {offsets = [0, 0], sizes = [128, 128], strides = [1, 1]} : vector<128x768xf32> to vector<128x128xf32>
    %28 = arith.mulf %27, %27 : vector<128x128xf32>
    %cst_17 = arith.constant dense<0.000000e+00> : vector<128xf32>
    %29 = vector.multi_reduction <add>, %28, %cst_17 [1] : vector<128x128xf32> to vector<128xf32>
    %30 = vector.shape_cast %29 : vector<128xf32> to vector<128x1xf32>
    %cst_18 = arith.constant 1.280000e+02 : f32
    %31 = vector.broadcast %cst_18 : f32 to vector<128x1xf32>
    %32 = arith.divf %30, %31 : vector<128x1xf32>
    %cst_19 = arith.constant 1.1920929E-7 : f32
    %33 = vector.broadcast %cst_19 : f32 to vector<128x1xf32>
    %34 = arith.addf %32, %33 : vector<128x1xf32>
    %35 = math.rsqrt %34 : vector<128x1xf32>
    %36 = vector.broadcast %35 : vector<128x1xf32> to vector<128x128xf32>
    %37 = arith.mulf %27, %36 : vector<128x128xf32>
    %38 = vector.extract_strided_slice %22 {offsets = [0, 256], sizes = [128, 128], strides = [1, 1]} : vector<128x768xf32> to vector<128x128xf32>
    %39 = arith.mulf %38, %38 : vector<128x128xf32>
    %cst_20 = arith.constant dense<0.000000e+00> : vector<128xf32>
    %40 = vector.multi_reduction <add>, %39, %cst_20 [1] : vector<128x128xf32> to vector<128xf32>
    %41 = vector.shape_cast %40 : vector<128xf32> to vector<128x1xf32>
    %cst_21 = arith.constant 1.280000e+02 : f32
    %42 = vector.broadcast %cst_21 : f32 to vector<128x1xf32>
    %43 = arith.divf %41, %42 : vector<128x1xf32>
    %cst_22 = arith.constant 1.1920929E-7 : f32
    %44 = vector.broadcast %cst_22 : f32 to vector<128x1xf32>
    %45 = arith.addf %43, %44 : vector<128x1xf32>
    %46 = math.rsqrt %45 : vector<128x1xf32>
    %47 = vector.broadcast %46 : vector<128x1xf32> to vector<128x128xf32>
    %48 = arith.mulf %38, %47 : vector<128x128xf32>
    %49 = vector.extract_strided_slice %22 {offsets = [0, 512], sizes = [128, 128], strides = [1, 1]} : vector<128x768xf32> to vector<128x128xf32>
    %50 = arith.mulf %37, %23 : vector<128x128xf32>
    %c64_i32 = arith.constant 64 : i32
    %51 = tpu.dynamic_rotate %37 by %c64_i32 dim 1 : vector<128x128xf32>, i32 -> vector<128x128xf32>
    %52 = arith.mulf %51, %24 : vector<128x128xf32>
    %53 = arith.addf %50, %52 : vector<128x128xf32>
    %54 = arith.mulf %48, %23 : vector<128x128xf32>
    %c64_i32_23 = arith.constant 64 : i32
    %55 = tpu.dynamic_rotate %48 by %c64_i32_23 dim 1 : vector<128x128xf32>, i32 -> vector<128x128xf32>
    %56 = arith.mulf %55, %24 : vector<128x128xf32>
    %57 = arith.addf %54, %56 : vector<128x128xf32>
    %cst_24 = arith.constant 1.200000e-01 : f32
    %58 = vector.broadcast %cst_24 : f32 to vector<128x128xf32>
    %59 = arith.mulf %53, %58 : vector<128x128xf32>
    %60 = arith.truncf %59 : vector<128x128xf32> to vector<128x128xbf16>
    %c0_25 = arith.constant 0 : index
    %c0_26 = arith.constant 0 : index
    %61 = vector.load %arg10[%c0_25, %c0_26] : memref<128x256xbf16, #tpu.memory_space<vmem>>, vector<128x128xbf16>
    tpu.vector_store %arg10[%c0_25, %c0_26], %60 {strides = array<i32>} : memref<128x256xbf16, #tpu.memory_space<vmem>>, vector<128x128xbf16>,
    %62 = arith.truncf %57 : vector<128x128xf32> to vector<128x128xbf16>
    %c0_27 = arith.constant 0 : index
    %c0_28 = arith.constant 0 : index
    %63 = vector.load %arg11[%c0_27, %c0_28] : memref<128x256xbf16, #tpu.memory_space<vmem>>, vector<128x128xbf16>
    tpu.vector_store %arg11[%c0_27, %c0_28], %62 {strides = array<i32>} : memref<128x256xbf16, #tpu.memory_space<vmem>>, vector<128x128xbf16>,
    %64 = vector.broadcast %25 : f32 to vector<128x128xf32>
    %65 = arith.mulf %64, %49 : vector<128x128xf32>
    %c0_29 = arith.constant 0 : index
    %c0_30 = arith.constant 0 : index
    %66 = vector.load %arg5[%c0_29, %c0_30] : memref<128x256xf32, #tpu.memory_space<vmem>>, vector<128x128xf32>
    %67 = vector.broadcast %26 : f32 to vector<128x128xf32>
    %68 = arith.mulf %67, %66 : vector<128x128xf32>
    %69 = arith.addf %65, %68 : vector<128x128xf32>
    %70 = arith.truncf %69 : vector<128x128xf32> to vector<128x128xbf16>
    %c0_31 = arith.constant 0 : index
    %c0_32 = arith.constant 0 : index
    %71 = vector.load %arg12[%c0_31, %c0_32] : memref<128x256xbf16, #tpu.memory_space<vmem>>, vector<128x128xbf16>
    tpu.vector_store %arg12[%c0_31, %c0_32], %70 {strides = array<i32>} : memref<128x256xbf16, #tpu.memory_space<vmem>>, vector<128x128xbf16>,
    %72 = vector.extract_strided_slice %22 {offsets = [0, 128], sizes = [128, 128], strides = [1, 1]} : vector<128x768xf32> to vector<128x128xf32>
    %73 = arith.mulf %72, %72 : vector<128x128xf32>
    %cst_33 = arith.constant dense<0.000000e+00> : vector<128xf32>
    %74 = vector.multi_reduction <add>, %73, %cst_33 [1] : vector<128x128xf32> to vector<128xf32>
    %75 = vector.shape_cast %74 : vector<128xf32> to vector<128x1xf32>
    %cst_34 = arith.constant 1.280000e+02 : f32
    %76 = vector.broadcast %cst_34 : f32 to vector<128x1xf32>
    %77 = arith.divf %75, %76 : vector<128x1xf32>
    %cst_35 = arith.constant 1.1920929E-7 : f32
    %78 = vector.broadcast %cst_35 : f32 to vector<128x1xf32>
    %79 = arith.addf %77, %78 : vector<128x1xf32>
    %80 = math.rsqrt %79 : vector<128x1xf32>
    %81 = vector.broadcast %80 : vector<128x1xf32> to vector<128x128xf32>
    %82 = arith.mulf %72, %81 : vector<128x128xf32>
    %83 = vector.extract_strided_slice %22 {offsets = [0, 384], sizes = [128, 128], strides = [1, 1]} : vector<128x768xf32> to vector<128x128xf32>
    %84 = arith.mulf %83, %83 : vector<128x128xf32>
    %cst_36 = arith.constant dense<0.000000e+00> : vector<128xf32>
    %85 = vector.multi_reduction <add>, %84, %cst_36 [1] : vector<128x128xf32> to vector<128xf32>
    %86 = vector.shape_cast %85 : vector<128xf32> to vector<128x1xf32>
    %cst_37 = arith.constant 1.280000e+02 : f32
    %87 = vector.broadcast %cst_37 : f32 to vector<128x1xf32>
    %88 = arith.divf %86, %87 : vector<128x1xf32>
    %cst_38 = arith.constant 1.1920929E-7 : f32
    %89 = vector.broadcast %cst_38 : f32 to vector<128x1xf32>
    %90 = arith.addf %88, %89 : vector<128x1xf32>
    %91 = math.rsqrt %90 : vector<128x1xf32>
    %92 = vector.broadcast %91 : vector<128x1xf32> to vector<128x128xf32>
    %93 = arith.mulf %83, %92 : vector<128x128xf32>
    %94 = vector.extract_strided_slice %22 {offsets = [0, 640], sizes = [128, 128], strides = [1, 1]} : vector<128x768xf32> to vector<128x128xf32>
    %95 = arith.mulf %82, %23 : vector<128x128xf32>
    %c64_i32_39 = arith.constant 64 : i32
    %96 = tpu.dynamic_rotate %82 by %c64_i32_39 dim 1 : vector<128x128xf32>, i32 -> vector<128x128xf32>
    %97 = arith.mulf %96, %24 : vector<128x128xf32>
    %98 = arith.addf %95, %97 : vector<128x128xf32>
    %99 = arith.mulf %93, %23 : vector<128x128xf32>
    %c64_i32_40 = arith.constant 64 : i32
    %100 = tpu.dynamic_rotate %93 by %c64_i32_40 dim 1 : vector<128x128xf32>, i32 -> vector<128x128xf32>
    %101 = arith.mulf %100, %24 : vector<128x128xf32>
    %102 = arith.addf %99, %101 : vector<128x128xf32>
    %cst_41 = arith.constant 1.200000e-01 : f32
    %103 = vector.broadcast %cst_41 : f32 to vector<128x128xf32>
    %104 = arith.mulf %98, %103 : vector<128x128xf32>
    %105 = arith.truncf %104 : vector<128x128xf32> to vector<128x128xbf16>
    %c0_42 = arith.constant 0 : index
    %c128 = arith.constant 128 : index
    %106 = vector.load %arg10[%c0_42, %c128] : memref<128x256xbf16, #tpu.memory_space<vmem>>, vector<128x128xbf16>
    tpu.vector_store %arg10[%c0_42, %c128], %105 {strides = array<i32>} : memref<128x256xbf16, #tpu.memory_space<vmem>>, vector<128x128xbf16>,
    %107 = arith.truncf %102 : vector<128x128xf32> to vector<128x128xbf16>
    %c0_43 = arith.constant 0 : index
    %c128_44 = arith.constant 128 : index
    %108 = vector.load %arg11[%c0_43, %c128_44] : memref<128x256xbf16, #tpu.memory_space<vmem>>, vector<128x128xbf16>
    tpu.vector_store %arg11[%c0_43, %c128_44], %107 {strides = array<i32>} : memref<128x256xbf16, #tpu.memory_space<vmem>>, vector<128x128xbf16>,
    %109 = vector.broadcast %25 : f32 to vector<128x128xf32>
    %110 = arith.mulf %109, %94 : vector<128x128xf32>
    %c0_45 = arith.constant 0 : index
    %c128_46 = arith.constant 128 : index
    %111 = vector.load %arg5[%c0_45, %c128_46] : memref<128x256xf32, #tpu.memory_space<vmem>>, vector<128x128xf32>
    %112 = vector.broadcast %26 : f32 to vector<128x128xf32>
    %113 = arith.mulf %112, %111 : vector<128x128xf32>
    %114 = arith.addf %110, %113 : vector<128x128xf32>
    %115 = arith.truncf %114 : vector<128x128xf32> to vector<128x128xbf16>
    %c0_47 = arith.constant 0 : index
    %c128_48 = arith.constant 128 : index
    %116 = vector.load %arg12[%c0_47, %c128_48] : memref<128x256xbf16, #tpu.memory_space<vmem>>, vector<128x128xbf16>
    tpu.vector_store %arg12[%c0_47, %c128_48], %115 {strides = array<i32>} : memref<128x256xbf16, #tpu.memory_space<vmem>>, vector<128x128xbf16>,
    return
  }
  func.func @transform_0(%arg0: i32) -> i32 {
    %c0_i32 = arith.constant 0 : i32
    %c0_i32_0 = arith.constant 0 : i32
    return %c0_i32 : i32
  }
  func.func @transform_1(%arg0: i32) -> i32 {
    %c0_i32 = arith.constant 0 : i32
    %c0_i32_0 = arith.constant 0 : i32
    return %c0_i32 : i32
  }
  func.func @transform_2(%arg0: i32) -> (i32, i32) {
    %c0_i32 = arith.constant 0 : i32
    %c0_i32_0 = arith.constant 0 : i32
    return %arg0, %c0_i32 : i32, i32
  }
  func.func @transform_3(%arg0: i32) -> (i32, i32) {
    %c0_i32 = arith.constant 0 : i32
    %c0_i32_0 = arith.constant 0 : i32
    return %arg0, %c0_i32 : i32, i32
  }
  func.func @transform_4(%arg0: i32) -> (i32, i32) {
    %c0_i32 = arith.constant 0 : i32
    %c0_i32_0 = arith.constant 0 : i32
    return %arg0, %c0_i32 : i32, i32
  }
  func.func @transform_5(%arg0: i32) -> (i32, i32) {
    %c0_i32 = arith.constant 0 : i32
    %c0_i32_0 = arith.constant 0 : i32
    %c0_i32_1 = arith.constant 0 : i32
    return %c0_i32, %c0_i32_0 : i32, i32
  }
  func.func @transform_6(%arg0: i32) -> (i32, i32) {
    %c0_i32 = arith.constant 0 : i32
    %c0_i32_0 = arith.constant 0 : i32
    return %arg0, %c0_i32 : i32, i32
  }
  func.func @transform_7(%arg0: i32) -> (i32, i32) {
    %c0_i32 = arith.constant 0 : i32
    %c0_i32_0 = arith.constant 0 : i32
    return %arg0, %c0_i32 : i32, i32
  }
  func.func @transform_8(%arg0: i32) -> (i32, i32) {
    %c0_i32 = arith.constant 0 : i32
    %c0_i32_0 = arith.constant 0 : i32
    return %arg0, %c0_i32 : i32, i32
  }
  func.func @transform_9(%arg0: i32) -> (i32, i32) {
    %c0_i32 = arith.constant 0 : i32
    %c0_i32_0 = arith.constant 0 : i32
    return %arg0, %c0_i32 : i32, i32
  }
  func.func @transform_10(%arg0: i32) -> (i32, i32) {
    %c0_i32 = arith.constant 0 : i32
    %c0_i32_0 = arith.constant 0 : i32
    return %arg0, %c0_i32 : i32, i32
  }
  func.func @transform_11(%arg0: i32) -> (i32, i32) {
    %c0_i32 = arith.constant 0 : i32
    %c0_i32_0 = arith.constant 0 : i32
    return %arg0, %c0_i32 : i32, i32
  }
}

</mosaic_0001>

<llo_original>
// kernel: tpu_custom_call.1
$region0: #{tpu_custom_call.1}
  #allocation0 [shape = 'u32[]', space=smem, size = 0x4, offset = 0x4, fixed_abs, tag = 'smem constant byte address 0x4 - core index']
  #allocation1 [shape = 'u32[72,128]{1,0:T(1,128)}', space=vmem, size = 0x9000, scoped, tag = 'internal scratch']
  %s0 = inlined_call_operand.hbm [shape: f32[2], index: 0, kind: input, shape index: {}]
  %s1 = inlined_call_operand.hbm [shape: f32[2], index: 1, kind: input, shape index: {}]
  %s2 = inlined_call_operand.hbm [shape: f32[256,128], index: 2, kind: input, shape index: {}]
  %s3 = inlined_call_operand.hbm [shape: f32[256,128], index: 3, kind: input, shape index: {}]
  %s4 = inlined_call_operand.hbm [shape: f32[256,256], index: 4, kind: input, shape index: {}]
  %s5 = inlined_call_operand.hbm [shape: bf16[128,768], index: 5, kind: input, shape index: {}]
  %s6 = inlined_call_operand.hbm [shape: f32[256,128], index: 6, kind: input, shape index: {}]
  %s7 = inlined_call_operand.hbm [shape: f32[256,128], index: 7, kind: input, shape index: {}]
  %s8 = inlined_call_operand.hbm [shape: f32[256,128], index: 8, kind: output, shape index: {0}]
  %s9 = inlined_call_operand.hbm [shape: bf16[256,256], index: 9, kind: output, shape index: {1}]
  %s10 = inlined_call_operand.hbm [shape: bf16[256,256], index: 10, kind: output, shape index: {2}]
  %s11 = inlined_call_operand.hbm [shape: bf16[256,256], index: 11, kind: output, shape index: {3}]
  %12 = xla_tuple %s8, %s9, %s10, %s11
  %s13 = sld [smem:[#allocation0]]
  $region121: #{tpu_custom_call.1} parent=0
    _
  %s15 = ssub.s32 1, %s13
  %s16 = scalar_select 0, %s15, %s13
  $region1: #{tpu_custom_call.1} parent=0
    #allocation2 [shape = 'u8[512]{0}', space=smem, size = 0x200, scoped, tag = 'input window, operand 0, single buffered']
    #allocation3 [shape = 's32[2]{0}', space=sflag, size = 0x8, scoped, tag = 'scoped memory for tpu_custom_call.1']
    #allocation4 [shape = 's32[2]{0}', space=sflag, size = 0x8, scoped, tag = 'scoped memory for tpu_custom_call.1']
    #allocation5 [shape = 's32[2]{0}', space=sflag, size = 0x8, scoped, tag = 'scoped memory for tpu_custom_call.1']
    #allocation6 [shape = 'u8[512]{0}', space=smem, size = 0x200, scoped, tag = 'input window, operand 1, single buffered']
    #allocation7 [shape = 's32[1]{0}', space=sflag, size = 0x4, scoped, tag = 'scoped memory for tpu_custom_call.1']
    #allocation8 [shape = 'u8[131072]{0}', space=vmem, size = 0x20000, scoped, tag = 'input window, operand 2']
    #allocation9 [shape = 'u8[131072]{0}', space=vmem, size = 0x20000, scoped, tag = 'input window, operand 3']
    #allocation10 [shape = 's32[2]{0}', space=sflag, size = 0x8, scoped, tag = 'scoped memory for tpu_custom_call.1']
    #allocation11 [shape = 'u8[262144]{0}', space=vmem, size = 0x40000, scoped, tag = 'input window, operand 4']
    #allocation12 [shape = 'u8[196608]{0}', space=vmem, size = 0x30000, scoped, tag = 'input window, operand 5, single buffered']
    #allocation13 [shape = 's32[1]{0}', space=sflag, size = 0x4, scoped, tag = 'scoped memory for tpu_custom_call.1']
    #allocation14 [shape = 'u8[131072]{0}', space=vmem, size = 0x20000, scoped, tag = 'input window, operand 6']
    #allocation15 [shape = 'u8[131072]{0}', space=vmem, size = 0x20000, scoped, tag = 'input window, operand 7']
    #allocation16 [shape = 'u8[131072]{0}', space=vmem, size = 0x20000, scoped, tag = 'output window, operand 0']
    #allocation17 [shape = 'u8[131072]{0}', space=vmem, size = 0x20000, scoped, tag = 'output window, operand 1']
    #allocation18 [shape = 's32[2]{0}', space=sflag, size = 0x8, scoped, tag = 'scoped memory for tpu_custom_call.1']
    #allocation19 [shape = 'u8[131072]{0}', space=vmem, size = 0x20000, scoped, tag = 'output window, operand 2']
    #allocation20 [shape = 'u8[131072]{0}', space=vmem, size = 0x20000, scoped, tag = 'output window, operand 3']
    #allocation21 [shape = 's32[2]{0}', space=sflag, size = 0x8, scoped, tag = 'scoped memory for tpu_custom_call.1']
    %17 = vsyncpa [#allocation5], 0
    %18 = vsyncpa [#allocation7], 0
    %19 = vsyncpa [#allocation3], 0
    %s20 = scalar_lea.sflag [#allocation3], 1
    %21 = vsyncpa %s20, 0
    %22 = vsyncpa [#allocation10], 0
    %s23 = scalar_lea.sflag [#allocation10], 1
    %24 = vsyncpa %s23, 0
    %25 = vsyncpa [#allocation13], 0
    %26 = vsyncpa [#allocation4], 0
    %s27 = scalar_lea.sflag [#allocation4], 1
    %28 = vsyncpa %s27, 0
    %29 = vsyncpa [#allocation18], 0
    %s30 = scalar_lea.sflag [#allocation18], 1
    %31 = vsyncpa %s30, 0
    %32 = vsyncpa [#allocation21], 0
    %s33 = scalar_lea.sflag [#allocation21], 1
    %34 = vsyncpa %s33, 0
    loop: start=0, step=1, limit=4
    $region2: #{tpu_custom_call.1} parent=1 // loop_pre_header
      _
    $region3: #{tpu_custom_call.1} parent=1 // loop_header
      %s36 = sphi 0, %s40
      %p37 = scmp.ge.s32.totalorder %s36, 4
      %s44 = sphi 0, %s44
      %s46 = sphi 0, %s44
      %s47 = sphi 0, %s46
      %s61 = sphi 0, %s47
      %s65 = sphi 0, %s65
      %s67 = sphi 0, %s65
      %s68 = sphi 0, %s67
      %s82 = sphi 0, %s68
      %s88 = sphi 0, %s90
      %s91 = sphi 0, %s88
      %s92 = sphi 0, %s91
      %s108 = sphi 0, %s92
      %s114 = sphi 0, %s116
      %s117 = sphi 0, %s114
      %s118 = sphi 0, %s117
      %s134 = sphi 0, %s118
      %s140 = sphi 0, %s142
      %s143 = sphi 0, %s140
      %s144 = sphi 0, %s143
      %s160 = sphi 0, %s144
      %s164 = sphi 0, %s164
      %s166 = sphi 0, %s164
      %s167 = sphi 0, %s166
      %s181 = sphi 0, %s167
      %s187 = sphi 0, %s189
      %s190 = sphi 0, %s187
      %s191 = sphi 0, %s190
      %s207 = sphi 0, %s191
      %s213 = sphi 0, %s215
      %s216 = sphi 0, %s213
      %s217 = sphi 0, %s216
      %s233 = sphi 0, %s217
      %s239 = sphi 0, %s241
      %s242 = sphi 0, %s239
      %s243 = sphi 0, %s242
      %s259 = sphi 0, %s243
      %s265 = sphi 0, %s267
      %s268 = sphi 0, %s265
      %s269 = sphi 0, %s268
      %s285 = sphi 0, %s269
      %s291 = sphi 0, %s293
      %s294 = sphi 0, %s291
      %s295 = sphi 0, %s294
      %s311 = sphi 0, %s295
      %s317 = sphi 0, %s319
      %s320 = sphi 0, %s317
      %s321 = sphi 0, %s320
      %s337 = sphi 0, %s321
    $region4: #{tpu_custom_call.1} parent=1 // loop_header_branch
      %39 = sbr.rel (%p37) target = $region8
    $region5: #{tpu_custom_call.1} parent=1 // loop_body
      %s41 = ssub.s32 %s36, 1
      %s42 = ssub.s32 %s36, 2
      %s43 = sadd.s32 %s36, 1
      %s45 = sadd.s32 %s44, 1
      %p48 = scmp.eq.s32.totalorder %s36, 1
      %p49 = scmp.ne.s32.totalorder %s44, %s46
      %p50 = scmp.eq.s32.totalorder %s36, 0
      %p51 = por %p49, %p50
      %p52 = scmp.ne.s32.totalorder %s44, %s46
      %p53 = scmp.eq.s32.totalorder %s41, 1
      %p54 = por %p52, %p53
      %p55 = scmp.ne.s32.totalorder %s46, %s47
      %p56 = scmp.eq.s32.totalorder %s41, 0
      %p57 = por %p55, %p56
      %p58 = scmp.ne.s32.totalorder %s46, %s47
      %p59 = scmp.eq.s32.totalorder %s42, 1
      %p60 = por %p58, %p59
      %p62 = scmp.ne.s32.totalorder %s47, %s61
      %p63 = scmp.eq.s32.totalorder %s42, 0
      %p64 = por %p62, %p63
      %s66 = sadd.s32 %s65, 1
      %p69 = scmp.eq.s32.totalorder %s36, 1
      %p70 = scmp.ne.s32.totalorder %s65, %s67
      %p71 = scmp.eq.s32.totalorder %s36, 0
      %p72 = por %p70, %p71
      %p73 = scmp.ne.s32.totalorder %s65, %s67
      %p74 = scmp.eq.s32.totalorder %s41, 1
      %p75 = por %p73, %p74
      %p76 = scmp.ne.s32.totalorder %s67, %s68
      %p77 = scmp.eq.s32.totalorder %s41, 0
      %p78 = por %p76, %p77
      %p79 = scmp.ne.s32.totalorder %s67, %s68
      %p80 = scmp.eq.s32.totalorder %s42, 1
      %p81 = por %p79, %p80
      %p83 = scmp.ne.s32.totalorder %s68, %s82
      %p84 = scmp.eq.s32.totalorder %s42, 0
      %p85 = por %p83, %p84
      %s86 = ssub.s32 %s36, %s43
      %p87 = scmp.eq.s32.totalorder %s86, 0
      %s89 = sadd.s32 %s88, 1
      %s90 = scalar_select %p87, %s88, %s89
      %p93 = pneg %p87
      %p94 = scmp.eq.s32.totalorder %s36, 1
      %p95 = por %p93, %p94
      %p96 = scmp.ne.s32.totalorder %s88, %s91
      %p97 = scmp.eq.s32.totalorder %s36, 0
      %p98 = por %p96, %p97
      %p99 = scmp.ne.s32.totalorder %s88, %s91
      %p100 = scmp.eq.s32.totalorder %s41, 1
      %p101 = por %p99, %p100
      %p102 = scmp.ne.s32.totalorder %s91, %s92
      %p103 = scmp.eq.s32.totalorder %s41, 0
      %p104 = por %p102, %p103
      %p105 = scmp.ne.s32.totalorder %s91, %s92
      %p106 = scmp.eq.s32.totalorder %s42, 1
      %p107 = por %p105, %p106
      %p109 = scmp.ne.s32.totalorder %s92, %s108
      %p110 = scmp.eq.s32.totalorder %s42, 0
      %p111 = por %p109, %p110
      %s112 = ssub.s32 %s36, %s43
      %p113 = scmp.eq.s32.totalorder %s112, 0
      %s115 = sadd.s32 %s114, 1
      %s116 = scalar_select %p113, %s114, %s115
      %p119 = pneg %p113
      %p120 = scmp.eq.s32.totalorder %s36, 1
      %p121 = por %p119, %p120
      %p122 = scmp.ne.s32.totalorder %s114, %s117
      %p123 = scmp.eq.s32.totalorder %s36, 0
      %p124 = por %p122, %p123
      %p125 = scmp.ne.s32.totalorder %s114, %s117
      %p126 = scmp.eq.s32.totalorder %s41, 1
      %p127 = por %p125, %p126
      %p128 = scmp.ne.s32.totalorder %s117, %s118
      %p129 = scmp.eq.s32.totalorder %s41, 0
      %p130 = por %p128, %p129
      %p131 = scmp.ne.s32.totalorder %s117, %s118
      %p132 = scmp.eq.s32.totalorder %s42, 1
      %p133 = por %p131, %p132
      %p135 = scmp.ne.s32.totalorder %s118, %s134
      %p136 = scmp.eq.s32.totalorder %s42, 0
      %p137 = por %p135, %p136
      %s138 = ssub.s32 %s36, %s43
      %p139 = scmp.eq.s32.totalorder %s138, 0
      %s141 = sadd.s32 %s140, 1
      %s142 = scalar_select %p139, %s140, %s141
      %p145 = pneg %p139
      %p146 = scmp.eq.s32.totalorder %s36, 1
      %p147 = por %p145, %p146
      %p148 = scmp.ne.s32.totalorder %s140, %s143
      %p149 = scmp.eq.s32.totalorder %s36, 0
      %p150 = por %p148, %p149
      %p151 = scmp.ne.s32.totalorder %s140, %s143
      %p152 = scmp.eq.s32.totalorder %s41, 1
      %p153 = por %p151, %p152
      %p154 = scmp.ne.s32.totalorder %s143, %s144
      %p155 = scmp.eq.s32.totalorder %s41, 0
      %p156 = por %p154, %p155
      %p157 = scmp.ne.s32.totalorder %s143, %s144
      %p158 = scmp.eq.s32.totalorder %s42, 1
      %p159 = por %p157, %p158
      %p161 = scmp.ne.s32.totalorder %s144, %s160
      %p162 = scmp.eq.s32.totalorder %s42, 0
      %p163 = por %p161, %p162
      %s165 = sadd.s32 %s164, 1
      %p168 = scmp.eq.s32.totalorder %s36, 1
      %p169 = scmp.ne.s32.totalorder %s164, %s166
      %p170 = scmp.eq.s32.totalorder %s36, 0
      %p171 = por %p169, %p170
      %p172 = scmp.ne.s32.totalorder %s164, %s166
      %p173 = scmp.eq.s32.totalorder %s41, 1
      %p174 = por %p172, %p173
      %p175 = scmp.ne.s32.totalorder %s166, %s167
      %p176 = scmp.eq.s32.totalorder %s41, 0
      %p177 = por %p175, %p176
      %p178 = scmp.ne.s32.totalorder %s166, %s167
      %p179 = scmp.eq.s32.totalorder %s42, 1
      %p180 = por %p178, %p179
      %p182 = scmp.ne.s32.totalorder %s167, %s181
      %p183 = scmp.eq.s32.totalorder %s42, 0
      %p184 = por %p182, %p183
      %s185 = ssub.s32 %s36, %s43
      %p186 = scmp.eq.s32.totalorder %s185, 0
      %s188 = sadd.s32 %s187, 1
      %s189 = scalar_select %p186, %s187, %s188
      %p192 = pneg %p186
      %p193 = scmp.eq.s32.totalorder %s36, 1
      %p194 = por %p192, %p193
      %p195 = scmp.ne.s32.totalorder %s187, %s190
      %p196 = scmp.eq.s32.totalorder %s36, 0
      %p197 = por %p195, %p196
      %p198 = scmp.ne.s32.totalorder %s187, %s190
      %p199 = scmp.eq.s32.totalorder %s41, 1
      %p200 = por %p198, %p199
      %p201 = scmp.ne.s32.totalorder %s190, %s191
      %p202 = scmp.eq.s32.totalorder %s41, 0
      %p203 = por %p201, %p202
      %p204 = scmp.ne.s32.totalorder %s190, %s191
      %p205 = scmp.eq.s32.totalorder %s42, 1
      %p206 = por %p204, %p205
      %p208 = scmp.ne.s32.totalorder %s191, %s207
      %p209 = scmp.eq.s32.totalorder %s42, 0
      %p210 = por %p208, %p209
      %s211 = ssub.s32 %s36, %s43
      %p212 = scmp.eq.s32.totalorder %s211, 0
      %s214 = sadd.s32 %s213, 1
      %s215 = scalar_select %p212, %s213, %s214
      %p218 = pneg %p212
      %p219 = scmp.eq.s32.totalorder %s36, 1
      %p220 = por %p218, %p219
      %p221 = scmp.ne.s32.totalorder %s213, %s216
      %p222 = scmp.eq.s32.totalorder %s36, 0
      %p223 = por %p221, %p222
      %p224 = scmp.ne.s32.totalorder %s213, %s216
      %p225 = scmp.eq.s32.totalorder %s41, 1
      %p226 = por %p224, %p225
      %p227 = scmp.ne.s32.totalorder %s216, %s217
      %p228 = scmp.eq.s32.totalorder %s41, 0
      %p229 = por %p227, %p228
      %p230 = scmp.ne.s32.totalorder %s216, %s217
      %p231 = scmp.eq.s32.totalorder %s42, 1
      %p232 = por %p230, %p231
      %p234 = scmp.ne.s32.totalorder %s217, %s233
      %p235 = scmp.eq.s32.totalorder %s42, 0
      %p236 = por %p234, %p235
      %s237 = ssub.s32 %s36, %s43
      %p238 = scmp.eq.s32.totalorder %s237, 0
      %s240 = sadd.s32 %s239, 1
      %s241 = scalar_select %p238, %s239, %s240
      %p244 = pneg %p238
      %p245 = scmp.eq.s32.totalorder %s36, 1
      %p246 = por %p244, %p245
      %p247 = scmp.ne.s32.totalorder %s239, %s242
      %p248 = scmp.eq.s32.totalorder %s36, 0
      %p249 = por %p247, %p248
      %p250 = scmp.ne.s32.totalorder %s239, %s242
      %p251 = scmp.eq.s32.totalorder %s41, 1
      %p252 = por %p250, %p251
      %p253 = scmp.ne.s32.totalorder %s242, %s243
      %p254 = scmp.eq.s32.totalorder %s41, 0
      %p255 = por %p253, %p254
      %p256 = scmp.ne.s32.totalorder %s242, %s243
      %p257 = scmp.eq.s32.totalorder %s42, 1
      %p258 = por %p256, %p257
      %p260 = scmp.ne.s32.totalorder %s243, %s259
      %p261 = scmp.eq.s32.totalorder %s42, 0
      %p262 = por %p260, %p261
      %s263 = ssub.s32 %s36, %s43
      %p264 = scmp.eq.s32.totalorder %s263, 0
      %s266 = sadd.s32 %s265, 1
      %s267 = scalar_select %p264, %s265, %s266
      %p270 = pneg %p264
      %p271 = scmp.eq.s32.totalorder %s36, 1
      %p272 = por %p270, %p271
      %p273 = scmp.ne.s32.totalorder %s265, %s268
      %p274 = scmp.eq.s32.totalorder %s36, 0
      %p275 = por %p273, %p274
      %p276 = scmp.ne.s32.totalorder %s265, %s268
      %p277 = scmp.eq.s32.totalorder %s41, 1
      %p278 = por %p276, %p277
      %p279 = scmp.ne.s32.totalorder %s268, %s269
      %p280 = scmp.eq.s32.totalorder %s41, 0
      %p281 = por %p279, %p280
      %p282 = scmp.ne.s32.totalorder %s268, %s269
      %p283 = scmp.eq.s32.totalorder %s42, 1
      %p284 = por %p282, %p283
      %p286 = scmp.ne.s32.totalorder %s269, %s285
      %p287 = scmp.eq.s32.totalorder %s42, 0
      %p288 = por %p286, %p287
      %s289 = ssub.s32 %s36, %s43
      %p290 = scmp.eq.s32.totalorder %s289, 0
      %s292 = sadd.s32 %s291, 1
      %s293 = scalar_select %p290, %s291, %s292
      %p296 = pneg %p290
      %p297 = scmp.eq.s32.totalorder %s36, 1
      %p298 = por %p296, %p297
      %p299 = scmp.ne.s32.totalorder %s291, %s294
      %p300 = scmp.eq.s32.totalorder %s36, 0
      %p301 = por %p299, %p300
      %p302 = scmp.ne.s32.totalorder %s291, %s294
      %p303 = scmp.eq.s32.totalorder %s41, 1
      %p304 = por %p302, %p303
      %p305 = scmp.ne.s32.totalorder %s294, %s295
      %p306 = scmp.eq.s32.totalorder %s41, 0
      %p307 = por %p305, %p306
      %p308 = scmp.ne.s32.totalorder %s294, %s295
      %p309 = scmp.eq.s32.totalorder %s42, 1
      %p310 = por %p308, %p309
      %p312 = scmp.ne.s32.totalorder %s295, %s311
      %p313 = scmp.eq.s32.totalorder %s42, 0
      %p314 = por %p312, %p313
      %s315 = ssub.s32 %s36, %s43
      %p316 = scmp.eq.s32.totalorder %s315, 0
      %s318 = sadd.s32 %s317, 1
      %s319 = scalar_select %p316, %s317, %s318
      %p322 = pneg %p316
      %p323 = scmp.eq.s32.totalorder %s36, 1
      %p324 = por %p322, %p323
      %p325 = scmp.ne.s32.totalorder %s317, %s320
      %p326 = scmp.eq.s32.totalorder %s36, 0
      %p327 = por %p325, %p326
      %p328 = scmp.ne.s32.totalorder %s317, %s320
      %p329 = scmp.eq.s32.totalorder %s41, 1
      %p330 = por %p328, %p329
      %p331 = scmp.ne.s32.totalorder %s320, %s321
      %p332 = scmp.eq.s32.totalorder %s41, 0
      %p333 = por %p331, %p332
      %p334 = scmp.ne.s32.totalorder %s320, %s321
      %p335 = scmp.eq.s32.totalorder %s42, 1
      %p336 = por %p334, %p335
      %p338 = scmp.ne.s32.totalorder %s321, %s337
      %p339 = scmp.eq.s32.totalorder %s42, 0
      %p340 = por %p338, %p339
      %p341 = scmp.le.s32.totalorder 1, %s36
      %p342 = scmp.lt.s32.totalorder %s36, 3
      %p343 = pnand %p341, %p342
      %p344 = pneg %p343
      // Predicated region
      $region9: #{tpu_custom_call.1} parent=5 // pred_check
        _
      $region10: #{tpu_custom_call.1} parent=5 // pred_check_branch
        %346 = sbr.rel (%p343) target = $region12
      $region11: #{tpu_custom_call.1} parent=5 // pred_region
        %s347 = ssub.s32 %s36, 1
        // Predicated region
        $region13: #{tpu_custom_call.1} parent=11 // pred_check
          %p348 = pneg %p57
        $region14: #{tpu_custom_call.1} parent=11 // pred_check_branch
          %350 = sbr.rel (%p348) target = $region16
        $region15: #{tpu_custom_call.1} parent=11 // pred_region
          %352 = vsyncadd [#allocation5], 0
          %s354 = sshll.u32 %s0, 4
          %s355 = int_to_ptr.hbm [resolvable:$true] %s354
          %357 = dma.hbm_to_smem %s355, 16, [#allocation2], [#allocation5]
        $region16: #{tpu_custom_call.1} parent=11 // pred_fallthru
          _
        // Predicated region
        $region17: #{tpu_custom_call.1} parent=11 // pred_check
          %p358 = pneg %p78
        $region18: #{tpu_custom_call.1} parent=11 // pred_check_branch
          %360 = sbr.rel (%p358) target = $region20
        $region19: #{tpu_custom_call.1} parent=11 // pred_region
          %362 = vsyncadd [#allocation7], 0
          %s364 = sshll.u32 %s1, 4
          %s365 = int_to_ptr.hbm [resolvable:$true] %s364
          %367 = dma.hbm_to_smem %s365, 16, [#allocation6], [#allocation7]
        $region20: #{tpu_custom_call.1} parent=11 // pred_fallthru
          _
        // Predicated region
        $region21: #{tpu_custom_call.1} parent=11 // pred_check
          %p368 = pneg %p177
        $region22: #{tpu_custom_call.1} parent=11 // pred_check_branch
          %370 = sbr.rel (%p368) target = $region24
        $region23: #{tpu_custom_call.1} parent=11 // pred_region
          %372 = vsyncadd [#allocation13], 0
          %s373 = sshll.u32 %s5, 4
          %s374 = int_to_ptr.hbm [resolvable:$true] %s373
          %s375 = sshll.u32 [#allocation12], 4
          %s376 = int_to_ptr.vmem [resolvable:$true] %s375
          %381 = dma.hbm_to_vmem [thread:$0]  %s374, 6144, %s376, [#allocation13], 384, 384, 24
        $region24: #{tpu_custom_call.1} parent=11 // pred_fallthru
          _
      $region12: #{tpu_custom_call.1} parent=5 // pred_fallthru
        _
      %p382 = scmp.lt.s32.totalorder %s36, 2
      // Predicated region
      $region25: #{tpu_custom_call.1} parent=5 // pred_check
        %p383 = pneg %p382
      $region26: #{tpu_custom_call.1} parent=5 // pred_check_branch
        %385 = sbr.rel (%p383) target = $region28
      $region27: #{tpu_custom_call.1} parent=5 // pred_region
        // Predicated region
        $region29: #{tpu_custom_call.1} parent=27 // pred_check
          %p386 = pneg %p98
        $region30: #{tpu_custom_call.1} parent=27 // pred_check_branch
          %388 = sbr.rel (%p386) target = $region32
        $region31: #{tpu_custom_call.1} parent=27 // pred_region
          %s389 = sand.u32 %s36, 1
          %s390 = scalar_lea.sflag [#allocation3], %s389
          %s391 = sand.u32 %s88, 1
          %s392 = smul.addr %s391, 128
          %s393 = scalar_lea.vmem [#allocation8], %s392
          %s394 = smul.u32 16, %s36
          %396 = vsyncadd %s390, 0
          %s397 = smul.addr %s394, 8
          %s398 = scalar_lea.hbm %s2, %s397
          %s399 = sshll.u32 %s398, 4
          %s400 = int_to_ptr.hbm [resolvable:$true] %s399
          %s401 = sshll.u32 %s393, 4
          %s402 = int_to_ptr.vmem [resolvable:$true] %s401
          %407 = dma.hbm_to_vmem [thread:$0]  %s400, 2048, %s402, %s390, 128, 128, 8
        $region32: #{tpu_custom_call.1} parent=27 // pred_fallthru
          _
        // Predicated region
        $region33: #{tpu_custom_call.1} parent=27 // pred_check
          %p408 = pneg %p124
        $region34: #{tpu_custom_call.1} parent=27 // pred_check_branch
          %410 = sbr.rel (%p408) target = $region36
        $region35: #{tpu_custom_call.1} parent=27 // pred_region
          %s411 = sand.u32 %s36, 1
          %s412 = scalar_lea.sflag [#allocation10], %s411
          %s413 = sand.u32 %s114, 1
          %s414 = smul.addr %s413, 128
          %s415 = scalar_lea.vmem [#allocation9], %s414
          %s416 = smul.u32 16, %s36
          %418 = vsyncadd %s412, 0
          %s419 = smul.addr %s416, 8
          %s420 = scalar_lea.hbm %s3, %s419
          %s421 = sshll.u32 %s420, 4
          %s422 = int_to_ptr.hbm [resolvable:$true] %s421
          %s423 = sshll.u32 %s415, 4
          %s424 = int_to_ptr.vmem [resolvable:$true] %s423
          %429 = dma.hbm_to_vmem [thread:$0]  %s422, 2048, %s424, %s412, 128, 128, 8
        $region36: #{tpu_custom_call.1} parent=27 // pred_fallthru
          _
        // Predicated region
        $region37: #{tpu_custom_call.1} parent=27 // pred_check
          %p430 = pneg %p150
        $region38: #{tpu_custom_call.1} parent=27 // pred_check_branch
          %432 = sbr.rel (%p430) target = $region40
        $region39: #{tpu_custom_call.1} parent=27 // pred_region
          %s433 = sand.u32 %s36, 1
          %s434 = scalar_lea.sflag [#allocation10], %s433
          %s435 = sand.u32 %s140, 1
          %s436 = smul.addr %s435, 256
          %s437 = scalar_lea.vmem [#allocation11], %s436
          %s438 = smul.u32 16, %s36
          %440 = vsyncadd %s434, 0
          %s441 = smul.addr %s438, 2
          %s442 = smul.addr %s441, 8
          %s443 = scalar_lea.hbm %s4, %s442
          %s444 = sshll.u32 %s443, 4
          %s445 = int_to_ptr.hbm [resolvable:$true] %s444
          %s446 = sshll.u32 %s437, 4
          %s447 = int_to_ptr.vmem [resolvable:$true] %s446
          %452 = dma.hbm_to_vmem [thread:$0]  %s445, 4096, %s447, %s434, 256, 256, 16
        $region40: #{tpu_custom_call.1} parent=27 // pred_fallthru
          _
        // Predicated region
        $region41: #{tpu_custom_call.1} parent=27 // pred_check
          %p453 = pneg %p197
        $region42: #{tpu_custom_call.1} parent=27 // pred_check_branch
          %455 = sbr.rel (%p453) target = $region44
        $region43: #{tpu_custom_call.1} parent=27 // pred_region
          %s456 = sand.u32 %s36, 1
          %s457 = scalar_lea.sflag [#allocation3], %s456
          %s458 = sand.u32 %s187, 1
          %s459 = smul.addr %s458, 128
          %s460 = scalar_lea.vmem [#allocation14], %s459
          %s461 = smul.u32 16, %s36
          %463 = vsyncadd %s457, 0
          %s464 = smul.addr %s461, 8
          %s465 = scalar_lea.hbm %s6, %s464
          %s466 = sshll.u32 %s465, 4
          %s467 = int_to_ptr.hbm [resolvable:$true] %s466
          %s468 = sshll.u32 %s460, 4
          %s469 = int_to_ptr.vmem [resolvable:$true] %s468
          %474 = dma.hbm_to_vmem [thread:$0]  %s467, 2048, %s469, %s457, 128, 128, 8
        $region44: #{tpu_custom_call.1} parent=27 // pred_fallthru
          _
        // Predicated region
        $region45: #{tpu_custom_call.1} parent=27 // pred_check
          %p475 = pneg %p223
        $region46: #{tpu_custom_call.1} parent=27 // pred_check_branch
          %477 = sbr.rel (%p475) target = $region48
        $region47: #{tpu_custom_call.1} parent=27 // pred_region
          %s478 = sand.u32 %s36, 1
          %s479 = scalar_lea.sflag [#allocation10], %s478
          %s480 = sand.u32 %s213, 1
          %s481 = smul.addr %s480, 128
          %s482 = scalar_lea.vmem [#allocation15], %s481
          %s483 = smul.u32 16, %s36
          %485 = vsyncadd %s479, 0
          %s486 = smul.addr %s483, 8
          %s487 = scalar_lea.hbm %s7, %s486
          %s488 = sshll.u32 %s487, 4
          %s489 = int_to_ptr.hbm [resolvable:$true] %s488
          %s490 = sshll.u32 %s482, 4
          %s491 = int_to_ptr.vmem [resolvable:$true] %s490
          %496 = dma.hbm_to_vmem [thread:$0]  %s489, 2048, %s491, %s479, 128, 128, 8
        $region48: #{tpu_custom_call.1} parent=27 // pred_fallthru
          _
      $region28: #{tpu_custom_call.1} parent=5 // pred_fallthru
        _
      %p497 = scmp.le.s32.totalorder 1, %s36
      %p498 = scmp.lt.s32.totalorder %s36, 3
      %p499 = pnand %p497, %p498
      %p500 = pneg %p499
      // Predicated region
      $region49: #{tpu_custom_call.1} parent=5 // pred_check
        _
      $region50: #{tpu_custom_call.1} parent=5 // pred_check_branch
        %502 = sbr.rel (%p499) target = $region52
      $region51: #{tpu_custom_call.1} parent=5 // pred_region
        %s503 = ssub.s32 %s36, 1
        // Predicated region
        $region53: #{tpu_custom_call.1} parent=51 // pred_check
          %p504 = pneg %p57
        $region54: #{tpu_custom_call.1} parent=51 // pred_check_branch
          %506 = sbr.rel (%p504) target = $region56
        $region55: #{tpu_custom_call.1} parent=51 // pred_region
          %508 = dma.done [#allocation5], 16
        $region56: #{tpu_custom_call.1} parent=51 // pred_fallthru
          _
        // Predicated region
        $region57: #{tpu_custom_call.1} parent=51 // pred_check
          %p509 = pneg %p78
        $region58: #{tpu_custom_call.1} parent=51 // pred_check_branch
          %511 = sbr.rel (%p509) target = $region60
        $region59: #{tpu_custom_call.1} parent=51 // pred_region
          %513 = dma.done [#allocation7], 16
        $region60: #{tpu_custom_call.1} parent=51 // pred_fallthru
          _
        %s514 = sand.u32 %s41, 1
        %s515 = scalar_lea.sflag [#allocation3], %s514
        %s516 = sand.u32 %s91, 1
        %s517 = smul.addr %s516, 128
        %s518 = scalar_lea.vmem [#allocation8], %s517
        // Predicated region
        $region61: #{tpu_custom_call.1} parent=51 // pred_check
          %p519 = pneg %p104
        $region62: #{tpu_custom_call.1} parent=51 // pred_check_branch
          %521 = sbr.rel (%p519) target = $region64
        $region63: #{tpu_custom_call.1} parent=51 // pred_region
          %523 = dma.done %s515, 2048
        $region64: #{tpu_custom_call.1} parent=51 // pred_fallthru
          _
        %s524 = sand.u32 %s41, 1
        %s525 = scalar_lea.sflag [#allocation10], %s524
        %s526 = sand.u32 %s117, 1
        %s527 = smul.addr %s526, 128
        %s528 = scalar_lea.vmem [#allocation9], %s527
        // Predicated region
        $region65: #{tpu_custom_call.1} parent=51 // pred_check
          %p529 = pneg %p130
        $region66: #{tpu_custom_call.1} parent=51 // pred_check_branch
          %531 = sbr.rel (%p529) target = $region68
        $region67: #{tpu_custom_call.1} parent=51 // pred_region
          %533 = dma.done %s525, 2048
        $region68: #{tpu_custom_call.1} parent=51 // pred_fallthru
          _
        %s534 = sand.u32 %s41, 1
        %s535 = scalar_lea.sflag [#allocation10], %s534
        %s536 = sand.u32 %s143, 1
        %s537 = smul.addr %s536, 256
        %s538 = scalar_lea.vmem [#allocation11], %s537
        // Predicated region
        $region69: #{tpu_custom_call.1} parent=51 // pred_check
          %p539 = pneg %p156
        $region70: #{tpu_custom_call.1} parent=51 // pred_check_branch
          %541 = sbr.rel (%p539) target = $region72
        $region71: #{tpu_custom_call.1} parent=51 // pred_region
          %543 = dma.done %s535, 4096
        $region72: #{tpu_custom_call.1} parent=51 // pred_fallthru
          _
        // Predicated region
        $region73: #{tpu_custom_call.1} parent=51 // pred_check
          %p544 = pneg %p177
        $region74: #{tpu_custom_call.1} parent=51 // pred_check_branch
          %546 = sbr.rel (%p544) target = $region76
        $region75: #{tpu_custom_call.1} parent=51 // pred_region
          %548 = dma.done [#allocation13], 6144
        $region76: #{tpu_custom_call.1} parent=51 // pred_fallthru
          _
        %s549 = sand.u32 %s41, 1
        %s550 = scalar_lea.sflag [#allocation3], %s549
        %s551 = sand.u32 %s190, 1
        %s552 = smul.addr %s551, 128
        %s553 = scalar_lea.vmem [#allocation14], %s552
        // Predicated region
        $region77: #{tpu_custom_call.1} parent=51 // pred_check
          %p554 = pneg %p203
        $region78: #{tpu_custom_call.1} parent=51 // pred_check_branch
          %556 = sbr.rel (%p554) target = $region80
        $region79: #{tpu_custom_call.1} parent=51 // pred_region
          %558 = dma.done %s550, 2048
        $region80: #{tpu_custom_call.1} parent=51 // pred_fallthru
          _
        %s559 = sand.u32 %s41, 1
        %s560 = scalar_lea.sflag [#allocation10], %s559
        %s561 = sand.u32 %s216, 1
        %s562 = smul.addr %s561, 128
        %s563 = scalar_lea.vmem [#allocation15], %s562
        // Predicated region
        $region81: #{tpu_custom_call.1} parent=51 // pred_check
          %p564 = pneg %p229
        $region82: #{tpu_custom_call.1} parent=51 // pred_check_branch
          %566 = sbr.rel (%p564) target = $region84
        $region83: #{tpu_custom_call.1} parent=51 // pred_region
          %568 = dma.done %s560, 2048
        $region84: #{tpu_custom_call.1} parent=51 // pred_fallthru
          _
        %569 = sfence
        %p570 = pneg %p57
        %p571 = pneg %p54
        %p572 = pneg %p78
        %p573 = pneg %p75
        %s574 = sand.u32 %s41, 1
        %s575 = scalar_lea.sflag [#allocation3], %s574
        %s576 = sand.u32 %s91, 1
        %s577 = smul.addr %s576, 128
        %s578 = scalar_lea.vmem [#allocation8], %s577
        %p579 = pneg %p104
        %p580 = pneg %p101
        %s581 = sand.u32 %s41, 1
        %s582 = scalar_lea.sflag [#allocation10], %s581
        %s583 = sand.u32 %s117, 1
        %s584 = smul.addr %s583, 128
        %s585 = scalar_lea.vmem [#allocation9], %s584
        %p586 = pneg %p130
        %p587 = pneg %p127
        %s588 = sand.u32 %s41, 1
        %s589 = scalar_lea.sflag [#allocation10], %s588
        %s590 = sand.u32 %s143, 1
        %s591 = smul.addr %s590, 256
        %s592 = scalar_lea.vmem [#allocation11], %s591
        %p593 = pneg %p156
        %p594 = pneg %p153
        %p595 = pneg %p177
        %p596 = pneg %p174
        %s597 = sand.u32 %s41, 1
        %s598 = scalar_lea.sflag [#allocation3], %s597
        %s599 = sand.u32 %s190, 1
        %s600 = smul.addr %s599, 128
        %s601 = scalar_lea.vmem [#allocation14], %s600
        %p602 = pneg %p203
        %p603 = pneg %p200
        %s604 = sand.u32 %s41, 1
        %s605 = scalar_lea.sflag [#allocation10], %s604
        %s606 = sand.u32 %s216, 1
        %s607 = smul.addr %s606, 128
        %s608 = scalar_lea.vmem [#allocation15], %s607
        %p609 = pneg %p229
        %p610 = pneg %p226
        %p611 = pneg %p255
        %p612 = pneg %p252
        %s613 = sand.u32 %s242, 1
        %s614 = scalar_lea.sflag [#allocation4], %s613
        %s615 = sand.u32 %s242, 1
        %s616 = smul.addr %s615, 128
        %s617 = scalar_lea.vmem [#allocation16], %s616
        %p618 = pneg %p281
        %p619 = pneg %p278
        %s620 = sand.u32 %s41, 1
        %s621 = scalar_lea.sflag [#allocation18], %s620
        %s622 = sand.u32 %s268, 1
        %s623 = smul.addr %s622, 128
        %s624 = scalar_lea.vmem [#allocation17], %s623
        %p625 = pneg %p307
        %p626 = pneg %p304
        %s627 = sand.u32 %s41, 1
        %s628 = scalar_lea.sflag [#allocation18], %s627
        %s629 = sand.u32 %s294, 1
        %s630 = smul.addr %s629, 128
        %s631 = scalar_lea.vmem [#allocation19], %s630
        %p632 = pneg %p333
        %p633 = pneg %p330
        %s634 = sand.u32 %s320, 1
        %s635 = scalar_lea.sflag [#allocation21], %s634
        %s636 = sand.u32 %s320, 1
        %s637 = smul.addr %s636, 128
        %s638 = scalar_lea.vmem [#allocation20], %s637
        %s639 = smul.u32 16, %s41
        %s640 = smul.u32 16, %s41
        %s641 = smul.u32 16, %s41
        %s642 = smul.u32 16, %s41
        %s643 = smul.u32 16, %s41
        %s644 = smul.u32 16, %s41
        %s645 = smul.u32 16, %s41
        %s646 = smul.u32 16, %s41
        %s647 = smul.u32 16, %s41
        %s648 = sld [smem:[#allocation2]]
        %v649 = vld [vmem:[%s518] sm:$0xff]
        %v650 = vld [vmem:[%s518 + $0x8] sm:$0xff]
        %v651 = vld [vmem:[%s518 + $0x10] sm:$0xff]
        %v652 = vld [vmem:[%s518 + $0x18] sm:$0xff]
        %v653 = vld [vmem:[%s518 + $0x20] sm:$0xff]
        %v654 = vld [vmem:[%s518 + $0x28] sm:$0xff]
        %v655 = vld [vmem:[%s518 + $0x30] sm:$0xff]
        %v656 = vld [vmem:[%s518 + $0x38] sm:$0xff]
        %v657 = vld [vmem:[%s518 + $0x40] sm:$0xff]
        %v658 = vld [vmem:[%s518 + $0x48] sm:$0xff]
        %v659 = vld [vmem:[%s518 + $0x50] sm:$0xff]
        %v660 = vld [vmem:[%s518 + $0x58] sm:$0xff]
        %v661 = vld [vmem:[%s518 + $0x60] sm:$0xff]
        %v662 = vld [vmem:[%s518 + $0x68] sm:$0xff]
        %v663 = vld [vmem:[%s518 + $0x70] sm:$0xff]
        %v664 = vld [vmem:[%s518 + $0x78] sm:$0xff]
        %v665 = vstv %s648
        %v666 = vmul.f32 %v665, %v649
        %v667 = vmul.f32 %v665, %v650
        %v668 = vmul.f32 %v665, %v651
        %v669 = vmul.f32 %v665, %v652
        %v670 = vmul.f32 %v665, %v653
        %v671 = vmul.f32 %v665, %v654
        %v672 = vmul.f32 %v665, %v655
        %v673 = vmul.f32 %v665, %v656
        %v674 = vmul.f32 %v665, %v657
        %v675 = vmul.f32 %v665, %v658
        %v676 = vmul.f32 %v665, %v659
        %v677 = vmul.f32 %v665, %v660
        %v678 = vmul.f32 %v665, %v661
        %v679 = vmul.f32 %v665, %v662
        %v680 = vmul.f32 %v665, %v663
        %v681 = vmul.f32 %v665, %v664
        %s682 = sld [smem:[#allocation2 + $0x1]]
        %v683 = vld [vmem:[%s528] sm:$0xff]
        %v684 = vld [vmem:[%s528 + $0x8] sm:$0xff]
        %v685 = vld [vmem:[%s528 + $0x10] sm:$0xff]
        %v686 = vld [vmem:[%s528 + $0x18] sm:$0xff]
        %v687 = vld [vmem:[%s528 + $0x20] sm:$0xff]
        %v688 = vld [vmem:[%s528 + $0x28] sm:$0xff]
        %v689 = vld [vmem:[%s528 + $0x30] sm:$0xff]
        %v690 = vld [vmem:[%s528 + $0x38] sm:$0xff]
        %v691 = vld [vmem:[%s528 + $0x40] sm:$0xff]
        %v692 = vld [vmem:[%s528 + $0x48] sm:$0xff]
        %v693 = vld [vmem:[%s528 + $0x50] sm:$0xff]
        %v694 = vld [vmem:[%s528 + $0x58] sm:$0xff]
        %v695 = vld [vmem:[%s528 + $0x60] sm:$0xff]
        %v696 = vld [vmem:[%s528 + $0x68] sm:$0xff]
        %v697 = vld [vmem:[%s528 + $0x70] sm:$0xff]
        %v698 = vld [vmem:[%s528 + $0x78] sm:$0xff]
        %v699 = vstv %s682
        %v700 = vmul.f32 %v699, %v683
        %v701 = vmul.f32 %v699, %v684
        %v702 = vmul.f32 %v699, %v685
        %v703 = vmul.f32 %v699, %v686
        %v704 = vmul.f32 %v699, %v687
        %v705 = vmul.f32 %v699, %v688
        %v706 = vmul.f32 %v699, %v689
        %v707 = vmul.f32 %v699, %v690
        %v708 = vmul.f32 %v699, %v691
        %v709 = vmul.f32 %v699, %v692
        %v710 = vmul.f32 %v699, %v693
        %v711 = vmul.f32 %v699, %v694
        %v712 = vmul.f32 %v699, %v695
        %v713 = vmul.f32 %v699, %v696
        %v714 = vmul.f32 %v699, %v697
        %v715 = vmul.f32 %v699, %v698
        %v716 = vadd.f32 %v666, %v700
        %v717 = vadd.f32 %v667, %v701
        %v718 = vadd.f32 %v668, %v702
        %v719 = vadd.f32 %v669, %v703
        %v720 = vadd.f32 %v670, %v704
        %v721 = vadd.f32 %v671, %v705
        %v722 = vadd.f32 %v672, %v706
        %v723 = vadd.f32 %v673, %v707
        %v724 = vadd.f32 %v674, %v708
        %v725 = vadd.f32 %v675, %v709
        %v726 = vadd.f32 %v676, %v710
        %v727 = vadd.f32 %v677, %v711
        %v728 = vadd.f32 %v678, %v712
        %v729 = vadd.f32 %v679, %v713
        %v730 = vadd.f32 %v680, %v714
        %v731 = vadd.f32 %v681, %v715
        %732 = vst [vmem:[%s617] sm:$0xff] %v716
        %733 = vst [vmem:[%s617 + $0x8] sm:$0xff] %v717
        %734 = vst [vmem:[%s617 + $0x10] sm:$0xff] %v718
        %735 = vst [vmem:[%s617 + $0x18] sm:$0xff] %v719
        %736 = vst [vmem:[%s617 + $0x20] sm:$0xff] %v720
        %737 = vst [vmem:[%s617 + $0x28] sm:$0xff] %v721
        %738 = vst [vmem:[%s617 + $0x30] sm:$0xff] %v722
        %739 = vst [vmem:[%s617 + $0x38] sm:$0xff] %v723
        %740 = vst [vmem:[%s617 + $0x40] sm:$0xff] %v724
        %741 = vst [vmem:[%s617 + $0x48] sm:$0xff] %v725
        %742 = vst [vmem:[%s617 + $0x50] sm:$0xff] %v726
        %743 = vst [vmem:[%s617 + $0x58] sm:$0xff] %v727
        %744 = vst [vmem:[%s617 + $0x60] sm:$0xff] %v728
        %745 = vst [vmem:[%s617 + $0x68] sm:$0xff] %v729
        %746 = vst [vmem:[%s617 + $0x70] sm:$0xff] %v730
        %747 = vst [vmem:[%s617 + $0x78] sm:$0xff] %v731
        %v748 = vmul.f32 %v716, %v716
        %v749 = vmul.f32 %v717, %v717
        %v750 = vmul.f32 %v718, %v718
        %v751 = vmul.f32 %v719, %v719
        %v752 = vmul.f32 %v720, %v720
        %v753 = vmul.f32 %v721, %v721
        %v754 = vmul.f32 %v722, %v722
        %v755 = vmul.f32 %v723, %v723
        %v756 = vmul.f32 %v724, %v724
        %v757 = vmul.f32 %v725, %v725
        %v758 = vmul.f32 %v726, %v726
        %v759 = vmul.f32 %v727, %v727
        %v760 = vmul.f32 %v728, %v728
        %v761 = vmul.f32 %v729, %v729
        %v762 = vmul.f32 %v730, %v730
        %v763 = vmul.f32 %v731, %v731
        %764 = vadd.xlane.f32.xlu0 %v748
        %v765 = vpop.xlane.xlu0 %764
        %766 = vadd.xlane.f32.xlu0 %v749
        %v767 = vpop.xlane.xlu0 %766
        %768 = vadd.xlane.f32.xlu0 %v750
        %v769 = vpop.xlane.xlu0 %768
        %770 = vadd.xlane.f32.xlu0 %v751
        %v771 = vpop.xlane.xlu0 %770
        %772 = vadd.xlane.f32.xlu0 %v752
        %v773 = vpop.xlane.xlu0 %772
        %774 = vadd.xlane.f32.xlu0 %v753
        %v775 = vpop.xlane.xlu0 %774
        %776 = vadd.xlane.f32.xlu0 %v754
        %v777 = vpop.xlane.xlu0 %776
        %778 = vadd.xlane.f32.xlu0 %v755
        %v779 = vpop.xlane.xlu0 %778
        %780 = vadd.xlane.f32.xlu0 %v756
        %v781 = vpop.xlane.xlu0 %780
        %782 = vadd.xlane.f32.xlu0 %v757
        %v783 = vpop.xlane.xlu0 %782
        %784 = vadd.xlane.f32.xlu0 %v758
        %v785 = vpop.xlane.xlu0 %784
        %786 = vadd.xlane.f32.xlu0 %v759
        %v787 = vpop.xlane.xlu0 %786
        %788 = vadd.xlane.f32.xlu0 %v760
        %v789 = vpop.xlane.xlu0 %788
        %790 = vadd.xlane.f32.xlu0 %v761
        %v791 = vpop.xlane.xlu0 %790
        %792 = vadd.xlane.f32.xlu0 %v762
        %v793 = vpop.xlane.xlu0 %792
        %794 = vadd.xlane.f32.xlu0 %v763
        %v795 = vpop.xlane.xlu0 %794
        %v796 = vrcp.pop 128.0
        %v797 = vmul.f32 128.0, %v796
        %v798 = vsub.f32 1.0, %v797
        %v799 = vmul.f32 %v796, %v798
        %v800 = vadd.f32 %v796, %v799
        %vm801 = vweird.f32 %v796
        %v802 = vsel %vm801, %v796, %v800
        %v803 = vmul.f32 %v765, %v802
        %v804 = vmul.f32 %v767, %v802
        %v805 = vmul.f32 %v769, %v802
        %v806 = vmul.f32 %v771, %v802
        %v807 = vmul.f32 %v773, %v802
        %v808 = vmul.f32 %v775, %v802
        %v809 = vmul.f32 %v777, %v802
        %v810 = vmul.f32 %v779, %v802
        %v811 = vmul.f32 %v781, %v802
        %v812 = vmul.f32 %v783, %v802
        %v813 = vmul.f32 %v785, %v802
        %v814 = vmul.f32 %v787, %v802
        %v815 = vmul.f32 %v789, %v802
        %v816 = vmul.f32 %v791, %v802
        %v817 = vmul.f32 %v793, %v802
        %v818 = vmul.f32 %v795, %v802
        %v819 = vadd.f32 %v803, 1.1920929e-07
        %v820 = vadd.f32 %v804, 1.1920929e-07
        %v821 = vadd.f32 %v805, 1.1920929e-07
        %v822 = vadd.f32 %v806, 1.1920929e-07
        %v823 = vadd.f32 %v807, 1.1920929e-07
        %v824 = vadd.f32 %v808, 1.1920929e-07
        %v825 = vadd.f32 %v809, 1.1920929e-07
        %v826 = vadd.f32 %v810, 1.1920929e-07
        %v827 = vadd.f32 %v811, 1.1920929e-07
        %v828 = vadd.f32 %v812, 1.1920929e-07
        %v829 = vadd.f32 %v813, 1.1920929e-07
        %v830 = vadd.f32 %v814, 1.1920929e-07
        %v831 = vadd.f32 %v815, 1.1920929e-07
        %v832 = vadd.f32 %v816, 1.1920929e-07
        %v833 = vadd.f32 %v817, 1.1920929e-07
        %v834 = vadd.f32 %v818, 1.1920929e-07
        %v835 = vrsqrt.pop %v819
        %v836 = vmul.f32 %v835, %v819
        %v837 = vmul.f32 %v836, %v835
        %v838 = vmul.f32 0.5, %v837
        %v839 = vsub.f32 1.5, %v838
        %v840 = vmul.f32 %v835, %v839
        %vm841 = vweird.f32 %v819
        %vm842 = vweird.f32 %v835
        %vm843 = vmor %vm841, %vm842
        %v844 = vsel %vm843, %v835, %v840
        %v845 = vrsqrt.pop %v820
        %v846 = vmul.f32 %v845, %v820
        %v847 = vmul.f32 %v846, %v845
        %v848 = vmul.f32 0.5, %v847
        %v849 = vsub.f32 1.5, %v848
        %v850 = vmul.f32 %v845, %v849
        %vm851 = vweird.f32 %v820
        %vm852 = vweird.f32 %v845
        %vm853 = vmor %vm851, %vm852
        %v854 = vsel %vm853, %v845, %v850
        %v855 = vrsqrt.pop %v821
        %v856 = vmul.f32 %v855, %v821
        %v857 = vmul.f32 %v856, %v855
        %v858 = vmul.f32 0.5, %v857
        %v859 = vsub.f32 1.5, %v858
        %v860 = vmul.f32 %v855, %v859
        %vm861 = vweird.f32 %v821
        %vm862 = vweird.f32 %v855
        %vm863 = vmor %vm861, %vm862
        %v864 = vsel %vm863, %v855, %v860
        %v865 = vrsqrt.pop %v822
        %v866 = vmul.f32 %v865, %v822
        %v867 = vmul.f32 %v866, %v865
        %v868 = vmul.f32 0.5, %v867
        %v869 = vsub.f32 1.5, %v868
        %v870 = vmul.f32 %v865, %v869
        %vm871 = vweird.f32 %v822
        %vm872 = vweird.f32 %v865
        %vm873 = vmor %vm871, %vm872
        %v874 = vsel %vm873, %v865, %v870
        %v875 = vrsqrt.pop %v823
        %v876 = vmul.f32 %v875, %v823
        %v877 = vmul.f32 %v876, %v875
        %v878 = vmul.f32 0.5, %v877
        %v879 = vsub.f32 1.5, %v878
        %v880 = vmul.f32 %v875, %v879
        %vm881 = vweird.f32 %v823
        %vm882 = vweird.f32 %v875
        %vm883 = vmor %vm881, %vm882
        %v884 = vsel %vm883, %v875, %v880
        %v885 = vrsqrt.pop %v824
        %v886 = vmul.f32 %v885, %v824
        %v887 = vmul.f32 %v886, %v885
        %v888 = vmul.f32 0.5, %v887
        %v889 = vsub.f32 1.5, %v888
        %v890 = vmul.f32 %v885, %v889
        %vm891 = vweird.f32 %v824
        %vm892 = vweird.f32 %v885
        %vm893 = vmor %vm891, %vm892
        %v894 = vsel %vm893, %v885, %v890
        %v895 = vrsqrt.pop %v825
        %v896 = vmul.f32 %v895, %v825
        %v897 = vmul.f32 %v896, %v895
        %v898 = vmul.f32 0.5, %v897
        %v899 = vsub.f32 1.5, %v898
        %v900 = vmul.f32 %v895, %v899
        %vm901 = vweird.f32 %v825
        %vm902 = vweird.f32 %v895
        %vm903 = vmor %vm901, %vm902
        %v904 = vsel %vm903, %v895, %v900
        %v905 = vrsqrt.pop %v826
        %v906 = vmul.f32 %v905, %v826
        %v907 = vmul.f32 %v906, %v905
        %v908 = vmul.f32 0.5, %v907
        %v909 = vsub.f32 1.5, %v908
        %v910 = vmul.f32 %v905, %v909
        %vm911 = vweird.f32 %v826
        %vm912 = vweird.f32 %v905
        %vm913 = vmor %vm911, %vm912
        %v914 = vsel %vm913, %v905, %v910
        %v915 = vrsqrt.pop %v827
        %v916 = vmul.f32 %v915, %v827
        %v917 = vmul.f32 %v916, %v915
        %v918 = vmul.f32 0.5, %v917
        %v919 = vsub.f32 1.5, %v918
        %v920 = vmul.f32 %v915, %v919
        %vm921 = vweird.f32 %v827
        %vm922 = vweird.f32 %v915
        %vm923 = vmor %vm921, %vm922
        %v924 = vsel %vm923, %v915, %v920
        %v925 = vrsqrt.pop %v828
        %v926 = vmul.f32 %v925, %v828
        %v927 = vmul.f32 %v926, %v925
        %v928 = vmul.f32 0.5, %v927
        %v929 = vsub.f32 1.5, %v928
        %v930 = vmul.f32 %v925, %v929
        %vm931 = vweird.f32 %v828
        %vm932 = vweird.f32 %v925
        %vm933 = vmor %vm931, %vm932
        %v934 = vsel %vm933, %v925, %v930
        %v935 = vrsqrt.pop %v829
        %v936 = vmul.f32 %v935, %v829
        %v937 = vmul.f32 %v936, %v935
        %v938 = vmul.f32 0.5, %v937
        %v939 = vsub.f32 1.5, %v938
        %v940 = vmul.f32 %v935, %v939
        %vm941 = vweird.f32 %v829
        %vm942 = vweird.f32 %v935
        %vm943 = vmor %vm941, %vm942
        %v944 = vsel %vm943, %v935, %v940
        %v945 = vrsqrt.pop %v830
        %v946 = vmul.f32 %v945, %v830
        %v947 = vmul.f32 %v946, %v945
        %v948 = vmul.f32 0.5, %v947
        %v949 = vsub.f32 1.5, %v948
        %v950 = vmul.f32 %v945, %v949
        %vm951 = vweird.f32 %v830
        %vm952 = vweird.f32 %v945
        %vm953 = vmor %vm951, %vm952
        %v954 = vsel %vm953, %v945, %v950
        %v955 = vrsqrt.pop %v831
        %v956 = vmul.f32 %v955, %v831
        %v957 = vmul.f32 %v956, %v955
        %v958 = vmul.f32 0.5, %v957
        %v959 = vsub.f32 1.5, %v958
        %v960 = vmul.f32 %v955, %v959
        %vm961 = vweird.f32 %v831
        %vm962 = vweird.f32 %v955
        %vm963 = vmor %vm961, %vm962
        %v964 = vsel %vm963, %v955, %v960
        %v965 = vrsqrt.pop %v832
        %v966 = vmul.f32 %v965, %v832
        %v967 = vmul.f32 %v966, %v965
        %v968 = vmul.f32 0.5, %v967
        %v969 = vsub.f32 1.5, %v968
        %v970 = vmul.f32 %v965, %v969
        %vm971 = vweird.f32 %v832
        %vm972 = vweird.f32 %v965
        %vm973 = vmor %vm971, %vm972
        %v974 = vsel %vm973, %v965, %v970
        %v975 = vrsqrt.pop %v833
        %v976 = vmul.f32 %v975, %v833
        %v977 = vmul.f32 %v976, %v975
        %v978 = vmul.f32 0.5, %v977
        %v979 = vsub.f32 1.5, %v978
        %v980 = vmul.f32 %v975, %v979
        %vm981 = vweird.f32 %v833
        %vm982 = vweird.f32 %v975
        %vm983 = vmor %vm981, %vm982
        %v984 = vsel %vm983, %v975, %v980
        %v985 = vrsqrt.pop %v834
        %v986 = vmul.f32 %v985, %v834
        %v987 = vmul.f32 %v986, %v985
        %v988 = vmul.f32 0.5, %v987
        %v989 = vsub.f32 1.5, %v988
        %v990 = vmul.f32 %v985, %v989
        %vm991 = vweird.f32 %v834
        %vm992 = vweird.f32 %v985
        %vm993 = vmor %vm991, %vm992
        %v994 = vsel %vm993, %v985, %v990
        %v995 = vmul.f32 %v716, %v844
        %v996 = vmul.f32 %v717, %v854
        %v997 = vmul.f32 %v718, %v864
        %v998 = vmul.f32 %v719, %v874
        %v999 = vmul.f32 %v720, %v884
        %v1000 = vmul.f32 %v721, %v894
        %v1001 = vmul.f32 %v722, %v904
        %v1002 = vmul.f32 %v723, %v914
        %v1003 = vmul.f32 %v724, %v924
        %v1004 = vmul.f32 %v725, %v934
        %v1005 = vmul.f32 %v726, %v944
        %v1006 = vmul.f32 %v727, %v954
        %v1007 = vmul.f32 %v728, %v964
        %v1008 = vmul.f32 %v729, %v974
        %v1009 = vmul.f32 %v730, %v984
        %v1010 = vmul.f32 %v731, %v994
        %v1011 = vpack.c.bf16 %v996, %v995
        %v1012 = vpack.c.bf16 %v998, %v997
        %v1013 = vpack.c.bf16 %v1000, %v999
        %v1014 = vpack.c.bf16 %v1002, %v1001
        %v1015 = vpack.c.bf16 %v1004, %v1003
        %v1016 = vpack.c.bf16 %v1006, %v1005
        %v1017 = vpack.c.bf16 %v1008, %v1007
        %v1018 = vpack.c.bf16 %v1010, %v1009
        %v1019 = vld [vmem:[#allocation12] sm:$0xff]
        %v1020 = vld [vmem:[#allocation12 + $0x8] sm:$0xff]
        %v1021 = vld [vmem:[#allocation12 + $0x10] sm:$0xff]
        %v1022 = vld [vmem:[#allocation12 + $0x18] sm:$0xff]
        %v1023 = vld [vmem:[#allocation12 + $0x20] sm:$0xff]
        %v1024 = vld [vmem:[#allocation12 + $0x28] sm:$0xff]
        %v1025 = vld [vmem:[#allocation12 + $0x30] sm:$0xff]
        %v1026 = vld [vmem:[#allocation12 + $0x38] sm:$0xff]
        %v1027 = vld [vmem:[#allocation12 + $0x40] sm:$0xff]
        %v1028 = vld [vmem:[#allocation12 + $0x48] sm:$0xff]
        %v1029 = vld [vmem:[#allocation12 + $0x50] sm:$0xff]
        %v1030 = vld [vmem:[#allocation12 + $0x58] sm:$0xff]
        %v1031 = vld [vmem:[#allocation12 + $0x60] sm:$0xff]
        %v1032 = vld [vmem:[#allocation12 + $0x68] sm:$0xff]
        %v1033 = vld [vmem:[#allocation12 + $0x70] sm:$0xff]
        %v1034 = vld [vmem:[#allocation12 + $0x78] sm:$0xff]
        %v1035 = vld [vmem:[#allocation12 + $0x80] sm:$0xff]
        %v1036 = vld [vmem:[#allocation12 + $0x88] sm:$0xff]
        %v1037 = vld [vmem:[#allocation12 + $0x90] sm:$0xff]
        %v1038 = vld [vmem:[#allocation12 + $0x98] sm:$0xff]
        %v1039 = vld [vmem:[#allocation12 + $0xa0] sm:$0xff]
        %v1040 = vld [vmem:[#allocation12 + $0xa8] sm:$0xff]
        %v1041 = vld [vmem:[#allocation12 + $0xb0] sm:$0xff]
        %v1042 = vld [vmem:[#allocation12 + $0xb8] sm:$0xff]
        %v1043 = vld [vmem:[#allocation12 + $0xc0] sm:$0xff]
        %v1044 = vld [vmem:[#allocation12 + $0xc8] sm:$0xff]
        %v1045 = vld [vmem:[#allocation12 + $0xd0] sm:$0xff]
        %v1046 = vld [vmem:[#allocation12 + $0xd8] sm:$0xff]
        %v1047 = vld [vmem:[#allocation12 + $0xe0] sm:$0xff]
        %v1048 = vld [vmem:[#allocation12 + $0xe8] sm:$0xff]
        %v1049 = vld [vmem:[#allocation12 + $0xf0] sm:$0xff]
        %v1050 = vld [vmem:[#allocation12 + $0xf8] sm:$0xff]
        %v1051 = vld [vmem:[#allocation12 + $0x100] sm:$0xff]
        %v1052 = vld [vmem:[#allocation12 + $0x108] sm:$0xff]
        %v1053 = vld [vmem:[#allocation12 + $0x110] sm:$0xff]
        %v1054 = vld [vmem:[#allocation12 + $0x118] sm:$0xff]
        %v1055 = vld [vmem:[#allocation12 + $0x120] sm:$0xff]
        %v1056 = vld [vmem:[#allocation12 + $0x128] sm:$0xff]
        %v1057 = vld [vmem:[#allocation12 + $0x130] sm:$0xff]
        %v1058 = vld [vmem:[#allocation12 + $0x138] sm:$0xff]
        %v1059 = vld [vmem:[#allocation12 + $0x140] sm:$0xff]
        %v1060 = vld [vmem:[#allocation12 + $0x148] sm:$0xff]
        %v1061 = vld [vmem:[#allocation12 + $0x150] sm:$0xff]
        %v1062 = vld [vmem:[#allocation12 + $0x158] sm:$0xff]
        %v1063 = vld [vmem:[#allocation12 + $0x160] sm:$0xff]
        %v1064 = vld [vmem:[#allocation12 + $0x168] sm:$0xff]
        %v1065 = vld [vmem:[#allocation12 + $0x170] sm:$0xff]
        %v1066 = vld [vmem:[#allocation12 + $0x178] sm:$0xff]
        %v1115 = vunpack.c.l.b16 %v1019
        %v1116 = vunpack.c.h.b16 %v1019
        %v1117 = vunpack.c.l.b16 %v1020
        %v1118 = vunpack.c.h.b16 %v1020
        %v1119 = vunpack.c.l.b16 %v1021
        %v1120 = vunpack.c.h.b16 %v1021
        %v1121 = vunpack.c.l.b16 %v1022
        %v1122 = vunpack.c.h.b16 %v1022
        %v1123 = vunpack.c.l.b16 %v1023
        %v1124 = vunpack.c.h.b16 %v1023
        %v1125 = vunpack.c.l.b16 %v1024
        %v1126 = vunpack.c.h.b16 %v1024
        %v1127 = vunpack.c.l.b16 %v1025
        %v1128 = vunpack.c.h.b16 %v1025
        %v1129 = vunpack.c.l.b16 %v1026
        %v1130 = vunpack.c.h.b16 %v1026
        %v1131 = vunpack.c.l.b16 %v1027
        %v1132 = vunpack.c.h.b16 %v1027
        %v1133 = vunpack.c.l.b16 %v1028
        %v1134 = vunpack.c.h.b16 %v1028
        %v1135 = vunpack.c.l.b16 %v1029
        %v1136 = vunpack.c.h.b16 %v1029
        %v1137 = vunpack.c.l.b16 %v1030
        %v1138 = vunpack.c.h.b16 %v1030
        %v1139 = vunpack.c.l.b16 %v1031
        %v1140 = vunpack.c.h.b16 %v1031
        %v1141 = vunpack.c.l.b16 %v1032
        %v1142 = vunpack.c.h.b16 %v1032
        %v1143 = vunpack.c.l.b16 %v1033
        %v1144 = vunpack.c.h.b16 %v1033
        %v1145 = vunpack.c.l.b16 %v1034
        %v1146 = vunpack.c.h.b16 %v1034
        %v1147 = vunpack.c.l.b16 %v1035
        %v1148 = vunpack.c.h.b16 %v1035
        %v1149 = vunpack.c.l.b16 %v1036
        %v1150 = vunpack.c.h.b16 %v1036
        %v1151 = vunpack.c.l.b16 %v1037
        %v1152 = vunpack.c.h.b16 %v1037
        %v1153 = vunpack.c.l.b16 %v1038
        %v1154 = vunpack.c.h.b16 %v1038
        %v1155 = vunpack.c.l.b16 %v1039
        %v1156 = vunpack.c.h.b16 %v1039
        %v1157 = vunpack.c.l.b16 %v1040
        %v1158 = vunpack.c.h.b16 %v1040
        %v1159 = vunpack.c.l.b16 %v1041
        %v1160 = vunpack.c.h.b16 %v1041
        %v1161 = vunpack.c.l.b16 %v1042
        %v1162 = vunpack.c.h.b16 %v1042
        %v1163 = vunpack.c.l.b16 %v1043
        %v1164 = vunpack.c.h.b16 %v1043
        %v1165 = vunpack.c.l.b16 %v1044
        %v1166 = vunpack.c.h.b16 %v1044
        %v1167 = vunpack.c.l.b16 %v1045
        %v1168 = vunpack.c.h.b16 %v1045
        %v1169 = vunpack.c.l.b16 %v1046
        %v1170 = vunpack.c.h.b16 %v1046
        %v1171 = vunpack.c.l.b16 %v1047
        %v1172 = vunpack.c.h.b16 %v1047
        %v1173 = vunpack.c.l.b16 %v1048
        %v1174 = vunpack.c.h.b16 %v1048
        %v1175 = vunpack.c.l.b16 %v1049
        %v1176 = vunpack.c.h.b16 %v1049
        %v1177 = vunpack.c.l.b16 %v1050
        %v1178 = vunpack.c.h.b16 %v1050
        %v1179 = vunpack.c.l.b16 %v1051
        %v1180 = vunpack.c.h.b16 %v1051
        %v1181 = vunpack.c.l.b16 %v1052
        %v1182 = vunpack.c.h.b16 %v1052
        %v1183 = vunpack.c.l.b16 %v1053
        %v1184 = vunpack.c.h.b16 %v1053
        %v1185 = vunpack.c.l.b16 %v1054
        %v1186 = vunpack.c.h.b16 %v1054
        %v1187 = vunpack.c.l.b16 %v1055
        %v1188 = vunpack.c.h.b16 %v1055
        %v1189 = vunpack.c.l.b16 %v1056
        %v1190 = vunpack.c.h.b16 %v1056
        %v1191 = vunpack.c.l.b16 %v1057
        %v1192 = vunpack.c.h.b16 %v1057
        %v1193 = vunpack.c.l.b16 %v1058
        %v1194 = vunpack.c.h.b16 %v1058
        %v1195 = vunpack.c.l.b16 %v1059
        %v1196 = vunpack.c.h.b16 %v1059
        %v1197 = vunpack.c.l.b16 %v1060
        %v1198 = vunpack.c.h.b16 %v1060
        %v1199 = vunpack.c.l.b16 %v1061
        %v1200 = vunpack.c.h.b16 %v1061
        %v1201 = vunpack.c.l.b16 %v1062
        %v1202 = vunpack.c.h.b16 %v1062
        %v1203 = vunpack.c.l.b16 %v1063
        %v1204 = vunpack.c.h.b16 %v1063
        %v1205 = vunpack.c.l.b16 %v1064
        %v1206 = vunpack.c.h.b16 %v1064
        %v1207 = vunpack.c.l.b16 %v1065
        %v1208 = vunpack.c.h.b16 %v1065
        %v1209 = vunpack.c.l.b16 %v1066
        %v1210 = vunpack.c.h.b16 %v1066
        %v1211 = vpack.c.b16 %v1121, %v1115
        %v1212 = vpack.c.b16 %v1122, %v1116
        %v1213 = vpack.c.b16 %v1123, %v1117
        %v1214 = vpack.c.b16 %v1124, %v1118
        %v1215 = vpack.c.b16 %v1125, %v1119
        %v1216 = vpack.c.b16 %v1126, %v1120
        %v1217 = vpack.c.b16 %v1133, %v1127
        %v1218 = vpack.c.b16 %v1134, %v1128
        %v1219 = vpack.c.b16 %v1135, %v1129
        %v1220 = vpack.c.b16 %v1136, %v1130
        %v1221 = vpack.c.b16 %v1137, %v1131
        %v1222 = vpack.c.b16 %v1138, %v1132
        %v1223 = vpack.c.b16 %v1145, %v1139
        %v1224 = vpack.c.b16 %v1146, %v1140
        %v1225 = vpack.c.b16 %v1147, %v1141
        %v1226 = vpack.c.b16 %v1148, %v1142
        %v1227 = vpack.c.b16 %v1149, %v1143
        %v1228 = vpack.c.b16 %v1150, %v1144
        %v1229 = vpack.c.b16 %v1157, %v1151
        %v1230 = vpack.c.b16 %v1158, %v1152
        %v1231 = vpack.c.b16 %v1159, %v1153
        %v1232 = vpack.c.b16 %v1160, %v1154
        %v1233 = vpack.c.b16 %v1161, %v1155
        %v1234 = vpack.c.b16 %v1162, %v1156
        %v1235 = vpack.c.b16 %v1169, %v1163
        %v1236 = vpack.c.b16 %v1170, %v1164
        %v1237 = vpack.c.b16 %v1171, %v1165
        %v1238 = vpack.c.b16 %v1172, %v1166
        %v1239 = vpack.c.b16 %v1173, %v1167
        %v1240 = vpack.c.b16 %v1174, %v1168
        %v1241 = vpack.c.b16 %v1181, %v1175
        %v1242 = vpack.c.b16 %v1182, %v1176
        %v1243 = vpack.c.b16 %v1183, %v1177
        %v1244 = vpack.c.b16 %v1184, %v1178
        %v1245 = vpack.c.b16 %v1185, %v1179
        %v1246 = vpack.c.b16 %v1186, %v1180
        %v1247 = vpack.c.b16 %v1193, %v1187
        %v1248 = vpack.c.b16 %v1194, %v1188
        %v1249 = vpack.c.b16 %v1195, %v1189
        %v1250 = vpack.c.b16 %v1196, %v1190
        %v1251 = vpack.c.b16 %v1197, %v1191
        %v1252 = vpack.c.b16 %v1198, %v1192
        %v1253 = vpack.c.b16 %v1205, %v1199
        %v1254 = vpack.c.b16 %v1206, %v1200
        %v1255 = vpack.c.b16 %v1207, %v1201
        %v1256 = vpack.c.b16 %v1208, %v1202
        %v1257 = vpack.c.b16 %v1209, %v1203
        %v1258 = vpack.c.b16 %v1210, %v1204
        %1307 = vmatpush.bf16.msra.mxu0 %v1253
        %1308 = vmatpush.bf16.msra.mxu0 %v1247
        %1309 = vmatpush.bf16.msra.mxu0 %v1241
        %1310 = vmatpush.bf16.msra.mxu0 %v1235
        %1311 = vmatpush.bf16.msra.mxu0 %v1229
        %1312 = vmatpush.bf16.msra.mxu0 %v1223
        %1313 = vmatpush.bf16.msra.mxu0 %v1217
        %1314 = vmatpush.bf16.msra.mxu0 %v1211
        %1315 = vmatmul.bf16.gmra.mxu0 %v1011
        %v1316 = vpop.f32.mrf.mxu0
        %v1317 = vadd.f32 0.0, %v1316
        %v1318 = vpop.f32.mrf.mxu0
        %v1319 = vadd.f32 0.0, %v1318
        %1320 = vmatmul.bf16.gmra.mxu0 %v1012
        %v1321 = vpop.f32.mrf.mxu0
        %v1322 = vadd.f32 0.0, %v1321
        %v1323 = vpop.f32.mrf.mxu0
        %v1324 = vadd.f32 0.0, %v1323
        %1325 = vmatmul.bf16.gmra.mxu0 %v1013
        %v1326 = vpop.f32.mrf.mxu0
        %v1327 = vadd.f32 0.0, %v1326
        %v1328 = vpop.f32.mrf.mxu0
        %v1329 = vadd.f32 0.0, %v1328
        %1330 = vmatmul.bf16.gmra.mxu0 %v1014
        %v1331 = vpop.f32.mrf.mxu0
        %v1332 = vadd.f32 0.0, %v1331
        %v1333 = vpop.f32.mrf.mxu0
        %v1334 = vadd.f32 0.0, %v1333
        %1335 = vmatmul.bf16.gmra.mxu0 %v1015
        %v1336 = vpop.f32.mrf.mxu0
        %v1337 = vadd.f32 0.0, %v1336
        %v1338 = vpop.f32.mrf.mxu0
        %v1339 = vadd.f32 0.0, %v1338
        %1340 = vmatmul.bf16.gmra.mxu0 %v1016
        %v1341 = vpop.f32.mrf.mxu0
        %v1342 = vadd.f32 0.0, %v1341
        %v1343 = vpop.f32.mrf.mxu0
        %v1344 = vadd.f32 0.0, %v1343
        %1345 = vmatmul.bf16.gmra.mxu0 %v1017
        %v1346 = vpop.f32.mrf.mxu0
        %v1347 = vadd.f32 0.0, %v1346
        %v1348 = vpop.f32.mrf.mxu0
        %v1349 = vadd.f32 0.0, %v1348
        %1350 = vmatmul.bf16.gmra.mxu0 %v1018
        %v1351 = vpop.f32.mrf.mxu0
        %v1352 = vadd.f32 0.0, %v1351
        %v1353 = vpop.f32.mrf.mxu0
        %v1354 = vadd.f32 0.0, %v1353
        %1355 = vdwg.mxu0
        %1356 = vmatpush.bf16.msra.mxu0 %v1254
        %1357 = vmatpush.bf16.msra.mxu0 %v1248
        %1358 = vmatpush.bf16.msra.mxu0 %v1242
        %1359 = vmatpush.bf16.msra.mxu0 %v1236
        %1360 = vmatpush.bf16.msra.mxu0 %v1230
        %1361 = vmatpush.bf16.msra.mxu0 %v1224
        %1362 = vmatpush.bf16.msra.mxu0 %v1218
        %1363 = vmatpush.bf16.msra.mxu0 %v1212
        %1364 = vmatmul.bf16.gmra.mxu0 %v1011
        %v1365 = vpop.f32.mrf.mxu0
        %v1366 = vadd.f32 0.0, %v1365
        %v1367 = vpop.f32.mrf.mxu0
        %v1368 = vadd.f32 0.0, %v1367
        %1369 = vmatmul.bf16.gmra.mxu0 %v1012
        %v1370 = vpop.f32.mrf.mxu0
        %v1371 = vadd.f32 0.0, %v1370
        %v1372 = vpop.f32.mrf.mxu0
        %v1373 = vadd.f32 0.0, %v1372
        %1374 = vmatmul.bf16.gmra.mxu0 %v1013
        %v1375 = vpop.f32.mrf.mxu0
        %v1376 = vadd.f32 0.0, %v1375
        %v1377 = vpop.f32.mrf.mxu0
        %v1378 = vadd.f32 0.0, %v1377
        %1379 = vmatmul.bf16.gmra.mxu0 %v1014
        %v1380 = vpop.f32.mrf.mxu0
        %v1381 = vadd.f32 0.0, %v1380
        %v1382 = vpop.f32.mrf.mxu0
        %v1383 = vadd.f32 0.0, %v1382
        %1384 = vmatmul.bf16.gmra.mxu0 %v1015
        %v1385 = vpop.f32.mrf.mxu0
        %v1386 = vadd.f32 0.0, %v1385
        %v1387 = vpop.f32.mrf.mxu0
        %v1388 = vadd.f32 0.0, %v1387
        %1389 = vmatmul.bf16.gmra.mxu0 %v1016
        %v1390 = vpop.f32.mrf.mxu0
        %v1391 = vadd.f32 0.0, %v1390
        %v1392 = vpop.f32.mrf.mxu0
        %v1393 = vadd.f32 0.0, %v1392
        %1394 = vmatmul.bf16.gmra.mxu0 %v1017
        %v1395 = vpop.f32.mrf.mxu0
        %v1396 = vadd.f32 0.0, %v1395
        %v1397 = vpop.f32.mrf.mxu0
        %v1398 = vadd.f32 0.0, %v1397
        %1399 = vmatmul.bf16.gmra.mxu0 %v1018
        %v1400 = vpop.f32.mrf.mxu0
        %v1401 = vadd.f32 0.0, %v1400
        %v1402 = vpop.f32.mrf.mxu0
        %v1403 = vadd.f32 0.0, %v1402
        %1404 = vdwg.mxu0
        %1405 = vmatpush.bf16.msra.mxu0 %v1255
        %1406 = vmatpush.bf16.msra.mxu0 %v1249
        %1407 = vmatpush.bf16.msra.mxu0 %v1243
        %1408 = vmatpush.bf16.msra.mxu0 %v1237
        %1409 = vmatpush.bf16.msra.mxu0 %v1231
        %1410 = vmatpush.bf16.msra.mxu0 %v1225
        %1411 = vmatpush.bf16.msra.mxu0 %v1219
        %1412 = vmatpush.bf16.msra.mxu0 %v1213
        %1413 = vmatmul.bf16.gmra.mxu0 %v1011
        %v1414 = vpop.f32.mrf.mxu0
        %v1415 = vadd.f32 0.0, %v1414
        %v1416 = vpop.f32.mrf.mxu0
        %v1417 = vadd.f32 0.0, %v1416
        %1418 = vmatmul.bf16.gmra.mxu0 %v1012
        %v1419 = vpop.f32.mrf.mxu0
        %v1420 = vadd.f32 0.0, %v1419
        %v1421 = vpop.f32.mrf.mxu0
        %v1422 = vadd.f32 0.0, %v1421
        %1423 = vmatmul.bf16.gmra.mxu0 %v1013
        %v1424 = vpop.f32.mrf.mxu0
        %v1425 = vadd.f32 0.0, %v1424
        %v1426 = vpop.f32.mrf.mxu0
        %v1427 = vadd.f32 0.0, %v1426
        %1428 = vmatmul.bf16.gmra.mxu0 %v1014
        %v1429 = vpop.f32.mrf.mxu0
        %v1430 = vadd.f32 0.0, %v1429
        %v1431 = vpop.f32.mrf.mxu0
        %v1432 = vadd.f32 0.0, %v1431
        %1433 = vmatmul.bf16.gmra.mxu0 %v1015
        %v1434 = vpop.f32.mrf.mxu0
        %v1435 = vadd.f32 0.0, %v1434
        %v1436 = vpop.f32.mrf.mxu0
        %v1437 = vadd.f32 0.0, %v1436
        %1438 = vmatmul.bf16.gmra.mxu0 %v1016
        %v1439 = vpop.f32.mrf.mxu0
        %v1440 = vadd.f32 0.0, %v1439
        %v1441 = vpop.f32.mrf.mxu0
        %v1442 = vadd.f32 0.0, %v1441
        %1443 = vmatmul.bf16.gmra.mxu0 %v1017
        %v1444 = vpop.f32.mrf.mxu0
        %v1445 = vadd.f32 0.0, %v1444
        %v1446 = vpop.f32.mrf.mxu0
        %v1447 = vadd.f32 0.0, %v1446
        %1448 = vmatmul.bf16.gmra.mxu0 %v1018
        %v1449 = vpop.f32.mrf.mxu0
        %v1450 = vadd.f32 0.0, %v1449
        %v1451 = vpop.f32.mrf.mxu0
        %v1452 = vadd.f32 0.0, %v1451
        %1453 = vdwg.mxu0
        %1454 = vmatpush.bf16.msra.mxu0 %v1256
        %1455 = vmatpush.bf16.msra.mxu0 %v1250
        %1456 = vmatpush.bf16.msra.mxu0 %v1244
        %1457 = vmatpush.bf16.msra.mxu0 %v1238
        %1458 = vmatpush.bf16.msra.mxu0 %v1232
        %1459 = vmatpush.bf16.msra.mxu0 %v1226
        %1460 = vmatpush.bf16.msra.mxu0 %v1220
        %1461 = vmatpush.bf16.msra.mxu0 %v1214
        %1462 = vmatmul.bf16.gmra.mxu0 %v1011
        %v1463 = vpop.f32.mrf.mxu0
        %v1464 = vadd.f32 0.0, %v1463
        %v1465 = vpop.f32.mrf.mxu0
        %v1466 = vadd.f32 0.0, %v1465
        %1467 = vmatmul.bf16.gmra.mxu0 %v1012
        %v1468 = vpop.f32.mrf.mxu0
        %v1469 = vadd.f32 0.0, %v1468
        %v1470 = vpop.f32.mrf.mxu0
        %v1471 = vadd.f32 0.0, %v1470
        %1472 = vmatmul.bf16.gmra.mxu0 %v1013
        %v1473 = vpop.f32.mrf.mxu0
        %v1474 = vadd.f32 0.0, %v1473
        %v1475 = vpop.f32.mrf.mxu0
        %v1476 = vadd.f32 0.0, %v1475
        %1477 = vmatmul.bf16.gmra.mxu0 %v1014
        %v1478 = vpop.f32.mrf.mxu0
        %v1479 = vadd.f32 0.0, %v1478
        %v1480 = vpop.f32.mrf.mxu0
        %v1481 = vadd.f32 0.0, %v1480
        %1482 = vmatmul.bf16.gmra.mxu0 %v1015
        %v1483 = vpop.f32.mrf.mxu0
        %v1484 = vadd.f32 0.0, %v1483
        %v1485 = vpop.f32.mrf.mxu0
        %v1486 = vadd.f32 0.0, %v1485
        %1487 = vmatmul.bf16.gmra.mxu0 %v1016
        %v1488 = vpop.f32.mrf.mxu0
        %v1489 = vadd.f32 0.0, %v1488
        %v1490 = vpop.f32.mrf.mxu0
        %v1491 = vadd.f32 0.0, %v1490
        %1492 = vmatmul.bf16.gmra.mxu0 %v1017
        %v1493 = vpop.f32.mrf.mxu0
        %v1494 = vadd.f32 0.0, %v1493
        %v1495 = vpop.f32.mrf.mxu0
        %v1496 = vadd.f32 0.0, %v1495
        %1497 = vmatmul.bf16.gmra.mxu0 %v1018
        %v1498 = vpop.f32.mrf.mxu0
        %v1499 = vadd.f32 0.0, %v1498
        %v1500 = vpop.f32.mrf.mxu0
        %v1501 = vadd.f32 0.0, %v1500
        %1502 = vdwg.mxu0
        %1503 = vmatpush.bf16.msra.mxu0 %v1257
        %1504 = vmatpush.bf16.msra.mxu0 %v1251
        %1505 = vmatpush.bf16.msra.mxu0 %v1245
        %1506 = vmatpush.bf16.msra.mxu0 %v1239
        %1507 = vmatpush.bf16.msra.mxu0 %v1233
        %1508 = vmatpush.bf16.msra.mxu0 %v1227
        %1509 = vmatpush.bf16.msra.mxu0 %v1221
        %1510 = vmatpush.bf16.msra.mxu0 %v1215
        %1511 = vmatmul.bf16.gmra.mxu0 %v1011
        %v1512 = vpop.f32.mrf.mxu0
        %v1513 = vadd.f32 0.0, %v1512
        %v1514 = vpop.f32.mrf.mxu0
        %v1515 = vadd.f32 0.0, %v1514
        %1516 = vmatmul.bf16.gmra.mxu0 %v1012
        %v1517 = vpop.f32.mrf.mxu0
        %v1518 = vadd.f32 0.0, %v1517
        %v1519 = vpop.f32.mrf.mxu0
        %v1520 = vadd.f32 0.0, %v1519
        %1521 = vmatmul.bf16.gmra.mxu0 %v1013
        %v1522 = vpop.f32.mrf.mxu0
        %v1523 = vadd.f32 0.0, %v1522
        %v1524 = vpop.f32.mrf.mxu0
        %v1525 = vadd.f32 0.0, %v1524
        %1526 = vmatmul.bf16.gmra.mxu0 %v1014
        %v1527 = vpop.f32.mrf.mxu0
        %v1528 = vadd.f32 0.0, %v1527
        %v1529 = vpop.f32.mrf.mxu0
        %v1530 = vadd.f32 0.0, %v1529
        %1531 = vmatmul.bf16.gmra.mxu0 %v1015
        %v1532 = vpop.f32.mrf.mxu0
        %v1533 = vadd.f32 0.0, %v1532
        %v1534 = vpop.f32.mrf.mxu0
        %v1535 = vadd.f32 0.0, %v1534
        %1536 = vmatmul.bf16.gmra.mxu0 %v1016
        %v1537 = vpop.f32.mrf.mxu0
        %v1538 = vadd.f32 0.0, %v1537
        %v1539 = vpop.f32.mrf.mxu0
        %v1540 = vadd.f32 0.0, %v1539
        %1541 = vmatmul.bf16.gmra.mxu0 %v1017
        %v1542 = vpop.f32.mrf.mxu0
        %v1543 = vadd.f32 0.0, %v1542
        %v1544 = vpop.f32.mrf.mxu0
        %v1545 = vadd.f32 0.0, %v1544
        %1546 = vmatmul.bf16.gmra.mxu0 %v1018
        %v1547 = vpop.f32.mrf.mxu0
        %v1548 = vadd.f32 0.0, %v1547
        %v1549 = vpop.f32.mrf.mxu0
        %v1550 = vadd.f32 0.0, %v1549
        %1551 = vdwg.mxu0
        %1552 = vmatpush.bf16.msra.mxu0 %v1258
        %1553 = vmatpush.bf16.msra.mxu0 %v1252
        %1554 = vmatpush.bf16.msra.mxu0 %v1246
        %1555 = vmatpush.bf16.msra.mxu0 %v1240
        %1556 = vmatpush.bf16.msra.mxu0 %v1234
        %1557 = vmatpush.bf16.msra.mxu0 %v1228
        %1558 = vmatpush.bf16.msra.mxu0 %v1222
        %1559 = vmatpush.bf16.msra.mxu0 %v1216
        %1560 = vmatmul.bf16.gmra.mxu0 %v1011
        %v1561 = vpop.f32.mrf.mxu0
        %v1562 = vadd.f32 0.0, %v1561
        %v1563 = vpop.f32.mrf.mxu0
        %v1564 = vadd.f32 0.0, %v1563
        %1565 = vmatmul.bf16.gmra.mxu0 %v1012
        %v1566 = vpop.f32.mrf.mxu0
        %v1567 = vadd.f32 0.0, %v1566
        %v1568 = vpop.f32.mrf.mxu0
        %v1569 = vadd.f32 0.0, %v1568
        %1570 = vmatmul.bf16.gmra.mxu0 %v1013
        %v1571 = vpop.f32.mrf.mxu0
        %v1572 = vadd.f32 0.0, %v1571
        %v1573 = vpop.f32.mrf.mxu0
        %v1574 = vadd.f32 0.0, %v1573
        %1575 = vmatmul.bf16.gmra.mxu0 %v1014
        %v1576 = vpop.f32.mrf.mxu0
        %v1577 = vadd.f32 0.0, %v1576
        %v1578 = vpop.f32.mrf.mxu0
        %v1579 = vadd.f32 0.0, %v1578
        %1580 = vmatmul.bf16.gmra.mxu0 %v1015
        %v1581 = vpop.f32.mrf.mxu0
        %v1582 = vadd.f32 0.0, %v1581
        %v1583 = vpop.f32.mrf.mxu0
        %v1584 = vadd.f32 0.0, %v1583
        %1585 = vmatmul.bf16.gmra.mxu0 %v1016
        %v1586 = vpop.f32.mrf.mxu0
        %v1587 = vadd.f32 0.0, %v1586
        %v1588 = vpop.f32.mrf.mxu0
        %v1589 = vadd.f32 0.0, %v1588
        %1590 = vmatmul.bf16.gmra.mxu0 %v1017
        %v1591 = vpop.f32.mrf.mxu0
        %v1592 = vadd.f32 0.0, %v1591
        %v1593 = vpop.f32.mrf.mxu0
        %v1594 = vadd.f32 0.0, %v1593
        %1595 = vmatmul.bf16.gmra.mxu0 %v1018
        %v1596 = vpop.f32.mrf.mxu0
        %v1597 = vadd.f32 0.0, %v1596
        %v1598 = vpop.f32.mrf.mxu0
        %v1599 = vadd.f32 0.0, %v1598
        %1600 = vdwg.mxu0
        %v1601 = vld [vmem:[%s553] sm:$0xff]
        %v1602 = vld [vmem:[%s553 + $0x8] sm:$0xff]
        %v1603 = vld [vmem:[%s553 + $0x10] sm:$0xff]
        %v1604 = vld [vmem:[%s553 + $0x18] sm:$0xff]
        %v1605 = vld [vmem:[%s553 + $0x20] sm:$0xff]
        %v1606 = vld [vmem:[%s553 + $0x28] sm:$0xff]
        %v1607 = vld [vmem:[%s553 + $0x30] sm:$0xff]
        %v1608 = vld [vmem:[%s553 + $0x38] sm:$0xff]
        %v1609 = vld [vmem:[%s553 + $0x40] sm:$0xff]
        %v1610 = vld [vmem:[%s553 + $0x48] sm:$0xff]
        %v1611 = vld [vmem:[%s553 + $0x50] sm:$0xff]
        %v1612 = vld [vmem:[%s553 + $0x58] sm:$0xff]
        %v1613 = vld [vmem:[%s553 + $0x60] sm:$0xff]
        %v1614 = vld [vmem:[%s553 + $0x68] sm:$0xff]
        %v1615 = vld [vmem:[%s553 + $0x70] sm:$0xff]
        %v1616 = vld [vmem:[%s553 + $0x78] sm:$0xff]
        %v1617 = vld [vmem:[%s563] sm:$0xff]
        %v1618 = vld [vmem:[%s563 + $0x8] sm:$0xff]
        %v1619 = vld [vmem:[%s563 + $0x10] sm:$0xff]
        %v1620 = vld [vmem:[%s563 + $0x18] sm:$0xff]
        %v1621 = vld [vmem:[%s563 + $0x20] sm:$0xff]
        %v1622 = vld [vmem:[%s563 + $0x28] sm:$0xff]
        %v1623 = vld [vmem:[%s563 + $0x30] sm:$0xff]
        %v1624 = vld [vmem:[%s563 + $0x38] sm:$0xff]
        %v1625 = vld [vmem:[%s563 + $0x40] sm:$0xff]
        %v1626 = vld [vmem:[%s563 + $0x48] sm:$0xff]
        %v1627 = vld [vmem:[%s563 + $0x50] sm:$0xff]
        %v1628 = vld [vmem:[%s563 + $0x58] sm:$0xff]
        %v1629 = vld [vmem:[%s563 + $0x60] sm:$0xff]
        %v1630 = vld [vmem:[%s563 + $0x68] sm:$0xff]
        %v1631 = vld [vmem:[%s563 + $0x70] sm:$0xff]
        %v1632 = vld [vmem:[%s563 + $0x78] sm:$0xff]
        %s1633 = sld [smem:[#allocation6]]
        %s1634 = sld [smem:[#allocation6 + $0x1]]
        %v1635 = vmul.f32 %v1317, %v1317
        %v1636 = vmul.f32 %v1319, %v1319
        %v1637 = vmul.f32 %v1322, %v1322
        %v1638 = vmul.f32 %v1324, %v1324
        %v1639 = vmul.f32 %v1327, %v1327
        %v1640 = vmul.f32 %v1329, %v1329
        %v1641 = vmul.f32 %v1332, %v1332
        %v1642 = vmul.f32 %v1334, %v1334
        %v1643 = vmul.f32 %v1337, %v1337
        %v1644 = vmul.f32 %v1339, %v1339
        %v1645 = vmul.f32 %v1342, %v1342
        %v1646 = vmul.f32 %v1344, %v1344
        %v1647 = vmul.f32 %v1347, %v1347
        %v1648 = vmul.f32 %v1349, %v1349
        %v1649 = vmul.f32 %v1352, %v1352
        %v1650 = vmul.f32 %v1354, %v1354
        %1651 = vadd.xlane.f32.xlu0 %v1635
        %v1652 = vpop.xlane.xlu0 %1651
        %1653 = vadd.xlane.f32.xlu0 %v1636
        %v1654 = vpop.xlane.xlu0 %1653
        %1655 = vadd.xlane.f32.xlu0 %v1637
        %v1656 = vpop.xlane.xlu0 %1655
        %1657 = vadd.xlane.f32.xlu0 %v1638
        %v1658 = vpop.xlane.xlu0 %1657
        %1659 = vadd.xlane.f32.xlu0 %v1639
        %v1660 = vpop.xlane.xlu0 %1659
        %1661 = vadd.xlane.f32.xlu0 %v1640
        %v1662 = vpop.xlane.xlu0 %1661
        %1663 = vadd.xlane.f32.xlu0 %v1641
        %v1664 = vpop.xlane.xlu0 %1663
        %1665 = vadd.xlane.f32.xlu0 %v1642
        %v1666 = vpop.xlane.xlu0 %1665
        %1667 = vadd.xlane.f32.xlu0 %v1643
        %v1668 = vpop.xlane.xlu0 %1667
        %1669 = vadd.xlane.f32.xlu0 %v1644
        %v1670 = vpop.xlane.xlu0 %1669
        %1671 = vadd.xlane.f32.xlu0 %v1645
        %v1672 = vpop.xlane.xlu0 %1671
        %1673 = vadd.xlane.f32.xlu0 %v1646
        %v1674 = vpop.xlane.xlu0 %1673
        %1675 = vadd.xlane.f32.xlu0 %v1647
        %v1676 = vpop.xlane.xlu0 %1675
        %1677 = vadd.xlane.f32.xlu0 %v1648
        %v1678 = vpop.xlane.xlu0 %1677
        %1679 = vadd.xlane.f32.xlu0 %v1649
        %v1680 = vpop.xlane.xlu0 %1679
        %1681 = vadd.xlane.f32.xlu0 %v1650
        %v1682 = vpop.xlane.xlu0 %1681
        %v1683 = vmul.f32 %v1652, %v802
        %v1684 = vmul.f32 %v1654, %v802
        %v1685 = vmul.f32 %v1656, %v802
        %v1686 = vmul.f32 %v1658, %v802
        %v1687 = vmul.f32 %v1660, %v802
        %v1688 = vmul.f32 %v1662, %v802
        %v1689 = vmul.f32 %v1664, %v802
        %v1690 = vmul.f32 %v1666, %v802
        %v1691 = vmul.f32 %v1668, %v802
        %v1692 = vmul.f32 %v1670, %v802
        %v1693 = vmul.f32 %v1672, %v802
        %v1694 = vmul.f32 %v1674, %v802
        %v1695 = vmul.f32 %v1676, %v802
        %v1696 = vmul.f32 %v1678, %v802
        %v1697 = vmul.f32 %v1680, %v802
        %v1698 = vmul.f32 %v1682, %v802
        %v1699 = vadd.f32 %v1683, 1.1920929e-07
        %v1700 = vadd.f32 %v1684, 1.1920929e-07
        %v1701 = vadd.f32 %v1685, 1.1920929e-07
        %v1702 = vadd.f32 %v1686, 1.1920929e-07
        %v1703 = vadd.f32 %v1687, 1.1920929e-07
        %v1704 = vadd.f32 %v1688, 1.1920929e-07
        %v1705 = vadd.f32 %v1689, 1.1920929e-07
        %v1706 = vadd.f32 %v1690, 1.1920929e-07
        %v1707 = vadd.f32 %v1691, 1.1920929e-07
        %v1708 = vadd.f32 %v1692, 1.1920929e-07
        %v1709 = vadd.f32 %v1693, 1.1920929e-07
        %v1710 = vadd.f32 %v1694, 1.1920929e-07
        %v1711 = vadd.f32 %v1695, 1.1920929e-07
        %v1712 = vadd.f32 %v1696, 1.1920929e-07
        %v1713 = vadd.f32 %v1697, 1.1920929e-07
        %v1714 = vadd.f32 %v1698, 1.1920929e-07
        %v1715 = vrsqrt.pop %v1699
        %v1716 = vmul.f32 %v1715, %v1699
        %v1717 = vmul.f32 %v1716, %v1715
        %v1718 = vmul.f32 0.5, %v1717
        %v1719 = vsub.f32 1.5, %v1718
        %v1720 = vmul.f32 %v1715, %v1719
        %vm1721 = vweird.f32 %v1699
        %vm1722 = vweird.f32 %v1715
        %vm1723 = vmor %vm1721, %vm1722
        %v1724 = vsel %vm1723, %v1715, %v1720
        %v1725 = vrsqrt.pop %v1700
        %v1726 = vmul.f32 %v1725, %v1700
        %v1727 = vmul.f32 %v1726, %v1725
        %v1728 = vmul.f32 0.5, %v1727
        %v1729 = vsub.f32 1.5, %v1728
        %v1730 = vmul.f32 %v1725, %v1729
        %vm1731 = vweird.f32 %v1700
        %vm1732 = vweird.f32 %v1725
        %vm1733 = vmor %vm1731, %vm1732
        %v1734 = vsel %vm1733, %v1725, %v1730
        %v1735 = vrsqrt.pop %v1701
        %v1736 = vmul.f32 %v1735, %v1701
        %v1737 = vmul.f32 %v1736, %v1735
        %v1738 = vmul.f32 0.5, %v1737
        %v1739 = vsub.f32 1.5, %v1738
        %v1740 = vmul.f32 %v1735, %v1739
        %vm1741 = vweird.f32 %v1701
        %vm1742 = vweird.f32 %v1735
        %vm1743 = vmor %vm1741, %vm1742
        %v1744 = vsel %vm1743, %v1735, %v1740
        %v1745 = vrsqrt.pop %v1702
        %v1746 = vmul.f32 %v1745, %v1702
        %v1747 = vmul.f32 %v1746, %v1745
        %v1748 = vmul.f32 0.5, %v1747
        %v1749 = vsub.f32 1.5, %v1748
        %v1750 = vmul.f32 %v1745, %v1749
        %vm1751 = vweird.f32 %v1702
        %vm1752 = vweird.f32 %v1745
        %vm1753 = vmor %vm1751, %vm1752
        %v1754 = vsel %vm1753, %v1745, %v1750
        %v1755 = vrsqrt.pop %v1703
        %v1756 = vmul.f32 %v1755, %v1703
        %v1757 = vmul.f32 %v1756, %v1755
        %v1758 = vmul.f32 0.5, %v1757
        %v1759 = vsub.f32 1.5, %v1758
        %v1760 = vmul.f32 %v1755, %v1759
        %vm1761 = vweird.f32 %v1703
        %vm1762 = vweird.f32 %v1755
        %vm1763 = vmor %vm1761, %vm1762
        %v1764 = vsel %vm1763, %v1755, %v1760
        %v1765 = vrsqrt.pop %v1704
        %v1766 = vmul.f32 %v1765, %v1704
        %v1767 = vmul.f32 %v1766, %v1765
        %v1768 = vmul.f32 0.5, %v1767
        %v1769 = vsub.f32 1.5, %v1768
        %v1770 = vmul.f32 %v1765, %v1769
        %vm1771 = vweird.f32 %v1704
        %vm1772 = vweird.f32 %v1765
        %vm1773 = vmor %vm1771, %vm1772
        %v1774 = vsel %vm1773, %v1765, %v1770
        %v1775 = vrsqrt.pop %v1705
        %v1776 = vmul.f32 %v1775, %v1705
        %v1777 = vmul.f32 %v1776, %v1775
        %v1778 = vmul.f32 0.5, %v1777
        %v1779 = vsub.f32 1.5, %v1778
        %v1780 = vmul.f32 %v1775, %v1779
        %vm1781 = vweird.f32 %v1705
        %vm1782 = vweird.f32 %v1775
        %vm1783 = vmor %vm1781, %vm1782
        %v1784 = vsel %vm1783, %v1775, %v1780
        %v1785 = vrsqrt.pop %v1706
        %v1786 = vmul.f32 %v1785, %v1706
        %v1787 = vmul.f32 %v1786, %v1785
        %v1788 = vmul.f32 0.5, %v1787
        %v1789 = vsub.f32 1.5, %v1788
        %v1790 = vmul.f32 %v1785, %v1789
        %vm1791 = vweird.f32 %v1706
        %vm1792 = vweird.f32 %v1785
        %vm1793 = vmor %vm1791, %vm1792
        %v1794 = vsel %vm1793, %v1785, %v1790
        %v1795 = vrsqrt.pop %v1707
        %v1796 = vmul.f32 %v1795, %v1707
        %v1797 = vmul.f32 %v1796, %v1795
        %v1798 = vmul.f32 0.5, %v1797
        %v1799 = vsub.f32 1.5, %v1798
        %v1800 = vmul.f32 %v1795, %v1799
        %vm1801 = vweird.f32 %v1707
        %vm1802 = vweird.f32 %v1795
        %vm1803 = vmor %vm1801, %vm1802
        %v1804 = vsel %vm1803, %v1795, %v1800
        %v1805 = vrsqrt.pop %v1708
        %v1806 = vmul.f32 %v1805, %v1708
        %v1807 = vmul.f32 %v1806, %v1805
        %v1808 = vmul.f32 0.5, %v1807
        %v1809 = vsub.f32 1.5, %v1808
        %v1810 = vmul.f32 %v1805, %v1809
        %vm1811 = vweird.f32 %v1708
        %vm1812 = vweird.f32 %v1805
        %vm1813 = vmor %vm1811, %vm1812
        %v1814 = vsel %vm1813, %v1805, %v1810
        %v1815 = vrsqrt.pop %v1709
        %v1816 = vmul.f32 %v1815, %v1709
        %v1817 = vmul.f32 %v1816, %v1815
        %v1818 = vmul.f32 0.5, %v1817
        %v1819 = vsub.f32 1.5, %v1818
        %v1820 = vmul.f32 %v1815, %v1819
        %vm1821 = vweird.f32 %v1709
        %vm1822 = vweird.f32 %v1815
        %vm1823 = vmor %vm1821, %vm1822
        %v1824 = vsel %vm1823, %v1815, %v1820
        %v1825 = vrsqrt.pop %v1710
        %v1826 = vmul.f32 %v1825, %v1710
        %v1827 = vmul.f32 %v1826, %v1825
        %v1828 = vmul.f32 0.5, %v1827
        %v1829 = vsub.f32 1.5, %v1828
        %v1830 = vmul.f32 %v1825, %v1829
        %vm1831 = vweird.f32 %v1710
        %vm1832 = vweird.f32 %v1825
        %vm1833 = vmor %vm1831, %vm1832
        %v1834 = vsel %vm1833, %v1825, %v1830
        %v1835 = vrsqrt.pop %v1711
        %v1836 = vmul.f32 %v1835, %v1711
        %v1837 = vmul.f32 %v1836, %v1835
        %v1838 = vmul.f32 0.5, %v1837
        %v1839 = vsub.f32 1.5, %v1838
        %v1840 = vmul.f32 %v1835, %v1839
        %vm1841 = vweird.f32 %v1711
        %vm1842 = vweird.f32 %v1835
        %vm1843 = vmor %vm1841, %vm1842
        %v1844 = vsel %vm1843, %v1835, %v1840
        %v1845 = vrsqrt.pop %v1712
        %v1846 = vmul.f32 %v1845, %v1712
        %v1847 = vmul.f32 %v1846, %v1845
        %v1848 = vmul.f32 0.5, %v1847
        %v1849 = vsub.f32 1.5, %v1848
        %v1850 = vmul.f32 %v1845, %v1849
        %vm1851 = vweird.f32 %v1712
        %vm1852 = vweird.f32 %v1845
        %vm1853 = vmor %vm1851, %vm1852
        %v1854 = vsel %vm1853, %v1845, %v1850
        %v1855 = vrsqrt.pop %v1713
        %v1856 = vmul.f32 %v1855, %v1713
        %v1857 = vmul.f32 %v1856, %v1855
        %v1858 = vmul.f32 0.5, %v1857
        %v1859 = vsub.f32 1.5, %v1858
        %v1860 = vmul.f32 %v1855, %v1859
        %vm1861 = vweird.f32 %v1713
        %vm1862 = vweird.f32 %v1855
        %vm1863 = vmor %vm1861, %vm1862
        %v1864 = vsel %vm1863, %v1855, %v1860
        %v1865 = vrsqrt.pop %v1714
        %v1866 = vmul.f32 %v1865, %v1714
        %v1867 = vmul.f32 %v1866, %v1865
        %v1868 = vmul.f32 0.5, %v1867
        %v1869 = vsub.f32 1.5, %v1868
        %v1870 = vmul.f32 %v1865, %v1869
        %vm1871 = vweird.f32 %v1714
        %vm1872 = vweird.f32 %v1865
        %vm1873 = vmor %vm1871, %vm1872
        %v1874 = vsel %vm1873, %v1865, %v1870
        %v1875 = vmul.f32 %v1317, %v1724
        %v1876 = vmul.f32 %v1319, %v1734
        %v1877 = vmul.f32 %v1322, %v1744
        %v1878 = vmul.f32 %v1324, %v1754
        %v1879 = vmul.f32 %v1327, %v1764
        %v1880 = vmul.f32 %v1329, %v1774
        %v1881 = vmul.f32 %v1332, %v1784
        %v1882 = vmul.f32 %v1334, %v1794
        %v1883 = vmul.f32 %v1337, %v1804
        %v1884 = vmul.f32 %v1339, %v1814
        %v1885 = vmul.f32 %v1342, %v1824
        %v1886 = vmul.f32 %v1344, %v1834
        %v1887 = vmul.f32 %v1347, %v1844
        %v1888 = vmul.f32 %v1349, %v1854
        %v1889 = vmul.f32 %v1352, %v1864
        %v1890 = vmul.f32 %v1354, %v1874
        %v1891 = vmul.f32 %v1415, %v1415
        %v1892 = vmul.f32 %v1417, %v1417
        %v1893 = vmul.f32 %v1420, %v1420
        %v1894 = vmul.f32 %v1422, %v1422
        %v1895 = vmul.f32 %v1425, %v1425
        %v1896 = vmul.f32 %v1427, %v1427
        %v1897 = vmul.f32 %v1430, %v1430
        %v1898 = vmul.f32 %v1432, %v1432
        %v1899 = vmul.f32 %v1435, %v1435
        %v1900 = vmul.f32 %v1437, %v1437
        %v1901 = vmul.f32 %v1440, %v1440
        %v1902 = vmul.f32 %v1442, %v1442
        %v1903 = vmul.f32 %v1445, %v1445
        %v1904 = vmul.f32 %v1447, %v1447
        %v1905 = vmul.f32 %v1450, %v1450
        %v1906 = vmul.f32 %v1452, %v1452
        %1907 = vadd.xlane.f32.xlu0 %v1891
        %v1908 = vpop.xlane.xlu0 %1907
        %1909 = vadd.xlane.f32.xlu0 %v1892
        %v1910 = vpop.xlane.xlu0 %1909
        %1911 = vadd.xlane.f32.xlu0 %v1893
        %v1912 = vpop.xlane.xlu0 %1911
        %1913 = vadd.xlane.f32.xlu0 %v1894
        %v1914 = vpop.xlane.xlu0 %1913
        %1915 = vadd.xlane.f32.xlu0 %v1895
        %v1916 = vpop.xlane.xlu0 %1915
        %1917 = vadd.xlane.f32.xlu0 %v1896
        %v1918 = vpop.xlane.xlu0 %1917
        %1919 = vadd.xlane.f32.xlu0 %v1897
        %v1920 = vpop.xlane.xlu0 %1919
        %1921 = vadd.xlane.f32.xlu0 %v1898
        %v1922 = vpop.xlane.xlu0 %1921
        %1923 = vadd.xlane.f32.xlu0 %v1899
        %v1924 = vpop.xlane.xlu0 %1923
        %1925 = vadd.xlane.f32.xlu0 %v1900
        %v1926 = vpop.xlane.xlu0 %1925
        %1927 = vadd.xlane.f32.xlu0 %v1901
        %v1928 = vpop.xlane.xlu0 %1927
        %1929 = vadd.xlane.f32.xlu0 %v1902
        %v1930 = vpop.xlane.xlu0 %1929
        %1931 = vadd.xlane.f32.xlu0 %v1903
        %v1932 = vpop.xlane.xlu0 %1931
        %1933 = vadd.xlane.f32.xlu0 %v1904
        %v1934 = vpop.xlane.xlu0 %1933
        %1935 = vadd.xlane.f32.xlu0 %v1905
        %v1936 = vpop.xlane.xlu0 %1935
        %1937 = vadd.xlane.f32.xlu0 %v1906
        %v1938 = vpop.xlane.xlu0 %1937
        %v1939 = vmul.f32 %v1908, %v802
        %v1940 = vmul.f32 %v1910, %v802
        %v1941 = vmul.f32 %v1912, %v802
        %v1942 = vmul.f32 %v1914, %v802
        %v1943 = vmul.f32 %v1916, %v802
        %v1944 = vmul.f32 %v1918, %v802
        %v1945 = vmul.f32 %v1920, %v802
        %v1946 = vmul.f32 %v1922, %v802
        %v1947 = vmul.f32 %v1924, %v802
        %v1948 = vmul.f32 %v1926, %v802
        %v1949 = vmul.f32 %v1928, %v802
        %v1950 = vmul.f32 %v1930, %v802
        %v1951 = vmul.f32 %v1932, %v802
        %v1952 = vmul.f32 %v1934, %v802
        %v1953 = vmul.f32 %v1936, %v802
        %v1954 = vmul.f32 %v1938, %v802
        %v1955 = vadd.f32 %v1939, 1.1920929e-07
        %v1956 = vadd.f32 %v1940, 1.1920929e-07
        %v1957 = vadd.f32 %v1941, 1.1920929e-07
        %v1958 = vadd.f32 %v1942, 1.1920929e-07
        %v1959 = vadd.f32 %v1943, 1.1920929e-07
        %v1960 = vadd.f32 %v1944, 1.1920929e-07
        %v1961 = vadd.f32 %v1945, 1.1920929e-07
        %v1962 = vadd.f32 %v1946, 1.1920929e-07
        %v1963 = vadd.f32 %v1947, 1.1920929e-07
        %v1964 = vadd.f32 %v1948, 1.1920929e-07
        %v1965 = vadd.f32 %v1949, 1.1920929e-07
        %v1966 = vadd.f32 %v1950, 1.1920929e-07
        %v1967 = vadd.f32 %v1951, 1.1920929e-07
        %v1968 = vadd.f32 %v1952, 1.1920929e-07
        %v1969 = vadd.f32 %v1953, 1.1920929e-07
        %v1970 = vadd.f32 %v1954, 1.1920929e-07
        %v1971 = vrsqrt.pop %v1955
        %v1972 = vmul.f32 %v1971, %v1955
        %v1973 = vmul.f32 %v1972, %v1971
        %v1974 = vmul.f32 0.5, %v1973
        %v1975 = vsub.f32 1.5, %v1974
        %v1976 = vmul.f32 %v1971, %v1975
        %vm1977 = vweird.f32 %v1955
        %vm1978 = vweird.f32 %v1971
        %vm1979 = vmor %vm1977, %vm1978
        %v1980 = vsel %vm1979, %v1971, %v1976
        %v1981 = vrsqrt.pop %v1956
        %v1982 = vmul.f32 %v1981, %v1956
        %v1983 = vmul.f32 %v1982, %v1981
        %v1984 = vmul.f32 0.5, %v1983
        %v1985 = vsub.f32 1.5, %v1984
        %v1986 = vmul.f32 %v1981, %v1985
        %vm1987 = vweird.f32 %v1956
        %vm1988 = vweird.f32 %v1981
        %vm1989 = vmor %vm1987, %vm1988
        %v1990 = vsel %vm1989, %v1981, %v1986
        %v1991 = vrsqrt.pop %v1957
        %v1992 = vmul.f32 %v1991, %v1957
        %v1993 = vmul.f32 %v1992, %v1991
        %v1994 = vmul.f32 0.5, %v1993
        %v1995 = vsub.f32 1.5, %v1994
        %v1996 = vmul.f32 %v1991, %v1995
        %vm1997 = vweird.f32 %v1957
        %vm1998 = vweird.f32 %v1991
        %vm1999 = vmor %vm1997, %vm1998
        %v2000 = vsel %vm1999, %v1991, %v1996
        %v2001 = vrsqrt.pop %v1958
        %v2002 = vmul.f32 %v2001, %v1958
        %v2003 = vmul.f32 %v2002, %v2001
        %v2004 = vmul.f32 0.5, %v2003
        %v2005 = vsub.f32 1.5, %v2004
        %v2006 = vmul.f32 %v2001, %v2005
        %vm2007 = vweird.f32 %v1958
        %vm2008 = vweird.f32 %v2001
        %vm2009 = vmor %vm2007, %vm2008
        %v2010 = vsel %vm2009, %v2001, %v2006
        %v2011 = vrsqrt.pop %v1959
        %v2012 = vmul.f32 %v2011, %v1959
        %v2013 = vmul.f32 %v2012, %v2011
        %v2014 = vmul.f32 0.5, %v2013
        %v2015 = vsub.f32 1.5, %v2014
        %v2016 = vmul.f32 %v2011, %v2015
        %vm2017 = vweird.f32 %v1959
        %vm2018 = vweird.f32 %v2011
        %vm2019 = vmor %vm2017, %vm2018
        %v2020 = vsel %vm2019, %v2011, %v2016
        %v2021 = vrsqrt.pop %v1960
        %v2022 = vmul.f32 %v2021, %v1960
        %v2023 = vmul.f32 %v2022, %v2021
        %v2024 = vmul.f32 0.5, %v2023
        %v2025 = vsub.f32 1.5, %v2024
        %v2026 = vmul.f32 %v2021, %v2025
        %vm2027 = vweird.f32 %v1960
        %vm2028 = vweird.f32 %v2021
        %vm2029 = vmor %vm2027, %vm2028
        %v2030 = vsel %vm2029, %v2021, %v2026
        %v2031 = vrsqrt.pop %v1961
        %v2032 = vmul.f32 %v2031, %v1961
        %v2033 = vmul.f32 %v2032, %v2031
        %v2034 = vmul.f32 0.5, %v2033
        %v2035 = vsub.f32 1.5, %v2034
        %v2036 = vmul.f32 %v2031, %v2035
        %vm2037 = vweird.f32 %v1961
        %vm2038 = vweird.f32 %v2031
        %vm2039 = vmor %vm2037, %vm2038
        %v2040 = vsel %vm2039, %v2031, %v2036
        %v2041 = vrsqrt.pop %v1962
        %v2042 = vmul.f32 %v2041, %v1962
        %v2043 = vmul.f32 %v2042, %v2041
        %v2044 = vmul.f32 0.5, %v2043
        %v2045 = vsub.f32 1.5, %v2044
        %v2046 = vmul.f32 %v2041, %v2045
        %vm2047 = vweird.f32 %v1962
        %vm2048 = vweird.f32 %v2041
        %vm2049 = vmor %vm2047, %vm2048
        %v2050 = vsel %vm2049, %v2041, %v2046
        %v2051 = vrsqrt.pop %v1963
        %v2052 = vmul.f32 %v2051, %v1963
        %v2053 = vmul.f32 %v2052, %v2051
        %v2054 = vmul.f32 0.5, %v2053
        %v2055 = vsub.f32 1.5, %v2054
        %v2056 = vmul.f32 %v2051, %v2055
        %vm2057 = vweird.f32 %v1963
        %vm2058 = vweird.f32 %v2051
        %vm2059 = vmor %vm2057, %vm2058
        %v2060 = vsel %vm2059, %v2051, %v2056
        %v2061 = vrsqrt.pop %v1964
        %v2062 = vmul.f32 %v2061, %v1964
        %v2063 = vmul.f32 %v2062, %v2061
        %v2064 = vmul.f32 0.5, %v2063
        %v2065 = vsub.f32 1.5, %v2064
        %v2066 = vmul.f32 %v2061, %v2065
        %vm2067 = vweird.f32 %v1964
        %vm2068 = vweird.f32 %v2061
        %vm2069 = vmor %vm2067, %vm2068
        %v2070 = vsel %vm2069, %v2061, %v2066
        %v2071 = vrsqrt.pop %v1965
        %v2072 = vmul.f32 %v2071, %v1965
        %v2073 = vmul.f32 %v2072, %v2071
        %v2074 = vmul.f32 0.5, %v2073
        %v2075 = vsub.f32 1.5, %v2074
        %v2076 = vmul.f32 %v2071, %v2075
        %vm2077 = vweird.f32 %v1965
        %vm2078 = vweird.f32 %v2071
        %vm2079 = vmor %vm2077, %vm2078
        %v2080 = vsel %vm2079, %v2071, %v2076
        %v2081 = vrsqrt.pop %v1966
        %v2082 = vmul.f32 %v2081, %v1966
        %v2083 = vmul.f32 %v2082, %v2081
        %v2084 = vmul.f32 0.5, %v2083
        %v2085 = vsub.f32 1.5, %v2084
        %v2086 = vmul.f32 %v2081, %v2085
        %vm2087 = vweird.f32 %v1966
        %vm2088 = vweird.f32 %v2081
        %vm2089 = vmor %vm2087, %vm2088
        %v2090 = vsel %vm2089, %v2081, %v2086
        %v2091 = vrsqrt.pop %v1967
        %v2092 = vmul.f32 %v2091, %v1967
        %v2093 = vmul.f32 %v2092, %v2091
        %v2094 = vmul.f32 0.5, %v2093
        %v2095 = vsub.f32 1.5, %v2094
        %v2096 = vmul.f32 %v2091, %v2095
        %vm2097 = vweird.f32 %v1967
        %vm2098 = vweird.f32 %v2091
        %vm2099 = vmor %vm2097, %vm2098
        %v2100 = vsel %vm2099, %v2091, %v2096
        %v2101 = vrsqrt.pop %v1968
        %v2102 = vmul.f32 %v2101, %v1968
        %v2103 = vmul.f32 %v2102, %v2101
        %v2104 = vmul.f32 0.5, %v2103
        %v2105 = vsub.f32 1.5, %v2104
        %v2106 = vmul.f32 %v2101, %v2105
        %vm2107 = vweird.f32 %v1968
        %vm2108 = vweird.f32 %v2101
        %vm2109 = vmor %vm2107, %vm2108
        %v2110 = vsel %vm2109, %v2101, %v2106
        %v2111 = vrsqrt.pop %v1969
        %v2112 = vmul.f32 %v2111, %v1969
        %v2113 = vmul.f32 %v2112, %v2111
        %v2114 = vmul.f32 0.5, %v2113
        %v2115 = vsub.f32 1.5, %v2114
        %v2116 = vmul.f32 %v2111, %v2115
        %vm2117 = vweird.f32 %v1969
        %vm2118 = vweird.f32 %v2111
        %vm2119 = vmor %vm2117, %vm2118
        %v2120 = vsel %vm2119, %v2111, %v2116
        %v2121 = vrsqrt.pop %v1970
        %v2122 = vmul.f32 %v2121, %v1970
        %v2123 = vmul.f32 %v2122, %v2121
        %v2124 = vmul.f32 0.5, %v2123
        %v2125 = vsub.f32 1.5, %v2124
        %v2126 = vmul.f32 %v2121, %v2125
        %vm2127 = vweird.f32 %v1970
        %vm2128 = vweird.f32 %v2121
        %vm2129 = vmor %vm2127, %vm2128
        %v2130 = vsel %vm2129, %v2121, %v2126
        %v2131 = vmul.f32 %v1415, %v1980
        %v2132 = vmul.f32 %v1417, %v1990
        %v2133 = vmul.f32 %v1420, %v2000
        %v2134 = vmul.f32 %v1422, %v2010
        %v2135 = vmul.f32 %v1425, %v2020
        %v2136 = vmul.f32 %v1427, %v2030
        %v2137 = vmul.f32 %v1430, %v2040
        %v2138 = vmul.f32 %v1432, %v2050
        %v2139 = vmul.f32 %v1435, %v2060
        %v2140 = vmul.f32 %v1437, %v2070
        %v2141 = vmul.f32 %v1440, %v2080
        %v2142 = vmul.f32 %v1442, %v2090
        %v2143 = vmul.f32 %v1445, %v2100
        %v2144 = vmul.f32 %v1447, %v2110
        %v2145 = vmul.f32 %v1450, %v2120
        %v2146 = vmul.f32 %v1452, %v2130
        %v2147 = vmul.f32 %v1875, %v1601
        %v2148 = vmul.f32 %v1876, %v1602
        %v2149 = vmul.f32 %v1877, %v1603
        %v2150 = vmul.f32 %v1878, %v1604
        %v2151 = vmul.f32 %v1879, %v1605
        %v2152 = vmul.f32 %v1880, %v1606
        %v2153 = vmul.f32 %v1881, %v1607
        %v2154 = vmul.f32 %v1882, %v1608
        %v2155 = vmul.f32 %v1883, %v1609
        %v2156 = vmul.f32 %v1884, %v1610
        %v2157 = vmul.f32 %v1885, %v1611
        %v2158 = vmul.f32 %v1886, %v1612
        %v2159 = vmul.f32 %v1887, %v1613
        %v2160 = vmul.f32 %v1888, %v1614
        %v2161 = vmul.f32 %v1889, %v1615
        %v2162 = vmul.f32 %v1890, %v1616
        %2163 = vrot.lane.b32.xlu0 %v1875, 64
        %v2164 = vpop.permute.xlu0 %2163
        %2165 = vrot.lane.b32.xlu0 %v1876, 64
        %v2166 = vpop.permute.xlu0 %2165
        %2167 = vrot.lane.b32.xlu0 %v1877, 64
        %v2168 = vpop.permute.xlu0 %2167
        %2169 = vrot.lane.b32.xlu0 %v1878, 64
        %v2170 = vpop.permute.xlu0 %2169
        %2171 = vrot.lane.b32.xlu0 %v1879, 64
        %v2172 = vpop.permute.xlu0 %2171
        %2173 = vrot.lane.b32.xlu0 %v1880, 64
        %v2174 = vpop.permute.xlu0 %2173
        %2175 = vrot.lane.b32.xlu0 %v1881, 64
        %v2176 = vpop.permute.xlu0 %2175
        %2177 = vrot.lane.b32.xlu0 %v1882, 64
        %v2178 = vpop.permute.xlu0 %2177
        %2179 = vrot.lane.b32.xlu0 %v1883, 64
        %v2180 = vpop.permute.xlu0 %2179
        %2181 = vrot.lane.b32.xlu0 %v1884, 64
        %v2182 = vpop.permute.xlu0 %2181
        %2183 = vrot.lane.b32.xlu0 %v1885, 64
        %v2184 = vpop.permute.xlu0 %2183
        %2185 = vrot.lane.b32.xlu0 %v1886, 64
        %v2186 = vpop.permute.xlu0 %2185
        %2187 = vrot.lane.b32.xlu0 %v1887, 64
        %v2188 = vpop.permute.xlu0 %2187
        %2189 = vrot.lane.b32.xlu0 %v1888, 64
        %v2190 = vpop.permute.xlu0 %2189
        %2191 = vrot.lane.b32.xlu0 %v1889, 64
        %v2192 = vpop.permute.xlu0 %2191
        %2193 = vrot.lane.b32.xlu0 %v1890, 64
        %v2194 = vpop.permute.xlu0 %2193
        %v2195 = vmul.f32 %v2164, %v1617
        %v2196 = vmul.f32 %v2166, %v1618
        %v2197 = vmul.f32 %v2168, %v1619
        %v2198 = vmul.f32 %v2170, %v1620
        %v2199 = vmul.f32 %v2172, %v1621
        %v2200 = vmul.f32 %v2174, %v1622
        %v2201 = vmul.f32 %v2176, %v1623
        %v2202 = vmul.f32 %v2178, %v1624
        %v2203 = vmul.f32 %v2180, %v1625
        %v2204 = vmul.f32 %v2182, %v1626
        %v2205 = vmul.f32 %v2184, %v1627
        %v2206 = vmul.f32 %v2186, %v1628
        %v2207 = vmul.f32 %v2188, %v1629
        %v2208 = vmul.f32 %v2190, %v1630
        %v2209 = vmul.f32 %v2192, %v1631
        %v2210 = vmul.f32 %v2194, %v1632
        %v2211 = vadd.f32 %v2147, %v2195
        %v2212 = vadd.f32 %v2148, %v2196
        %v2213 = vadd.f32 %v2149, %v2197
        %v2214 = vadd.f32 %v2150, %v2198
        %v2215 = vadd.f32 %v2151, %v2199
        %v2216 = vadd.f32 %v2152, %v2200
        %v2217 = vadd.f32 %v2153, %v2201
        %v2218 = vadd.f32 %v2154, %v2202
        %v2219 = vadd.f32 %v2155, %v2203
        %v2220 = vadd.f32 %v2156, %v2204
        %v2221 = vadd.f32 %v2157, %v2205
        %v2222 = vadd.f32 %v2158, %v2206
        %v2223 = vadd.f32 %v2159, %v2207
        %v2224 = vadd.f32 %v2160, %v2208
        %v2225 = vadd.f32 %v2161, %v2209
        %v2226 = vadd.f32 %v2162, %v2210
        %v2227 = vmul.f32 %v2131, %v1601
        %v2228 = vmul.f32 %v2132, %v1602
        %v2229 = vmul.f32 %v2133, %v1603
        %v2230 = vmul.f32 %v2134, %v1604
        %v2231 = vmul.f32 %v2135, %v1605
        %v2232 = vmul.f32 %v2136, %v1606
        %v2233 = vmul.f32 %v2137, %v1607
        %v2234 = vmul.f32 %v2138, %v1608
        %v2235 = vmul.f32 %v2139, %v1609
        %v2236 = vmul.f32 %v2140, %v1610
        %v2237 = vmul.f32 %v2141, %v1611
        %v2238 = vmul.f32 %v2142, %v1612
        %v2239 = vmul.f32 %v2143, %v1613
        %v2240 = vmul.f32 %v2144, %v1614
        %v2241 = vmul.f32 %v2145, %v1615
        %v2242 = vmul.f32 %v2146, %v1616
        %2243 = vrot.lane.b32.xlu0 %v2131, 64
        %v2244 = vpop.permute.xlu0 %2243
        %2245 = vrot.lane.b32.xlu0 %v2132, 64
        %v2246 = vpop.permute.xlu0 %2245
        %2247 = vrot.lane.b32.xlu0 %v2133, 64
        %v2248 = vpop.permute.xlu0 %2247
        %2249 = vrot.lane.b32.xlu0 %v2134, 64
        %v2250 = vpop.permute.xlu0 %2249
        %2251 = vrot.lane.b32.xlu0 %v2135, 64
        %v2252 = vpop.permute.xlu0 %2251
        %2253 = vrot.lane.b32.xlu0 %v2136, 64
        %v2254 = vpop.permute.xlu0 %2253
        %2255 = vrot.lane.b32.xlu0 %v2137, 64
        %v2256 = vpop.permute.xlu0 %2255
        %2257 = vrot.lane.b32.xlu0 %v2138, 64
        %v2258 = vpop.permute.xlu0 %2257
        %2259 = vrot.lane.b32.xlu0 %v2139, 64
        %v2260 = vpop.permute.xlu0 %2259
        %2261 = vrot.lane.b32.xlu0 %v2140, 64
        %v2262 = vpop.permute.xlu0 %2261
        %2263 = vrot.lane.b32.xlu0 %v2141, 64
        %v2264 = vpop.permute.xlu0 %2263
        %2265 = vrot.lane.b32.xlu0 %v2142, 64
        %v2266 = vpop.permute.xlu0 %2265
        %2267 = vrot.lane.b32.xlu0 %v2143, 64
        %v2268 = vpop.permute.xlu0 %2267
        %2269 = vrot.lane.b32.xlu0 %v2144, 64
        %v2270 = vpop.permute.xlu0 %2269
        %2271 = vrot.lane.b32.xlu0 %v2145, 64
        %v2272 = vpop.permute.xlu0 %2271
        %2273 = vrot.lane.b32.xlu0 %v2146, 64
        %v2274 = vpop.permute.xlu0 %2273
        %v2275 = vmul.f32 %v2244, %v1617
        %v2276 = vmul.f32 %v2246, %v1618
        %v2277 = vmul.f32 %v2248, %v1619
        %v2278 = vmul.f32 %v2250, %v1620
        %v2279 = vmul.f32 %v2252, %v1621
        %v2280 = vmul.f32 %v2254, %v1622
        %v2281 = vmul.f32 %v2256, %v1623
        %v2282 = vmul.f32 %v2258, %v1624
        %v2283 = vmul.f32 %v2260, %v1625
        %v2284 = vmul.f32 %v2262, %v1626
        %v2285 = vmul.f32 %v2264, %v1627
        %v2286 = vmul.f32 %v2266, %v1628
        %v2287 = vmul.f32 %v2268, %v1629
        %v2288 = vmul.f32 %v2270, %v1630
        %v2289 = vmul.f32 %v2272, %v1631
        %v2290 = vmul.f32 %v2274, %v1632
        %v2291 = vadd.f32 %v2227, %v2275
        %v2292 = vadd.f32 %v2228, %v2276
        %v2293 = vadd.f32 %v2229, %v2277
        %v2294 = vadd.f32 %v2230, %v2278
        %v2295 = vadd.f32 %v2231, %v2279
        %v2296 = vadd.f32 %v2232, %v2280
        %v2297 = vadd.f32 %v2233, %v2281
        %v2298 = vadd.f32 %v2234, %v2282
        %v2299 = vadd.f32 %v2235, %v2283
        %v2300 = vadd.f32 %v2236, %v2284
        %v2301 = vadd.f32 %v2237, %v2285
        %v2302 = vadd.f32 %v2238, %v2286
        %v2303 = vadd.f32 %v2239, %v2287
        %v2304 = vadd.f32 %v2240, %v2288
        %v2305 = vadd.f32 %v2241, %v2289
        %v2306 = vadd.f32 %v2242, %v2290
        %v2307 = vmul.f32 %v2211, 0.12
        %v2308 = vmul.f32 %v2212, 0.12
        %v2309 = vmul.f32 %v2213, 0.12
        %v2310 = vmul.f32 %v2214, 0.12
        %v2311 = vmul.f32 %v2215, 0.12
        %v2312 = vmul.f32 %v2216, 0.12
        %v2313 = vmul.f32 %v2217, 0.12
        %v2314 = vmul.f32 %v2218, 0.12
        %v2315 = vmul.f32 %v2219, 0.12
        %v2316 = vmul.f32 %v2220, 0.12
        %v2317 = vmul.f32 %v2221, 0.12
        %v2318 = vmul.f32 %v2222, 0.12
        %v2319 = vmul.f32 %v2223, 0.12
        %v2320 = vmul.f32 %v2224, 0.12
        %v2321 = vmul.f32 %v2225, 0.12
        %v2322 = vmul.f32 %v2226, 0.12
        %v2323 = vpack.c.bf16 %v2307, %v2307
        %v2324 = vpack.c.bf16 %v2308, %v2308
        %v2325 = vpack.c.bf16 %v2309, %v2309
        %v2326 = vpack.c.bf16 %v2310, %v2310
        %v2327 = vpack.c.bf16 %v2311, %v2311
        %v2328 = vpack.c.bf16 %v2312, %v2312
        %v2329 = vpack.c.bf16 %v2313, %v2313
        %v2330 = vpack.c.bf16 %v2314, %v2314
        %v2331 = vpack.c.bf16 %v2315, %v2315
        %v2332 = vpack.c.bf16 %v2316, %v2316
        %v2333 = vpack.c.bf16 %v2317, %v2317
        %v2334 = vpack.c.bf16 %v2318, %v2318
        %v2335 = vpack.c.bf16 %v2319, %v2319
        %v2336 = vpack.c.bf16 %v2320, %v2320
        %v2337 = vpack.c.bf16 %v2321, %v2321
        %v2338 = vpack.c.bf16 %v2322, %v2322
        %2339 = vst [vmem:[%s624] sm:$0xf] %v2323
        %2340 = vst [vmem:[%s624 + $0x8] sm:$0xf] %v2324
        %2341 = vst [vmem:[%s624 + $0x10] sm:$0xf] %v2325
        %2342 = vst [vmem:[%s624 + $0x18] sm:$0xf] %v2326
        %2343 = vst [vmem:[%s624 + $0x20] sm:$0xf] %v2327
        %2344 = vst [vmem:[%s624 + $0x28] sm:$0xf] %v2328
        %2345 = vst [vmem:[%s624 + $0x30] sm:$0xf] %v2329
        %2346 = vst [vmem:[%s624 + $0x38] sm:$0xf] %v2330
        %2347 = vst [vmem:[%s624 + $0x40] sm:$0xf] %v2331
        %2348 = vst [vmem:[%s624 + $0x48] sm:$0xf] %v2332
        %2349 = vst [vmem:[%s624 + $0x50] sm:$0xf] %v2333
        %2350 = vst [vmem:[%s624 + $0x58] sm:$0xf] %v2334
        %2351 = vst [vmem:[%s624 + $0x60] sm:$0xf] %v2335
        %2352 = vst [vmem:[%s624 + $0x68] sm:$0xf] %v2336
        %2353 = vst [vmem:[%s624 + $0x70] sm:$0xf] %v2337
        %2354 = vst [vmem:[%s624 + $0x78] sm:$0xf] %v2338
        %v2355 = vpack.c.bf16 %v2291, %v2291
        %v2356 = vpack.c.bf16 %v2292, %v2292
        %v2357 = vpack.c.bf16 %v2293, %v2293
        %v2358 = vpack.c.bf16 %v2294, %v2294
        %v2359 = vpack.c.bf16 %v2295, %v2295
        %v2360 = vpack.c.bf16 %v2296, %v2296
        %v2361 = vpack.c.bf16 %v2297, %v2297
        %v2362 = vpack.c.bf16 %v2298, %v2298
        %v2363 = vpack.c.bf16 %v2299, %v2299
        %v2364 = vpack.c.bf16 %v2300, %v2300
        %v2365 = vpack.c.bf16 %v2301, %v2301
        %v2366 = vpack.c.bf16 %v2302, %v2302
        %v2367 = vpack.c.bf16 %v2303, %v2303
        %v2368 = vpack.c.bf16 %v2304, %v2304
        %v2369 = vpack.c.bf16 %v2305, %v2305
        %v2370 = vpack.c.bf16 %v2306, %v2306
        %2371 = vst [vmem:[%s631] sm:$0xf] %v2355
        %2372 = vst [vmem:[%s631 + $0x8] sm:$0xf] %v2356
        %2373 = vst [vmem:[%s631 + $0x10] sm:$0xf] %v2357
        %2374 = vst [vmem:[%s631 + $0x18] sm:$0xf] %v2358
        %2375 = vst [vmem:[%s631 + $0x20] sm:$0xf] %v2359
        %2376 = vst [vmem:[%s631 + $0x28] sm:$0xf] %v2360
        %2377 = vst [vmem:[%s631 + $0x30] sm:$0xf] %v2361
        %2378 = vst [vmem:[%s631 + $0x38] sm:$0xf] %v2362
        %2379 = vst [vmem:[%s631 + $0x40] sm:$0xf] %v2363
        %2380 = vst [vmem:[%s631 + $0x48] sm:$0xf] %v2364
        %2381 = vst [vmem:[%s631 + $0x50] sm:$0xf] %v2365
        %2382 = vst [vmem:[%s631 + $0x58] sm:$0xf] %v2366
        %2383 = vst [vmem:[%s631 + $0x60] sm:$0xf] %v2367
        %2384 = vst [vmem:[%s631 + $0x68] sm:$0xf] %v2368
        %2385 = vst [vmem:[%s631 + $0x70] sm:$0xf] %v2369
        %2386 = vst [vmem:[%s631 + $0x78] sm:$0xf] %v2370
        %v2387 = vstv %s1633
        %v2388 = vmul.f32 %v2387, %v1513
        %v2389 = vmul.f32 %v2387, %v1515
        %v2390 = vmul.f32 %v2387, %v1518
        %v2391 = vmul.f32 %v2387, %v1520
        %v2392 = vmul.f32 %v2387, %v1523
        %v2393 = vmul.f32 %v2387, %v1525
        %v2394 = vmul.f32 %v2387, %v1528
        %v2395 = vmul.f32 %v2387, %v1530
        %v2396 = vmul.f32 %v2387, %v1533
        %v2397 = vmul.f32 %v2387, %v1535
        %v2398 = vmul.f32 %v2387, %v1538
        %v2399 = vmul.f32 %v2387, %v1540
        %v2400 = vmul.f32 %v2387, %v1543
        %v2401 = vmul.f32 %v2387, %v1545
        %v2402 = vmul.f32 %v2387, %v1548
        %v2403 = vmul.f32 %v2387, %v1550
        %v2404 = vld [vmem:[%s538] sm:$0xff]
        %v2405 = vld [vmem:[%s538 + $0x10] sm:$0xff]
        %v2406 = vld [vmem:[%s538 + $0x20] sm:$0xff]
        %v2407 = vld [vmem:[%s538 + $0x30] sm:$0xff]
        %v2408 = vld [vmem:[%s538 + $0x40] sm:$0xff]
        %v2409 = vld [vmem:[%s538 + $0x50] sm:$0xff]
        %v2410 = vld [vmem:[%s538 + $0x60] sm:$0xff]
        %v2411 = vld [vmem:[%s538 + $0x70] sm:$0xff]
        %v2412 = vld [vmem:[%s538 + $0x80] sm:$0xff]
        %v2413 = vld [vmem:[%s538 + $0x90] sm:$0xff]
        %v2414 = vld [vmem:[%s538 + $0xa0] sm:$0xff]
        %v2415 = vld [vmem:[%s538 + $0xb0] sm:$0xff]
        %v2416 = vld [vmem:[%s538 + $0xc0] sm:$0xff]
        %v2417 = vld [vmem:[%s538 + $0xd0] sm:$0xff]
        %v2418 = vld [vmem:[%s538 + $0xe0] sm:$0xff]
        %v2419 = vld [vmem:[%s538 + $0xf0] sm:$0xff]
        %v2420 = vstv %s1634
        %v2421 = vmul.f32 %v2420, %v2404
        %v2422 = vmul.f32 %v2420, %v2405
        %v2423 = vmul.f32 %v2420, %v2406
        %v2424 = vmul.f32 %v2420, %v2407
        %v2425 = vmul.f32 %v2420, %v2408
        %v2426 = vmul.f32 %v2420, %v2409
        %v2427 = vmul.f32 %v2420, %v2410
        %v2428 = vmul.f32 %v2420, %v2411
        %v2429 = vmul.f32 %v2420, %v2412
        %v2430 = vmul.f32 %v2420, %v2413
        %v2431 = vmul.f32 %v2420, %v2414
        %v2432 = vmul.f32 %v2420, %v2415
        %v2433 = vmul.f32 %v2420, %v2416
        %v2434 = vmul.f32 %v2420, %v2417
        %v2435 = vmul.f32 %v2420, %v2418
        %v2436 = vmul.f32 %v2420, %v2419
        %v2437 = vadd.f32 %v2388, %v2421
        %v2438 = vadd.f32 %v2389, %v2422
        %v2439 = vadd.f32 %v2390, %v2423
        %v2440 = vadd.f32 %v2391, %v2424
        %v2441 = vadd.f32 %v2392, %v2425
        %v2442 = vadd.f32 %v2393, %v2426
        %v2443 = vadd.f32 %v2394, %v2427
        %v2444 = vadd.f32 %v2395, %v2428
        %v2445 = vadd.f32 %v2396, %v2429
        %v2446 = vadd.f32 %v2397, %v2430
        %v2447 = vadd.f32 %v2398, %v2431
        %v2448 = vadd.f32 %v2399, %v2432
        %v2449 = vadd.f32 %v2400, %v2433
        %v2450 = vadd.f32 %v2401, %v2434
        %v2451 = vadd.f32 %v2402, %v2435
        %v2452 = vadd.f32 %v2403, %v2436
        %v2453 = vpack.c.bf16 %v2437, %v2437
        %v2454 = vpack.c.bf16 %v2438, %v2438
        %v2455 = vpack.c.bf16 %v2439, %v2439
        %v2456 = vpack.c.bf16 %v2440, %v2440
        %v2457 = vpack.c.bf16 %v2441, %v2441
        %v2458 = vpack.c.bf16 %v2442, %v2442
        %v2459 = vpack.c.bf16 %v2443, %v2443
        %v2460 = vpack.c.bf16 %v2444, %v2444
        %v2461 = vpack.c.bf16 %v2445, %v2445
        %v2462 = vpack.c.bf16 %v2446, %v2446
        %v2463 = vpack.c.bf16 %v2447, %v2447
        %v2464 = vpack.c.bf16 %v2448, %v2448
        %v2465 = vpack.c.bf16 %v2449, %v2449
        %v2466 = vpack.c.bf16 %v2450, %v2450
        %v2467 = vpack.c.bf16 %v2451, %v2451
        %v2468 = vpack.c.bf16 %v2452, %v2452
        %2469 = vst [vmem:[%s638] sm:$0xf] %v2453
        %2470 = vst [vmem:[%s638 + $0x8] sm:$0xf] %v2454
        %2471 = vst [vmem:[%s638 + $0x10] sm:$0xf] %v2455
        %2472 = vst [vmem:[%s638 + $0x18] sm:$0xf] %v2456
        %2473 = vst [vmem:[%s638 + $0x20] sm:$0xf] %v2457
        %2474 = vst [vmem:[%s638 + $0x28] sm:$0xf] %v2458
        %2475 = vst [vmem:[%s638 + $0x30] sm:$0xf] %v2459
        %2476 = vst [vmem:[%s638 + $0x38] sm:$0xf] %v2460
        %2477 = vst [vmem:[%s638 + $0x40] sm:$0xf] %v2461
        %2478 = vst [vmem:[%s638 + $0x48] sm:$0xf] %v2462
        %2479 = vst [vmem:[%s638 + $0x50] sm:$0xf] %v2463
        %2480 = vst [vmem:[%s638 + $0x58] sm:$0xf] %v2464
        %2481 = vst [vmem:[%s638 + $0x60] sm:$0xf] %v2465
        %2482 = vst [vmem:[%s638 + $0x68] sm:$0xf] %v2466
        %2483 = vst [vmem:[%s638 + $0x70] sm:$0xf] %v2467
        %2484 = vst [vmem:[%s638 + $0x78] sm:$0xf] %v2468
        %v2485 = vmul.f32 %v1366, %v1366
        %v2486 = vmul.f32 %v1368, %v1368
        %v2487 = vmul.f32 %v1371, %v1371
        %v2488 = vmul.f32 %v1373, %v1373
        %v2489 = vmul.f32 %v1376, %v1376
        %v2490 = vmul.f32 %v1378, %v1378
        %v2491 = vmul.f32 %v1381, %v1381
        %v2492 = vmul.f32 %v1383, %v1383
        %v2493 = vmul.f32 %v1386, %v1386
        %v2494 = vmul.f32 %v1388, %v1388
        %v2495 = vmul.f32 %v1391, %v1391
        %v2496 = vmul.f32 %v1393, %v1393
        %v2497 = vmul.f32 %v1396, %v1396
        %v2498 = vmul.f32 %v1398, %v1398
        %v2499 = vmul.f32 %v1401, %v1401
        %v2500 = vmul.f32 %v1403, %v1403
        %2501 = vadd.xlane.f32.xlu0 %v2485
        %v2502 = vpop.xlane.xlu0 %2501
        %2503 = vadd.xlane.f32.xlu0 %v2486
        %v2504 = vpop.xlane.xlu0 %2503
        %2505 = vadd.xlane.f32.xlu0 %v2487
        %v2506 = vpop.xlane.xlu0 %2505
        %2507 = vadd.xlane.f32.xlu0 %v2488
        %v2508 = vpop.xlane.xlu0 %2507
        %2509 = vadd.xlane.f32.xlu0 %v2489
        %v2510 = vpop.xlane.xlu0 %2509
        %2511 = vadd.xlane.f32.xlu0 %v2490
        %v2512 = vpop.xlane.xlu0 %2511
        %2513 = vadd.xlane.f32.xlu0 %v2491
        %v2514 = vpop.xlane.xlu0 %2513
        %2515 = vadd.xlane.f32.xlu0 %v2492
        %v2516 = vpop.xlane.xlu0 %2515
        %2517 = vadd.xlane.f32.xlu0 %v2493
        %v2518 = vpop.xlane.xlu0 %2517
        %2519 = vadd.xlane.f32.xlu0 %v2494
        %v2520 = vpop.xlane.xlu0 %2519
        %2521 = vadd.xlane.f32.xlu0 %v2495
        %v2522 = vpop.xlane.xlu0 %2521
        %2523 = vadd.xlane.f32.xlu0 %v2496
        %v2524 = vpop.xlane.xlu0 %2523
        %2525 = vadd.xlane.f32.xlu0 %v2497
        %v2526 = vpop.xlane.xlu0 %2525
        %2527 = vadd.xlane.f32.xlu0 %v2498
        %v2528 = vpop.xlane.xlu0 %2527
        %2529 = vadd.xlane.f32.xlu0 %v2499
        %v2530 = vpop.xlane.xlu0 %2529
        %2531 = vadd.xlane.f32.xlu0 %v2500
        %v2532 = vpop.xlane.xlu0 %2531
        %v2533 = vmul.f32 %v2502, %v802
        %v2534 = vmul.f32 %v2504, %v802
        %v2535 = vmul.f32 %v2506, %v802
        %v2536 = vmul.f32 %v2508, %v802
        %v2537 = vmul.f32 %v2510, %v802
        %v2538 = vmul.f32 %v2512, %v802
        %v2539 = vmul.f32 %v2514, %v802
        %v2540 = vmul.f32 %v2516, %v802
        %v2541 = vmul.f32 %v2518, %v802
        %v2542 = vmul.f32 %v2520, %v802
        %v2543 = vmul.f32 %v2522, %v802
        %v2544 = vmul.f32 %v2524, %v802
        %v2545 = vmul.f32 %v2526, %v802
        %v2546 = vmul.f32 %v2528, %v802
        %v2547 = vmul.f32 %v2530, %v802
        %v2548 = vmul.f32 %v2532, %v802
        %v2549 = vadd.f32 %v2533, 1.1920929e-07
        %v2550 = vadd.f32 %v2534, 1.1920929e-07
        %v2551 = vadd.f32 %v2535, 1.1920929e-07
        %v2552 = vadd.f32 %v2536, 1.1920929e-07
        %v2553 = vadd.f32 %v2537, 1.1920929e-07
        %v2554 = vadd.f32 %v2538, 1.1920929e-07
        %v2555 = vadd.f32 %v2539, 1.1920929e-07
        %v2556 = vadd.f32 %v2540, 1.1920929e-07
        %v2557 = vadd.f32 %v2541, 1.1920929e-07
        %v2558 = vadd.f32 %v2542, 1.1920929e-07
        %v2559 = vadd.f32 %v2543, 1.1920929e-07
        %v2560 = vadd.f32 %v2544, 1.1920929e-07
        %v2561 = vadd.f32 %v2545, 1.1920929e-07
        %v2562 = vadd.f32 %v2546, 1.1920929e-07
        %v2563 = vadd.f32 %v2547, 1.1920929e-07
        %v2564 = vadd.f32 %v2548, 1.1920929e-07
        %v2565 = vrsqrt.pop %v2549
        %v2566 = vmul.f32 %v2565, %v2549
        %v2567 = vmul.f32 %v2566, %v2565
        %v2568 = vmul.f32 0.5, %v2567
        %v2569 = vsub.f32 1.5, %v2568
        %v2570 = vmul.f32 %v2565, %v2569
        %vm2571 = vweird.f32 %v2549
        %vm2572 = vweird.f32 %v2565
        %vm2573 = vmor %vm2571, %vm2572
        %v2574 = vsel %vm2573, %v2565, %v2570
        %v2575 = vrsqrt.pop %v2550
        %v2576 = vmul.f32 %v2575, %v2550
        %v2577 = vmul.f32 %v2576, %v2575
        %v2578 = vmul.f32 0.5, %v2577
        %v2579 = vsub.f32 1.5, %v2578
        %v2580 = vmul.f32 %v2575, %v2579
        %vm2581 = vweird.f32 %v2550
        %vm2582 = vweird.f32 %v2575
        %vm2583 = vmor %vm2581, %vm2582
        %v2584 = vsel %vm2583, %v2575, %v2580
        %v2585 = vrsqrt.pop %v2551
        %v2586 = vmul.f32 %v2585, %v2551
        %v2587 = vmul.f32 %v2586, %v2585
        %v2588 = vmul.f32 0.5, %v2587
        %v2589 = vsub.f32 1.5, %v2588
        %v2590 = vmul.f32 %v2585, %v2589
        %vm2591 = vweird.f32 %v2551
        %vm2592 = vweird.f32 %v2585
        %vm2593 = vmor %vm2591, %vm2592
        %v2594 = vsel %vm2593, %v2585, %v2590
        %v2595 = vrsqrt.pop %v2552
        %v2596 = vmul.f32 %v2595, %v2552
        %v2597 = vmul.f32 %v2596, %v2595
        %v2598 = vmul.f32 0.5, %v2597
        %v2599 = vsub.f32 1.5, %v2598
        %v2600 = vmul.f32 %v2595, %v2599
        %vm2601 = vweird.f32 %v2552
        %vm2602 = vweird.f32 %v2595
        %vm2603 = vmor %vm2601, %vm2602
        %v2604 = vsel %vm2603, %v2595, %v2600
        %v2605 = vrsqrt.pop %v2553
        %v2606 = vmul.f32 %v2605, %v2553
        %v2607 = vmul.f32 %v2606, %v2605
        %v2608 = vmul.f32 0.5, %v2607
        %v2609 = vsub.f32 1.5, %v2608
        %v2610 = vmul.f32 %v2605, %v2609
        %vm2611 = vweird.f32 %v2553
        %vm2612 = vweird.f32 %v2605
        %vm2613 = vmor %vm2611, %vm2612
        %v2614 = vsel %vm2613, %v2605, %v2610
        %v2615 = vrsqrt.pop %v2554
        %v2616 = vmul.f32 %v2615, %v2554
        %v2617 = vmul.f32 %v2616, %v2615
        %v2618 = vmul.f32 0.5, %v2617
        %v2619 = vsub.f32 1.5, %v2618
        %v2620 = vmul.f32 %v2615, %v2619
        %vm2621 = vweird.f32 %v2554
        %vm2622 = vweird.f32 %v2615
        %vm2623 = vmor %vm2621, %vm2622
        %v2624 = vsel %vm2623, %v2615, %v2620
        %v2625 = vrsqrt.pop %v2555
        %v2626 = vmul.f32 %v2625, %v2555
        %v2627 = vmul.f32 %v2626, %v2625
        %v2628 = vmul.f32 0.5, %v2627
        %v2629 = vsub.f32 1.5, %v2628
        %v2630 = vmul.f32 %v2625, %v2629
        %vm2631 = vweird.f32 %v2555
        %vm2632 = vweird.f32 %v2625
        %vm2633 = vmor %vm2631, %vm2632
        %v2634 = vsel %vm2633, %v2625, %v2630
        %v2635 = vrsqrt.pop %v2556
        %v2636 = vmul.f32 %v2635, %v2556
        %v2637 = vmul.f32 %v2636, %v2635
        %v2638 = vmul.f32 0.5, %v2637
        %v2639 = vsub.f32 1.5, %v2638
        %v2640 = vmul.f32 %v2635, %v2639
        %vm2641 = vweird.f32 %v2556
        %vm2642 = vweird.f32 %v2635
        %vm2643 = vmor %vm2641, %vm2642
        %v2644 = vsel %vm2643, %v2635, %v2640
        %v2645 = vrsqrt.pop %v2557
        %v2646 = vmul.f32 %v2645, %v2557
        %v2647 = vmul.f32 %v2646, %v2645
        %v2648 = vmul.f32 0.5, %v2647
        %v2649 = vsub.f32 1.5, %v2648
        %v2650 = vmul.f32 %v2645, %v2649
        %vm2651 = vweird.f32 %v2557
        %vm2652 = vweird.f32 %v2645
        %vm2653 = vmor %vm2651, %vm2652
        %v2654 = vsel %vm2653, %v2645, %v2650
        %v2655 = vrsqrt.pop %v2558
        %v2656 = vmul.f32 %v2655, %v2558
        %v2657 = vmul.f32 %v2656, %v2655
        %v2658 = vmul.f32 0.5, %v2657
        %v2659 = vsub.f32 1.5, %v2658
        %v2660 = vmul.f32 %v2655, %v2659
        %vm2661 = vweird.f32 %v2558
        %vm2662 = vweird.f32 %v2655
        %vm2663 = vmor %vm2661, %vm2662
        %v2664 = vsel %vm2663, %v2655, %v2660
        %v2665 = vrsqrt.pop %v2559
        %v2666 = vmul.f32 %v2665, %v2559
        %v2667 = vmul.f32 %v2666, %v2665
        %v2668 = vmul.f32 0.5, %v2667
        %v2669 = vsub.f32 1.5, %v2668
        %v2670 = vmul.f32 %v2665, %v2669
        %vm2671 = vweird.f32 %v2559
        %vm2672 = vweird.f32 %v2665
        %vm2673 = vmor %vm2671, %vm2672
        %v2674 = vsel %vm2673, %v2665, %v2670
        %v2675 = vrsqrt.pop %v2560
        %v2676 = vmul.f32 %v2675, %v2560
        %v2677 = vmul.f32 %v2676, %v2675
        %v2678 = vmul.f32 0.5, %v2677
        %v2679 = vsub.f32 1.5, %v2678
        %v2680 = vmul.f32 %v2675, %v2679
        %vm2681 = vweird.f32 %v2560
        %vm2682 = vweird.f32 %v2675
        %vm2683 = vmor %vm2681, %vm2682
        %v2684 = vsel %vm2683, %v2675, %v2680
        %v2685 = vrsqrt.pop %v2561
        %v2686 = vmul.f32 %v2685, %v2561
        %v2687 = vmul.f32 %v2686, %v2685
        %v2688 = vmul.f32 0.5, %v2687
        %v2689 = vsub.f32 1.5, %v2688
        %v2690 = vmul.f32 %v2685, %v2689
        %vm2691 = vweird.f32 %v2561
        %vm2692 = vweird.f32 %v2685
        %vm2693 = vmor %vm2691, %vm2692
        %v2694 = vsel %vm2693, %v2685, %v2690
        %v2695 = vrsqrt.pop %v2562
        %v2696 = vmul.f32 %v2695, %v2562
        %v2697 = vmul.f32 %v2696, %v2695
        %v2698 = vmul.f32 0.5, %v2697
        %v2699 = vsub.f32 1.5, %v2698
        %v2700 = vmul.f32 %v2695, %v2699
        %vm2701 = vweird.f32 %v2562
        %vm2702 = vweird.f32 %v2695
        %vm2703 = vmor %vm2701, %vm2702
        %v2704 = vsel %vm2703, %v2695, %v2700
        %v2705 = vrsqrt.pop %v2563
        %v2706 = vmul.f32 %v2705, %v2563
        %v2707 = vmul.f32 %v2706, %v2705
        %v2708 = vmul.f32 0.5, %v2707
        %v2709 = vsub.f32 1.5, %v2708
        %v2710 = vmul.f32 %v2705, %v2709
        %vm2711 = vweird.f32 %v2563
        %vm2712 = vweird.f32 %v2705
        %vm2713 = vmor %vm2711, %vm2712
        %v2714 = vsel %vm2713, %v2705, %v2710
        %v2715 = vrsqrt.pop %v2564
        %v2716 = vmul.f32 %v2715, %v2564
        %v2717 = vmul.f32 %v2716, %v2715
        %v2718 = vmul.f32 0.5, %v2717
        %v2719 = vsub.f32 1.5, %v2718
        %v2720 = vmul.f32 %v2715, %v2719
        %vm2721 = vweird.f32 %v2564
        %vm2722 = vweird.f32 %v2715
        %vm2723 = vmor %vm2721, %vm2722
        %v2724 = vsel %vm2723, %v2715, %v2720
        %v2725 = vmul.f32 %v1366, %v2574
        %v2726 = vmul.f32 %v1368, %v2584
        %v2727 = vmul.f32 %v1371, %v2594
        %v2728 = vmul.f32 %v1373, %v2604
        %v2729 = vmul.f32 %v1376, %v2614
        %v2730 = vmul.f32 %v1378, %v2624
        %v2731 = vmul.f32 %v1381, %v2634
        %v2732 = vmul.f32 %v1383, %v2644
        %v2733 = vmul.f32 %v1386, %v2654
        %v2734 = vmul.f32 %v1388, %v2664
        %v2735 = vmul.f32 %v1391, %v2674
        %v2736 = vmul.f32 %v1393, %v2684
        %v2737 = vmul.f32 %v1396, %v2694
        %v2738 = vmul.f32 %v1398, %v2704
        %v2739 = vmul.f32 %v1401, %v2714
        %v2740 = vmul.f32 %v1403, %v2724
        %v2741 = vmul.f32 %v1464, %v1464
        %v2742 = vmul.f32 %v1466, %v1466
        %v2743 = vmul.f32 %v1469, %v1469
        %v2744 = vmul.f32 %v1471, %v1471
        %v2745 = vmul.f32 %v1474, %v1474
        %v2746 = vmul.f32 %v1476, %v1476
        %v2747 = vmul.f32 %v1479, %v1479
        %v2748 = vmul.f32 %v1481, %v1481
        %v2749 = vmul.f32 %v1484, %v1484
        %v2750 = vmul.f32 %v1486, %v1486
        %v2751 = vmul.f32 %v1489, %v1489
        %v2752 = vmul.f32 %v1491, %v1491
        %v2753 = vmul.f32 %v1494, %v1494
        %v2754 = vmul.f32 %v1496, %v1496
        %v2755 = vmul.f32 %v1499, %v1499
        %v2756 = vmul.f32 %v1501, %v1501
        %2757 = vadd.xlane.f32.xlu0 %v2741
        %v2758 = vpop.xlane.xlu0 %2757
        %2759 = vadd.xlane.f32.xlu0 %v2742
        %v2760 = vpop.xlane.xlu0 %2759
        %2761 = vadd.xlane.f32.xlu0 %v2743
        %v2762 = vpop.xlane.xlu0 %2761
        %2763 = vadd.xlane.f32.xlu0 %v2744
        %v2764 = vpop.xlane.xlu0 %2763
        %2765 = vadd.xlane.f32.xlu0 %v2745
        %v2766 = vpop.xlane.xlu0 %2765
        %2767 = vadd.xlane.f32.xlu0 %v2746
        %v2768 = vpop.xlane.xlu0 %2767
        %2769 = vadd.xlane.f32.xlu0 %v2747
        %v2770 = vpop.xlane.xlu0 %2769
        %2771 = vadd.xlane.f32.xlu0 %v2748
        %v2772 = vpop.xlane.xlu0 %2771
        %2773 = vadd.xlane.f32.xlu0 %v2749
        %v2774 = vpop.xlane.xlu0 %2773
        %2775 = vadd.xlane.f32.xlu0 %v2750
        %v2776 = vpop.xlane.xlu0 %2775
        %2777 = vadd.xlane.f32.xlu0 %v2751
        %v2778 = vpop.xlane.xlu0 %2777
        %2779 = vadd.xlane.f32.xlu0 %v2752
        %v2780 = vpop.xlane.xlu0 %2779
        %2781 = vadd.xlane.f32.xlu0 %v2753
        %v2782 = vpop.xlane.xlu0 %2781
        %2783 = vadd.xlane.f32.xlu0 %v2754
        %v2784 = vpop.xlane.xlu0 %2783
        %2785 = vadd.xlane.f32.xlu0 %v2755
        %v2786 = vpop.xlane.xlu0 %2785
        %2787 = vadd.xlane.f32.xlu0 %v2756
        %v2788 = vpop.xlane.xlu0 %2787
        %v2789 = vmul.f32 %v2758, %v802
        %v2790 = vmul.f32 %v2760, %v802
        %v2791 = vmul.f32 %v2762, %v802
        %v2792 = vmul.f32 %v2764, %v802
        %v2793 = vmul.f32 %v2766, %v802
        %v2794 = vmul.f32 %v2768, %v802
        %v2795 = vmul.f32 %v2770, %v802
        %v2796 = vmul.f32 %v2772, %v802
        %v2797 = vmul.f32 %v2774, %v802
        %v2798 = vmul.f32 %v2776, %v802
        %v2799 = vmul.f32 %v2778, %v802
        %v2800 = vmul.f32 %v2780, %v802
        %v2801 = vmul.f32 %v2782, %v802
        %v2802 = vmul.f32 %v2784, %v802
        %v2803 = vmul.f32 %v2786, %v802
        %v2804 = vmul.f32 %v2788, %v802
        %v2805 = vadd.f32 %v2789, 1.1920929e-07
        %v2806 = vadd.f32 %v2790, 1.1920929e-07
        %v2807 = vadd.f32 %v2791, 1.1920929e-07
        %v2808 = vadd.f32 %v2792, 1.1920929e-07
        %v2809 = vadd.f32 %v2793, 1.1920929e-07
        %v2810 = vadd.f32 %v2794, 1.1920929e-07
        %v2811 = vadd.f32 %v2795, 1.1920929e-07
        %v2812 = vadd.f32 %v2796, 1.1920929e-07
        %v2813 = vadd.f32 %v2797, 1.1920929e-07
        %v2814 = vadd.f32 %v2798, 1.1920929e-07
        %v2815 = vadd.f32 %v2799, 1.1920929e-07
        %v2816 = vadd.f32 %v2800, 1.1920929e-07
        %v2817 = vadd.f32 %v2801, 1.1920929e-07
        %v2818 = vadd.f32 %v2802, 1.1920929e-07
        %v2819 = vadd.f32 %v2803, 1.1920929e-07
        %v2820 = vadd.f32 %v2804, 1.1920929e-07
        %v2821 = vrsqrt.pop %v2805
        %v2822 = vmul.f32 %v2821, %v2805
        %v2823 = vmul.f32 %v2822, %v2821
        %v2824 = vmul.f32 0.5, %v2823
        %v2825 = vsub.f32 1.5, %v2824
        %v2826 = vmul.f32 %v2821, %v2825
        %vm2827 = vweird.f32 %v2805
        %vm2828 = vweird.f32 %v2821
        %vm2829 = vmor %vm2827, %vm2828
        %v2830 = vsel %vm2829, %v2821, %v2826
        %v2831 = vrsqrt.pop %v2806
        %v2832 = vmul.f32 %v2831, %v2806
        %v2833 = vmul.f32 %v2832, %v2831
        %v2834 = vmul.f32 0.5, %v2833
        %v2835 = vsub.f32 1.5, %v2834
        %v2836 = vmul.f32 %v2831, %v2835
        %vm2837 = vweird.f32 %v2806
        %vm2838 = vweird.f32 %v2831
        %vm2839 = vmor %vm2837, %vm2838
        %v2840 = vsel %vm2839, %v2831, %v2836
        %v2841 = vrsqrt.pop %v2807
        %v2842 = vmul.f32 %v2841, %v2807
        %v2843 = vmul.f32 %v2842, %v2841
        %v2844 = vmul.f32 0.5, %v2843
        %v2845 = vsub.f32 1.5, %v2844
        %v2846 = vmul.f32 %v2841, %v2845
        %vm2847 = vweird.f32 %v2807
        %vm2848 = vweird.f32 %v2841
        %vm2849 = vmor %vm2847, %vm2848
        %v2850 = vsel %vm2849, %v2841, %v2846
        %v2851 = vrsqrt.pop %v2808
        %v2852 = vmul.f32 %v2851, %v2808
        %v2853 = vmul.f32 %v2852, %v2851
        %v2854 = vmul.f32 0.5, %v2853
        %v2855 = vsub.f32 1.5, %v2854
        %v2856 = vmul.f32 %v2851, %v2855
        %vm2857 = vweird.f32 %v2808
        %vm2858 = vweird.f32 %v2851
        %vm2859 = vmor %vm2857, %vm2858
        %v2860 = vsel %vm2859, %v2851, %v2856
        %v2861 = vrsqrt.pop %v2809
        %v2862 = vmul.f32 %v2861, %v2809
        %v2863 = vmul.f32 %v2862, %v2861
        %v2864 = vmul.f32 0.5, %v2863
        %v2865 = vsub.f32 1.5, %v2864
        %v2866 = vmul.f32 %v2861, %v2865
        %vm2867 = vweird.f32 %v2809
        %vm2868 = vweird.f32 %v2861
        %vm2869 = vmor %vm2867, %vm2868
        %v2870 = vsel %vm2869, %v2861, %v2866
        %v2871 = vrsqrt.pop %v2810
        %v2872 = vmul.f32 %v2871, %v2810
        %v2873 = vmul.f32 %v2872, %v2871
        %v2874 = vmul.f32 0.5, %v2873
        %v2875 = vsub.f32 1.5, %v2874
        %v2876 = vmul.f32 %v2871, %v2875
        %vm2877 = vweird.f32 %v2810
        %vm2878 = vweird.f32 %v2871
        %vm2879 = vmor %vm2877, %vm2878
        %v2880 = vsel %vm2879, %v2871, %v2876
        %v2881 = vrsqrt.pop %v2811
        %v2882 = vmul.f32 %v2881, %v2811
        %v2883 = vmul.f32 %v2882, %v2881
        %v2884 = vmul.f32 0.5, %v2883
        %v2885 = vsub.f32 1.5, %v2884
        %v2886 = vmul.f32 %v2881, %v2885
        %vm2887 = vweird.f32 %v2811
        %vm2888 = vweird.f32 %v2881
        %vm2889 = vmor %vm2887, %vm2888
        %v2890 = vsel %vm2889, %v2881, %v2886
        %v2891 = vrsqrt.pop %v2812
        %v2892 = vmul.f32 %v2891, %v2812
        %v2893 = vmul.f32 %v2892, %v2891
        %v2894 = vmul.f32 0.5, %v2893
        %v2895 = vsub.f32 1.5, %v2894
        %v2896 = vmul.f32 %v2891, %v2895
        %vm2897 = vweird.f32 %v2812
        %vm2898 = vweird.f32 %v2891
        %vm2899 = vmor %vm2897, %vm2898
        %v2900 = vsel %vm2899, %v2891, %v2896
        %v2901 = vrsqrt.pop %v2813
        %v2902 = vmul.f32 %v2901, %v2813
        %v2903 = vmul.f32 %v2902, %v2901
        %v2904 = vmul.f32 0.5, %v2903
        %v2905 = vsub.f32 1.5, %v2904
        %v2906 = vmul.f32 %v2901, %v2905
        %vm2907 = vweird.f32 %v2813
        %vm2908 = vweird.f32 %v2901
        %vm2909 = vmor %vm2907, %vm2908
        %v2910 = vsel %vm2909, %v2901, %v2906
        %v2911 = vrsqrt.pop %v2814
        %v2912 = vmul.f32 %v2911, %v2814
        %v2913 = vmul.f32 %v2912, %v2911
        %v2914 = vmul.f32 0.5, %v2913
        %v2915 = vsub.f32 1.5, %v2914
        %v2916 = vmul.f32 %v2911, %v2915
        %vm2917 = vweird.f32 %v2814
        %vm2918 = vweird.f32 %v2911
        %vm2919 = vmor %vm2917, %vm2918
        %v2920 = vsel %vm2919, %v2911, %v2916
        %v2921 = vrsqrt.pop %v2815
        %v2922 = vmul.f32 %v2921, %v2815
        %v2923 = vmul.f32 %v2922, %v2921
        %v2924 = vmul.f32 0.5, %v2923
        %v2925 = vsub.f32 1.5, %v2924
        %v2926 = vmul.f32 %v2921, %v2925
        %vm2927 = vweird.f32 %v2815
        %vm2928 = vweird.f32 %v2921
        %vm2929 = vmor %vm2927, %vm2928
        %v2930 = vsel %vm2929, %v2921, %v2926
        %v2931 = vrsqrt.pop %v2816
        %v2932 = vmul.f32 %v2931, %v2816
        %v2933 = vmul.f32 %v2932, %v2931
        %v2934 = vmul.f32 0.5, %v2933
        %v2935 = vsub.f32 1.5, %v2934
        %v2936 = vmul.f32 %v2931, %v2935
        %vm2937 = vweird.f32 %v2816
        %vm2938 = vweird.f32 %v2931
        %vm2939 = vmor %vm2937, %vm2938
        %v2940 = vsel %vm2939, %v2931, %v2936
        %v2941 = vrsqrt.pop %v2817
        %v2942 = vmul.f32 %v2941, %v2817
        %v2943 = vmul.f32 %v2942, %v2941
        %v2944 = vmul.f32 0.5, %v2943
        %v2945 = vsub.f32 1.5, %v2944
        %v2946 = vmul.f32 %v2941, %v2945
        %vm2947 = vweird.f32 %v2817
        %vm2948 = vweird.f32 %v2941
        %vm2949 = vmor %vm2947, %vm2948
        %v2950 = vsel %vm2949, %v2941, %v2946
        %v2951 = vrsqrt.pop %v2818
        %v2952 = vmul.f32 %v2951, %v2818
        %v2953 = vmul.f32 %v2952, %v2951
        %v2954 = vmul.f32 0.5, %v2953
        %v2955 = vsub.f32 1.5, %v2954
        %v2956 = vmul.f32 %v2951, %v2955
        %vm2957 = vweird.f32 %v2818
        %vm2958 = vweird.f32 %v2951
        %vm2959 = vmor %vm2957, %vm2958
        %v2960 = vsel %vm2959, %v2951, %v2956
        %v2961 = vrsqrt.pop %v2819
        %v2962 = vmul.f32 %v2961, %v2819
        %v2963 = vmul.f32 %v2962, %v2961
        %v2964 = vmul.f32 0.5, %v2963
        %v2965 = vsub.f32 1.5, %v2964
        %v2966 = vmul.f32 %v2961, %v2965
        %vm2967 = vweird.f32 %v2819
        %vm2968 = vweird.f32 %v2961
        %vm2969 = vmor %vm2967, %vm2968
        %v2970 = vsel %vm2969, %v2961, %v2966
        %v2971 = vrsqrt.pop %v2820
        %v2972 = vmul.f32 %v2971, %v2820
        %v2973 = vmul.f32 %v2972, %v2971
        %v2974 = vmul.f32 0.5, %v2973
        %v2975 = vsub.f32 1.5, %v2974
        %v2976 = vmul.f32 %v2971, %v2975
        %vm2977 = vweird.f32 %v2820
        %vm2978 = vweird.f32 %v2971
        %vm2979 = vmor %vm2977, %vm2978
        %v2980 = vsel %vm2979, %v2971, %v2976
        %v2981 = vmul.f32 %v1464, %v2830
        %v2982 = vmul.f32 %v1466, %v2840
        %v2983 = vmul.f32 %v1469, %v2850
        %v2984 = vmul.f32 %v1471, %v2860
        %v2985 = vmul.f32 %v1474, %v2870
        %v2986 = vmul.f32 %v1476, %v2880
        %v2987 = vmul.f32 %v1479, %v2890
        %v2988 = vmul.f32 %v1481, %v2900
        %v2989 = vmul.f32 %v1484, %v2910
        %v2990 = vmul.f32 %v1486, %v2920
        %v2991 = vmul.f32 %v1489, %v2930
        %v2992 = vmul.f32 %v1491, %v2940
        %v2993 = vmul.f32 %v1494, %v2950
        %v2994 = vmul.f32 %v1496, %v2960
        %v2995 = vmul.f32 %v1499, %v2970
        %v2996 = vmul.f32 %v1501, %v2980
        %v2997 = vmul.f32 %v2725, %v1601
        %v2998 = vmul.f32 %v2726, %v1602
        %v2999 = vmul.f32 %v2727, %v1603
        %v3000 = vmul.f32 %v2728, %v1604
        %v3001 = vmul.f32 %v2729, %v1605
        %v3002 = vmul.f32 %v2730, %v1606
        %v3003 = vmul.f32 %v2731, %v1607
        %v3004 = vmul.f32 %v2732, %v1608
        %v3005 = vmul.f32 %v2733, %v1609
        %v3006 = vmul.f32 %v2734, %v1610
        %v3007 = vmul.f32 %v2735, %v1611
        %v3008 = vmul.f32 %v2736, %v1612
        %v3009 = vmul.f32 %v2737, %v1613
        %v3010 = vmul.f32 %v2738, %v1614
        %v3011 = vmul.f32 %v2739, %v1615
        %v3012 = vmul.f32 %v2740, %v1616
        %3013 = vrot.lane.b32.xlu0 %v2725, 64
        %v3014 = vpop.permute.xlu0 %3013
        %3015 = vrot.lane.b32.xlu0 %v2726, 64
        %v3016 = vpop.permute.xlu0 %3015
        %3017 = vrot.lane.b32.xlu0 %v2727, 64
        %v3018 = vpop.permute.xlu0 %3017
        %3019 = vrot.lane.b32.xlu0 %v2728, 64
        %v3020 = vpop.permute.xlu0 %3019
        %3021 = vrot.lane.b32.xlu0 %v2729, 64
        %v3022 = vpop.permute.xlu0 %3021
        %3023 = vrot.lane.b32.xlu0 %v2730, 64
        %v3024 = vpop.permute.xlu0 %3023
        %3025 = vrot.lane.b32.xlu0 %v2731, 64
        %v3026 = vpop.permute.xlu0 %3025
        %3027 = vrot.lane.b32.xlu0 %v2732, 64
        %v3028 = vpop.permute.xlu0 %3027
        %3029 = vrot.lane.b32.xlu0 %v2733, 64
        %v3030 = vpop.permute.xlu0 %3029
        %3031 = vrot.lane.b32.xlu0 %v2734, 64
        %v3032 = vpop.permute.xlu0 %3031
        %3033 = vrot.lane.b32.xlu0 %v2735, 64
        %v3034 = vpop.permute.xlu0 %3033
        %3035 = vrot.lane.b32.xlu0 %v2736, 64
        %v3036 = vpop.permute.xlu0 %3035
        %3037 = vrot.lane.b32.xlu0 %v2737, 64
        %v3038 = vpop.permute.xlu0 %3037
        %3039 = vrot.lane.b32.xlu0 %v2738, 64
        %v3040 = vpop.permute.xlu0 %3039
        %3041 = vrot.lane.b32.xlu0 %v2739, 64
        %v3042 = vpop.permute.xlu0 %3041
        %3043 = vrot.lane.b32.xlu0 %v2740, 64
        %v3044 = vpop.permute.xlu0 %3043
        %v3045 = vmul.f32 %v3014, %v1617
        %v3046 = vmul.f32 %v3016, %v1618
        %v3047 = vmul.f32 %v3018, %v1619
        %v3048 = vmul.f32 %v3020, %v1620
        %v3049 = vmul.f32 %v3022, %v1621
        %v3050 = vmul.f32 %v3024, %v1622
        %v3051 = vmul.f32 %v3026, %v1623
        %v3052 = vmul.f32 %v3028, %v1624
        %v3053 = vmul.f32 %v3030, %v1625
        %v3054 = vmul.f32 %v3032, %v1626
        %v3055 = vmul.f32 %v3034, %v1627
        %v3056 = vmul.f32 %v3036, %v1628
        %v3057 = vmul.f32 %v3038, %v1629
        %v3058 = vmul.f32 %v3040, %v1630
        %v3059 = vmul.f32 %v3042, %v1631
        %v3060 = vmul.f32 %v3044, %v1632
        %v3061 = vadd.f32 %v2997, %v3045
        %v3062 = vadd.f32 %v2998, %v3046
        %v3063 = vadd.f32 %v2999, %v3047
        %v3064 = vadd.f32 %v3000, %v3048
        %v3065 = vadd.f32 %v3001, %v3049
        %v3066 = vadd.f32 %v3002, %v3050
        %v3067 = vadd.f32 %v3003, %v3051
        %v3068 = vadd.f32 %v3004, %v3052
        %v3069 = vadd.f32 %v3005, %v3053
        %v3070 = vadd.f32 %v3006, %v3054
        %v3071 = vadd.f32 %v3007, %v3055
        %v3072 = vadd.f32 %v3008, %v3056
        %v3073 = vadd.f32 %v3009, %v3057
        %v3074 = vadd.f32 %v3010, %v3058
        %v3075 = vadd.f32 %v3011, %v3059
        %v3076 = vadd.f32 %v3012, %v3060
        %v3077 = vmul.f32 %v2981, %v1601
        %v3078 = vmul.f32 %v2982, %v1602
        %v3079 = vmul.f32 %v2983, %v1603
        %v3080 = vmul.f32 %v2984, %v1604
        %v3081 = vmul.f32 %v2985, %v1605
        %v3082 = vmul.f32 %v2986, %v1606
        %v3083 = vmul.f32 %v2987, %v1607
        %v3084 = vmul.f32 %v2988, %v1608
        %v3085 = vmul.f32 %v2989, %v1609
        %v3086 = vmul.f32 %v2990, %v1610
        %v3087 = vmul.f32 %v2991, %v1611
        %v3088 = vmul.f32 %v2992, %v1612
        %v3089 = vmul.f32 %v2993, %v1613
        %v3090 = vmul.f32 %v2994, %v1614
        %v3091 = vmul.f32 %v2995, %v1615
        %v3092 = vmul.f32 %v2996, %v1616
        %3093 = vrot.lane.b32.xlu0 %v2981, 64
        %v3094 = vpop.permute.xlu0 %3093
        %3095 = vrot.lane.b32.xlu0 %v2982, 64
        %v3096 = vpop.permute.xlu0 %3095
        %3097 = vrot.lane.b32.xlu0 %v2983, 64
        %v3098 = vpop.permute.xlu0 %3097
        %3099 = vrot.lane.b32.xlu0 %v2984, 64
        %v3100 = vpop.permute.xlu0 %3099
        %3101 = vrot.lane.b32.xlu0 %v2985, 64
        %v3102 = vpop.permute.xlu0 %3101
        %3103 = vrot.lane.b32.xlu0 %v2986, 64
        %v3104 = vpop.permute.xlu0 %3103
        %3105 = vrot.lane.b32.xlu0 %v2987, 64
        %v3106 = vpop.permute.xlu0 %3105
        %3107 = vrot.lane.b32.xlu0 %v2988, 64
        %v3108 = vpop.permute.xlu0 %3107
        %3109 = vrot.lane.b32.xlu0 %v2989, 64
        %v3110 = vpop.permute.xlu0 %3109
        %3111 = vrot.lane.b32.xlu0 %v2990, 64
        %v3112 = vpop.permute.xlu0 %3111
        %3113 = vrot.lane.b32.xlu0 %v2991, 64
        %v3114 = vpop.permute.xlu0 %3113
        %3115 = vrot.lane.b32.xlu0 %v2992, 64
        %v3116 = vpop.permute.xlu0 %3115
        %3117 = vrot.lane.b32.xlu0 %v2993, 64
        %v3118 = vpop.permute.xlu0 %3117
        %3119 = vrot.lane.b32.xlu0 %v2994, 64
        %v3120 = vpop.permute.xlu0 %3119
        %3121 = vrot.lane.b32.xlu0 %v2995, 64
        %v3122 = vpop.permute.xlu0 %3121
        %3123 = vrot.lane.b32.xlu0 %v2996, 64
        %v3124 = vpop.permute.xlu0 %3123
        %v3125 = vmul.f32 %v3094, %v1617
        %v3126 = vmul.f32 %v3096, %v1618
        %v3127 = vmul.f32 %v3098, %v1619
        %v3128 = vmul.f32 %v3100, %v1620
        %v3129 = vmul.f32 %v3102, %v1621
        %v3130 = vmul.f32 %v3104, %v1622
        %v3131 = vmul.f32 %v3106, %v1623
        %v3132 = vmul.f32 %v3108, %v1624
        %v3133 = vmul.f32 %v3110, %v1625
        %v3134 = vmul.f32 %v3112, %v1626
        %v3135 = vmul.f32 %v3114, %v1627
        %v3136 = vmul.f32 %v3116, %v1628
        %v3137 = vmul.f32 %v3118, %v1629
        %v3138 = vmul.f32 %v3120, %v1630
        %v3139 = vmul.f32 %v3122, %v1631
        %v3140 = vmul.f32 %v3124, %v1632
        %v3141 = vadd.f32 %v3077, %v3125
        %v3142 = vadd.f32 %v3078, %v3126
        %v3143 = vadd.f32 %v3079, %v3127
        %v3144 = vadd.f32 %v3080, %v3128
        %v3145 = vadd.f32 %v3081, %v3129
        %v3146 = vadd.f32 %v3082, %v3130
        %v3147 = vadd.f32 %v3083, %v3131
        %v3148 = vadd.f32 %v3084, %v3132
        %v3149 = vadd.f32 %v3085, %v3133
        %v3150 = vadd.f32 %v3086, %v3134
        %v3151 = vadd.f32 %v3087, %v3135
        %v3152 = vadd.f32 %v3088, %v3136
        %v3153 = vadd.f32 %v3089, %v3137
        %v3154 = vadd.f32 %v3090, %v3138
        %v3155 = vadd.f32 %v3091, %v3139
        %v3156 = vadd.f32 %v3092, %v3140
        %v3157 = vmul.f32 %v3061, 0.12
        %v3158 = vmul.f32 %v3062, 0.12
        %v3159 = vmul.f32 %v3063, 0.12
        %v3160 = vmul.f32 %v3064, 0.12
        %v3161 = vmul.f32 %v3065, 0.12
        %v3162 = vmul.f32 %v3066, 0.12
        %v3163 = vmul.f32 %v3067, 0.12
        %v3164 = vmul.f32 %v3068, 0.12
        %v3165 = vmul.f32 %v3069, 0.12
        %v3166 = vmul.f32 %v3070, 0.12
        %v3167 = vmul.f32 %v3071, 0.12
        %v3168 = vmul.f32 %v3072, 0.12
        %v3169 = vmul.f32 %v3073, 0.12
        %v3170 = vmul.f32 %v3074, 0.12
        %v3171 = vmul.f32 %v3075, 0.12
        %v3172 = vmul.f32 %v3076, 0.12
        %v3173 = vpack.c.bf16 %v3157, %v3157
        %v3174 = vpack.c.bf16 %v3158, %v3158
        %v3175 = vpack.c.bf16 %v3159, %v3159
        %v3176 = vpack.c.bf16 %v3160, %v3160
        %v3177 = vpack.c.bf16 %v3161, %v3161
        %v3178 = vpack.c.bf16 %v3162, %v3162
        %v3179 = vpack.c.bf16 %v3163, %v3163
        %v3180 = vpack.c.bf16 %v3164, %v3164
        %v3181 = vpack.c.bf16 %v3165, %v3165
        %v3182 = vpack.c.bf16 %v3166, %v3166
        %v3183 = vpack.c.bf16 %v3167, %v3167
        %v3184 = vpack.c.bf16 %v3168, %v3168
        %v3185 = vpack.c.bf16 %v3169, %v3169
        %v3186 = vpack.c.bf16 %v3170, %v3170
        %v3187 = vpack.c.bf16 %v3171, %v3171
        %v3188 = vpack.c.bf16 %v3172, %v3172
        %3189 = vst [vmem:[%s624 + $0x4] sm:$0xf] %v3173
        %3190 = vst [vmem:[%s624 + $0xc] sm:$0xf] %v3174
        %3191 = vst [vmem:[%s624 + $0x14] sm:$0xf] %v3175
        %3192 = vst [vmem:[%s624 + $0x1c] sm:$0xf] %v3176
        %3193 = vst [vmem:[%s624 + $0x24] sm:$0xf] %v3177
        %3194 = vst [vmem:[%s624 + $0x2c] sm:$0xf] %v3178
        %3195 = vst [vmem:[%s624 + $0x34] sm:$0xf] %v3179
        %3196 = vst [vmem:[%s624 + $0x3c] sm:$0xf] %v3180
        %3197 = vst [vmem:[%s624 + $0x44] sm:$0xf] %v3181
        %3198 = vst [vmem:[%s624 + $0x4c] sm:$0xf] %v3182
        %3199 = vst [vmem:[%s624 + $0x54] sm:$0xf] %v3183
        %3200 = vst [vmem:[%s624 + $0x5c] sm:$0xf] %v3184
        %3201 = vst [vmem:[%s624 + $0x64] sm:$0xf] %v3185
        %3202 = vst [vmem:[%s624 + $0x6c] sm:$0xf] %v3186
        %3203 = vst [vmem:[%s624 + $0x74] sm:$0xf] %v3187
        %3204 = vst [vmem:[%s624 + $0x7c] sm:$0xf] %v3188
        %v3205 = vpack.c.bf16 %v3141, %v3141
        %v3206 = vpack.c.bf16 %v3142, %v3142
        %v3207 = vpack.c.bf16 %v3143, %v3143
        %v3208 = vpack.c.bf16 %v3144, %v3144
        %v3209 = vpack.c.bf16 %v3145, %v3145
        %v3210 = vpack.c.bf16 %v3146, %v3146
        %v3211 = vpack.c.bf16 %v3147, %v3147
        %v3212 = vpack.c.bf16 %v3148, %v3148
        %v3213 = vpack.c.bf16 %v3149, %v3149
        %v3214 = vpack.c.bf16 %v3150, %v3150
        %v3215 = vpack.c.bf16 %v3151, %v3151
        %v3216 = vpack.c.bf16 %v3152, %v3152
        %v3217 = vpack.c.bf16 %v3153, %v3153
        %v3218 = vpack.c.bf16 %v3154, %v3154
        %v3219 = vpack.c.bf16 %v3155, %v3155
        %v3220 = vpack.c.bf16 %v3156, %v3156
        %3221 = vst [vmem:[%s631 + $0x4] sm:$0xf] %v3205
        %3222 = vst [vmem:[%s631 + $0xc] sm:$0xf] %v3206
        %3223 = vst [vmem:[%s631 + $0x14] sm:$0xf] %v3207
        %3224 = vst [vmem:[%s631 + $0x1c] sm:$0xf] %v3208
        %3225 = vst [vmem:[%s631 + $0x24] sm:$0xf] %v3209
        %3226 = vst [vmem:[%s631 + $0x2c] sm:$0xf] %v3210
        %3227 = vst [vmem:[%s631 + $0x34] sm:$0xf] %v3211
        %3228 = vst [vmem:[%s631 + $0x3c] sm:$0xf] %v3212
        %3229 = vst [vmem:[%s631 + $0x44] sm:$0xf] %v3213
        %3230 = vst [vmem:[%s631 + $0x4c] sm:$0xf] %v3214
        %3231 = vst [vmem:[%s631 + $0x54] sm:$0xf] %v3215
        %3232 = vst [vmem:[%s631 + $0x5c] sm:$0xf] %v3216
        %3233 = vst [vmem:[%s631 + $0x64] sm:$0xf] %v3217
        %3234 = vst [vmem:[%s631 + $0x6c] sm:$0xf] %v3218
        %3235 = vst [vmem:[%s631 + $0x74] sm:$0xf] %v3219
        %3236 = vst [vmem:[%s631 + $0x7c] sm:$0xf] %v3220
        %v3237 = vmul.f32 %v2387, %v1562
        %v3238 = vmul.f32 %v2387, %v1564
        %v3239 = vmul.f32 %v2387, %v1567
        %v3240 = vmul.f32 %v2387, %v1569
        %v3241 = vmul.f32 %v2387, %v1572
        %v3242 = vmul.f32 %v2387, %v1574
        %v3243 = vmul.f32 %v2387, %v1577
        %v3244 = vmul.f32 %v2387, %v1579
        %v3245 = vmul.f32 %v2387, %v1582
        %v3246 = vmul.f32 %v2387, %v1584
        %v3247 = vmul.f32 %v2387, %v1587
        %v3248 = vmul.f32 %v2387, %v1589
        %v3249 = vmul.f32 %v2387, %v1592
        %v3250 = vmul.f32 %v2387, %v1594
        %v3251 = vmul.f32 %v2387, %v1597
        %v3252 = vmul.f32 %v2387, %v1599
        %v3253 = vld [vmem:[%s538 + $0x8] sm:$0xff]
        %v3254 = vld [vmem:[%s538 + $0x18] sm:$0xff]
        %v3255 = vld [vmem:[%s538 + $0x28] sm:$0xff]
        %v3256 = vld [vmem:[%s538 + $0x38] sm:$0xff]
        %v3257 = vld [vmem:[%s538 + $0x48] sm:$0xff]
        %v3258 = vld [vmem:[%s538 + $0x58] sm:$0xff]
        %v3259 = vld [vmem:[%s538 + $0x68] sm:$0xff]
        %v3260 = vld [vmem:[%s538 + $0x78] sm:$0xff]
        %v3261 = vld [vmem:[%s538 + $0x88] sm:$0xff]
        %v3262 = vld [vmem:[%s538 + $0x98] sm:$0xff]
        %v3263 = vld [vmem:[%s538 + $0xa8] sm:$0xff]
        %v3264 = vld [vmem:[%s538 + $0xb8] sm:$0xff]
        %v3265 = vld [vmem:[%s538 + $0xc8] sm:$0xff]
        %v3266 = vld [vmem:[%s538 + $0xd8] sm:$0xff]
        %v3267 = vld [vmem:[%s538 + $0xe8] sm:$0xff]
        %v3268 = vld [vmem:[%s538 + $0xf8] sm:$0xff]
        %v3269 = vmul.f32 %v2420, %v3253
        %v3270 = vmul.f32 %v2420, %v3254
        %v3271 = vmul.f32 %v2420, %v3255
        %v3272 = vmul.f32 %v2420, %v3256
        %v3273 = vmul.f32 %v2420, %v3257
        %v3274 = vmul.f32 %v2420, %v3258
        %v3275 = vmul.f32 %v2420, %v3259
        %v3276 = vmul.f32 %v2420, %v3260
        %v3277 = vmul.f32 %v2420, %v3261
        %v3278 = vmul.f32 %v2420, %v3262
        %v3279 = vmul.f32 %v2420, %v3263
        %v3280 = vmul.f32 %v2420, %v3264
        %v3281 = vmul.f32 %v2420, %v3265
        %v3282 = vmul.f32 %v2420, %v3266
        %v3283 = vmul.f32 %v2420, %v3267
        %v3284 = vmul.f32 %v2420, %v3268
        %v3285 = vadd.f32 %v3237, %v3269
        %v3286 = vadd.f32 %v3238, %v3270
        %v3287 = vadd.f32 %v3239, %v3271
        %v3288 = vadd.f32 %v3240, %v3272
        %v3289 = vadd.f32 %v3241, %v3273
        %v3290 = vadd.f32 %v3242, %v3274
        %v3291 = vadd.f32 %v3243, %v3275
        %v3292 = vadd.f32 %v3244, %v3276
        %v3293 = vadd.f32 %v3245, %v3277
        %v3294 = vadd.f32 %v3246, %v3278
        %v3295 = vadd.f32 %v3247, %v3279
        %v3296 = vadd.f32 %v3248, %v3280
        %v3297 = vadd.f32 %v3249, %v3281
        %v3298 = vadd.f32 %v3250, %v3282
        %v3299 = vadd.f32 %v3251, %v3283
        %v3300 = vadd.f32 %v3252, %v3284
        %v3301 = vpack.c.bf16 %v3285, %v3285
        %v3302 = vpack.c.bf16 %v3286, %v3286
        %v3303 = vpack.c.bf16 %v3287, %v3287
        %v3304 = vpack.c.bf16 %v3288, %v3288
        %v3305 = vpack.c.bf16 %v3289, %v3289
        %v3306 = vpack.c.bf16 %v3290, %v3290
        %v3307 = vpack.c.bf16 %v3291, %v3291
        %v3308 = vpack.c.bf16 %v3292, %v3292
        %v3309 = vpack.c.bf16 %v3293, %v3293
        %v3310 = vpack.c.bf16 %v3294, %v3294
        %v3311 = vpack.c.bf16 %v3295, %v3295
        %v3312 = vpack.c.bf16 %v3296, %v3296
        %v3313 = vpack.c.bf16 %v3297, %v3297
        %v3314 = vpack.c.bf16 %v3298, %v3298
        %v3315 = vpack.c.bf16 %v3299, %v3299
        %v3316 = vpack.c.bf16 %v3300, %v3300
        %3317 = vst [vmem:[%s638 + $0x4] sm:$0xf] %v3301
        %3318 = vst [vmem:[%s638 + $0xc] sm:$0xf] %v3302
        %3319 = vst [vmem:[%s638 + $0x14] sm:$0xf] %v3303
        %3320 = vst [vmem:[%s638 + $0x1c] sm:$0xf] %v3304
        %3321 = vst [vmem:[%s638 + $0x24] sm:$0xf] %v3305
        %3322 = vst [vmem:[%s638 + $0x2c] sm:$0xf] %v3306
        %3323 = vst [vmem:[%s638 + $0x34] sm:$0xf] %v3307
        %3324 = vst [vmem:[%s638 + $0x3c] sm:$0xf] %v3308
        %3325 = vst [vmem:[%s638 + $0x44] sm:$0xf] %v3309
        %3326 = vst [vmem:[%s638 + $0x4c] sm:$0xf] %v3310
        %3327 = vst [vmem:[%s638 + $0x54] sm:$0xf] %v3311
        %3328 = vst [vmem:[%s638 + $0x5c] sm:$0xf] %v3312
        %3329 = vst [vmem:[%s638 + $0x64] sm:$0xf] %v3313
        %3330 = vst [vmem:[%s638 + $0x6c] sm:$0xf] %v3314
        %3331 = vst [vmem:[%s638 + $0x74] sm:$0xf] %v3315
        %3332 = vst [vmem:[%s638 + $0x7c] sm:$0xf] %v3316
        %s3333 = sand.u32 %s242, 1
        %s3334 = scalar_lea.sflag [#allocation4], %s3333
        %s3335 = sand.u32 %s242, 1
        %s3336 = smul.addr %s3335, 128
        %s3337 = scalar_lea.vmem [#allocation16], %s3336
        %s3338 = sand.u32 %s41, 1
        %s3339 = scalar_lea.sflag [#allocation18], %s3338
        %s3340 = sand.u32 %s268, 1
        %s3341 = smul.addr %s3340, 128
        %s3342 = scalar_lea.vmem [#allocation17], %s3341
        %s3343 = sand.u32 %s41, 1
        %s3344 = scalar_lea.sflag [#allocation18], %s3343
        %s3345 = sand.u32 %s294, 1
        %s3346 = smul.addr %s3345, 128
        %s3347 = scalar_lea.vmem [#allocation19], %s3346
        %s3348 = sand.u32 %s320, 1
        %s3349 = scalar_lea.sflag [#allocation21], %s3348
        %s3350 = sand.u32 %s320, 1
        %s3351 = smul.addr %s3350, 128
        %s3352 = scalar_lea.vmem [#allocation20], %s3351
        // Predicated region
        $region85: #{tpu_custom_call.1} parent=51 // pred_check
          %p3353 = pneg %p252
        $region86: #{tpu_custom_call.1} parent=51 // pred_check_branch
          %3355 = sbr.rel (%p3353) target = $region88
        $region87: #{tpu_custom_call.1} parent=51 // pred_region
          %s3356 = smul.u32 16, %s41
          %3358 = vsyncadd %s3334, 0
          %s3359 = smul.addr %s3356, 8
          %s3360 = scalar_lea.hbm %s8, %s3359
          %s3361 = sshll.u32 %s3337, 4
          %s3362 = int_to_ptr.vmem [resolvable:$true] %s3361
          %s3363 = sshll.u32 %s3360, 4
          %s3364 = int_to_ptr.hbm [resolvable:$true] %s3363
          %3369 = dma.vmem_to_hbm [thread:$0]  %s3362, 2048, %s3364, %s3334, 128, 128, 8
        $region88: #{tpu_custom_call.1} parent=51 // pred_fallthru
          _
        // Predicated region
        $region89: #{tpu_custom_call.1} parent=51 // pred_check
          %p3370 = pneg %p278
        $region90: #{tpu_custom_call.1} parent=51 // pred_check_branch
          %3372 = sbr.rel (%p3370) target = $region92
        $region91: #{tpu_custom_call.1} parent=51 // pred_region
          %s3373 = smul.u32 16, %s41
          %3375 = vsyncadd %s3339, 0
          %s3376 = smul.addr %s3373, 2
          %s3377 = smul.addr %s3376, 4
          %s3378 = scalar_lea.hbm %s9, %s3377
          %s3379 = sshll.u32 %s3342, 4
          %s3380 = int_to_ptr.vmem [resolvable:$true] %s3379
          %s3381 = sshll.u32 %s3378, 4
          %s3382 = int_to_ptr.hbm [resolvable:$true] %s3381
          %3387 = dma.vmem_to_hbm [thread:$0]  %s3380, 2048, %s3382, %s3339, 128, 128, 8
        $region92: #{tpu_custom_call.1} parent=51 // pred_fallthru
          _
        // Predicated region
        $region93: #{tpu_custom_call.1} parent=51 // pred_check
          %p3388 = pneg %p304
        $region94: #{tpu_custom_call.1} parent=51 // pred_check_branch
          %3390 = sbr.rel (%p3388) target = $region96
        $region95: #{tpu_custom_call.1} parent=51 // pred_region
          %s3391 = smul.u32 16, %s41
          %3393 = vsyncadd %s3344, 0
          %s3394 = smul.addr %s3391, 2
          %s3395 = smul.addr %s3394, 4
          %s3396 = scalar_lea.hbm %s10, %s3395
          %s3397 = sshll.u32 %s3347, 4
          %s3398 = int_to_ptr.vmem [resolvable:$true] %s3397
          %s3399 = sshll.u32 %s3396, 4
          %s3400 = int_to_ptr.hbm [resolvable:$true] %s3399
          %3405 = dma.vmem_to_hbm [thread:$0]  %s3398, 2048, %s3400, %s3344, 128, 128, 8
        $region96: #{tpu_custom_call.1} parent=51 // pred_fallthru
          _
        // Predicated region
        $region97: #{tpu_custom_call.1} parent=51 // pred_check
          %p3406 = pneg %p330
        $region98: #{tpu_custom_call.1} parent=51 // pred_check_branch
          %3408 = sbr.rel (%p3406) target = $region100
        $region99: #{tpu_custom_call.1} parent=51 // pred_region
          %s3409 = smul.u32 16, %s41
          %3411 = vsyncadd %s3349, 0
          %s3412 = smul.addr %s3409, 2
          %s3413 = smul.addr %s3412, 4
          %s3414 = scalar_lea.hbm %s11, %s3413
          %s3415 = sshll.u32 %s3352, 4
          %s3416 = int_to_ptr.vmem [resolvable:$true] %s3415
          %s3417 = sshll.u32 %s3414, 4
          %s3418 = int_to_ptr.hbm [resolvable:$true] %s3417
          %3423 = dma.vmem_to_hbm [thread:$0]  %s3416, 2048, %s3418, %s3349, 128, 128, 8
        $region100: #{tpu_custom_call.1} parent=51 // pred_fallthru
          _
      $region52: #{tpu_custom_call.1} parent=5 // pred_fallthru
        _
      %p3424 = scmp.le.s32.totalorder 2, %s36
      // Predicated region
      $region101: #{tpu_custom_call.1} parent=5 // pred_check
        %p3425 = pneg %p3424
      $region102: #{tpu_custom_call.1} parent=5 // pred_check_branch
        %3427 = sbr.rel (%p3425) target = $region104
      $region103: #{tpu_custom_call.1} parent=5 // pred_region
        %s3428 = ssub.s32 %s36, 2
        // Predicated region
        $region105: #{tpu_custom_call.1} parent=103 // pred_check
          %p3429 = pneg %p258
        $region106: #{tpu_custom_call.1} parent=103 // pred_check_branch
          %3431 = sbr.rel (%p3429) target = $region108
        $region107: #{tpu_custom_call.1} parent=103 // pred_region
          %s3432 = sand.u32 %s243, 1
          %s3433 = scalar_lea.sflag [#allocation4], %s3432
          %s3434 = sand.u32 %s243, 1
          %s3435 = smul.addr %s3434, 128
          %s3436 = scalar_lea.vmem [#allocation16], %s3435
          %3438 = dma.done %s3433, 2048
        $region108: #{tpu_custom_call.1} parent=103 // pred_fallthru
          _
        // Predicated region
        $region109: #{tpu_custom_call.1} parent=103 // pred_check
          %p3439 = pneg %p284
        $region110: #{tpu_custom_call.1} parent=103 // pred_check_branch
          %3441 = sbr.rel (%p3439) target = $region112
        $region111: #{tpu_custom_call.1} parent=103 // pred_region
          %s3442 = sand.u32 %s42, 1
          %s3443 = scalar_lea.sflag [#allocation18], %s3442
          %s3444 = sand.u32 %s269, 1
          %s3445 = smul.addr %s3444, 128
          %s3446 = scalar_lea.vmem [#allocation17], %s3445
          %3448 = dma.done %s3443, 2048
        $region112: #{tpu_custom_call.1} parent=103 // pred_fallthru
          _
        // Predicated region
        $region113: #{tpu_custom_call.1} parent=103 // pred_check
          %p3449 = pneg %p310
        $region114: #{tpu_custom_call.1} parent=103 // pred_check_branch
          %3451 = sbr.rel (%p3449) target = $region116
        $region115: #{tpu_custom_call.1} parent=103 // pred_region
          %s3452 = sand.u32 %s42, 1
          %s3453 = scalar_lea.sflag [#allocation18], %s3452
          %s3454 = sand.u32 %s295, 1
          %s3455 = smul.addr %s3454, 128
          %s3456 = scalar_lea.vmem [#allocation19], %s3455
          %3458 = dma.done %s3453, 2048
        $region116: #{tpu_custom_call.1} parent=103 // pred_fallthru
          _
        // Predicated region
        $region117: #{tpu_custom_call.1} parent=103 // pred_check
          %p3459 = pneg %p336
        $region118: #{tpu_custom_call.1} parent=103 // pred_check_branch
          %3461 = sbr.rel (%p3459) target = $region120
        $region119: #{tpu_custom_call.1} parent=103 // pred_region
          %s3462 = sand.u32 %s321, 1
          %s3463 = scalar_lea.sflag [#allocation21], %s3462
          %s3464 = sand.u32 %s321, 1
          %s3465 = smul.addr %s3464, 128
          %s3466 = scalar_lea.vmem [#allocation20], %s3465
          %3468 = dma.done %s3463, 2048
        $region120: #{tpu_custom_call.1} parent=103 // pred_fallthru
          _
      $region104: #{tpu_custom_call.1} parent=5 // pred_fallthru
        _
    $region6: #{tpu_custom_call.1} parent=1 // loop_footer
      %s40 = sadd.s32 1, %s36
    $region7: #{tpu_custom_call.1} parent=1 // loop_footer_branch
      %35 = sbr.rel target = $region3
    $region8: #{tpu_custom_call.1} parent=1 // loop_exit
      _
    %3469 = vsyncpa [#allocation3], 1
    %s3470 = scalar_lea.sflag [#allocation3], 1
    %3471 = vsyncpa %s3470, 1
    %3472 = vsyncpa [#allocation10], 1
    %s3473 = scalar_lea.sflag [#allocation10], 1
    %3474 = vsyncpa %s3473, 1
    %3475 = vsyncpa [#allocation13], 1
    %3476 = vsyncpa [#allocation4], 1
    %s3477 = scalar_lea.sflag [#allocation4], 1
    %3478 = vsyncpa %s3477, 1
    %3479 = vsyncpa [#allocation18], 1
    %s3480 = scalar_lea.sflag [#allocation18], 1
    %3481 = vsyncpa %s3480, 1
    %3482 = vsyncpa [#allocation21], 1
    %s3483 = scalar_lea.sflag [#allocation21], 1
    %3484 = vsyncpa %s3483, 1
    %3485 = vsyncpa [#allocation5], 1
    %s3486 = scalar_lea.sflag [#allocation5], 1
    %3487 = vsyncpa %s3486, 1
    %3488 = vsyncpa [#allocation7], 1

</llo_original>
